<compile_context>
chip_gen: v7x
topology: tpu7x:2x2x1
jax: 0.10.0
libtpu: 0.0.40
codegen_flags: <defaults>
</compile_context>

<pallas_src>
import jax
import jax.numpy as jnp
from jax import lax
from jax.experimental import pallas as pl
from jax.experimental.pallas import tpu as pltpu

H1, H2, H3 = 1024, 512, 300
H3_PAD = 384  # pad 300 -> 384 so the h3 feature (lane) dim is a multiple of 128


def critic_kernel(x_ref,
                  w1_ref, b1_ref,
                  w2a_ref, w2b_ref, b2_ref,
                  w3_ref, b3_ref,
                  w4_ref, b4_ref,
                  out_ref):
    # Packed input: [bm, K_PAD] bf16 = [obs | acts | zero lanes]
    x = x_ref[...]

    # FC1 + relu  (bf16 x bf16 -> f32 MXU accumulate).  The acts / padding rows
    # of W1p are zero, so this equals obs @ W1 exactly.
    h1 = jnp.dot(x, w1_ref[...], preferred_element_type=jnp.float32)
    h1 = jnp.maximum(h1 + b1_ref[...], 0.0).astype(jnp.bfloat16)

    # FC2 on concat([h1, acts]) == h1 @ W2a + packed @ W2b_padded, then relu.
    h2 = (jnp.dot(h1, w2a_ref[...], preferred_element_type=jnp.float32)
          + jnp.dot(x, w2b_ref[...], preferred_element_type=jnp.float32))
    h2 = jnp.maximum(h2 + b2_ref[...], 0.0).astype(jnp.bfloat16)

    # FC3 + relu.  Output width padded to H3_PAD (padded cols are exactly 0).
    # h3 stays f32: the final matmul is tiny (M=1, K=384) and f32 here removes
    # one bf16 round-trip before the scalar output.
    h3 = jnp.dot(h2, w3_ref[...], preferred_element_type=jnp.float32)
    h3 = jnp.maximum(h3 + b3_ref[...], 0.0)

    # FC4: out = w4_row @ h3^T -> [1, bm]  (batch on lanes => lane-dense,
    # unmasked full-lane store).
    out = lax.dot_general(w4_ref[...], h3, (((1,), (1,)), ((), ())),
                          preferred_element_type=jnp.float32)
    out_ref[...] = (out + b4_ref[...]).astype(out_ref.dtype)


def critic_forward(obs, acts, prepared, *, bm=None):
    """obs: [B, obs_dim] f32, acts: [B, act_dim] f32. Returns [B, 1] f32."""
    B, obs_dim = obs.shape
    act_dim = acts.shape[1]
    p = prepared
    k_pad = p["w1"].shape[0]          # packed/padded input feature width
    in_dim = obs_dim + act_dim
    assert in_dim <= k_pad

    if bm is None:
        if B <= 128:
            bm = B        # single block = full array dims (lane-dense out block
                          # must be a multiple of 128 once the grid splits)
        elif B >= 2048:
            bm = 512      # fat tiles: amortize per-step overhead, fill 256-tall MXU
        elif B >= 512:
            bm = 256
        else:
            bm = 128      # grid >= 2 (and even for B=256) keeps both v7x TCs busy

    n_blocks = pl.cdiv(B, bm)
    Bp = n_blocks * bm

    # Single fused prep pass over the inputs: concat obs|acts, cast to bf16,
    # zero-pad ragged batch rows (B -> Bp) and feature lanes (in_dim -> k_pad).
    x = jnp.concatenate([obs, acts], axis=1).astype(jnp.bfloat16)
    x = jnp.pad(x, ((0, Bp - B), (0, k_pad - in_dim)))

    def full_spec(arr):
        return pl.BlockSpec(arr.shape, lambda i: (0, 0))

    out = pl.pallas_call(
        critic_kernel,
        out_shape=jax.ShapeDtypeStruct((1, Bp), jnp.float32),
        grid_spec=pltpu.PrefetchScalarGridSpec(
            num_scalar_prefetch=0,
            grid=(n_blocks,),
            in_specs=[
                pl.BlockSpec((bm, k_pad), lambda i: (i, 0)),   # packed input bf16
                full_spec(p["w1"]),         # W1p  [k_pad, 1024]     bf16
                full_spec(p["b1"]),         # b1   [1, 1024]         f32
                full_spec(p["w2a"]),        # W2a  [1024, 512]       bf16
                full_spec(p["w2b"]),        # W2bp [k_pad, 512]      bf16
                full_spec(p["b2"]),         # b2   [1, 512]          f32
                full_spec(p["w3"]),         # W3   [512, H3_PAD]     bf16
                full_spec(p["b3"]),         # b3   [1, H3_PAD]       f32
                full_spec(p["w4"]),         # W4   [1, H3_PAD]       f32 (row)
                full_spec(p["b4"]),         # b4   [1, 1]            f32
            ],
            out_specs=pl.BlockSpec((1, bm), lambda i: (0, i)),   # lane-dense
        ),
        compiler_params=pltpu.CompilerParams(
            dimension_semantics=("parallel",)),
    )(x, p["w1"], p["b1"], p["w2a"], p["w2b"], p["b2"],
      p["w3"], p["b3"], p["w4"], p["b4"])

    return out.reshape(Bp, 1)[:B]


def init_params(key, obs_dim, act_dim):
    """PyTorch nn.Linear default init (U[-1/sqrt(fan_in), 1/sqrt(fan_in)]).
    Weights stored transposed: [in_features, out_features], f32."""
    def linear(k, fan_in, fan_out):
        kw, kb = jax.random.split(k)
        bound = 1.0 / jnp.sqrt(fan_in)
        w = jax.random.uniform(kw, (fan_in, fan_out), jnp.float32, -bound, bound)
        b = jax.random.uniform(kb, (1, fan_out), jnp.float32, -bound, bound)
        return w, b

    k1, k2, k3, k4 = jax.random.split(key, 4)
    w1, b1 = linear(k1, obs_dim, H1)
    w2, b2 = linear(k2, H1 + act_dim, H2)
    w3, b3 = linear(k3, H2, H3)
    w4, b4 = linear(k4, H3, 1)
    return dict(w1=w1, b1=b1, w2=w2, b2=b2, w3=w3, b3=b3, w4=w4, b4=b4)


def prepare_params(params):
    """Cast matmul weights to bf16, split W2, pack/pad W1 and W2b to the
    128-lane packed-input layout, zero-pad the 300-wide layer to H3_PAD, and
    lay W4 out as an f32 [1, H3_PAD] row for the A @ B^T final layer."""
    w1, w2 = params["w1"], params["w2"]
    obs_dim = w1.shape[0]
    act_dim = w2.shape[0] - H1
    in_dim = obs_dim + act_dim
    k_pad = max(128, ((in_dim + 127) // 128) * 128)
    pad3 = H3_PAD - H3

    # W1 padded to [k_pad, 1024]: obs rows real, acts/pad rows zero.
    w1p = jnp.zeros((k_pad, H1), jnp.float32).at[:obs_dim].set(w1)
    # acts-half of W2 padded to [k_pad, 512]: rows obs_dim:in_dim real, rest 0.
    w2bp = jnp.zeros((k_pad, H2), jnp.float32).at[obs_dim:in_dim].set(w2[H1:])

    return dict(
        w1=w1p.astype(jnp.bfloat16),
        b1=params["b1"],
        w2a=w2[:H1].astype(jnp.bfloat16),
        w2b=w2bp.astype(jnp.bfloat16),
        b2=params["b2"],
        w3=jnp.pad(params["w3"], ((0, 0), (0, pad3))).astype(jnp.bfloat16),
        b3=jnp.pad(params["b3"], ((0, 0), (0, pad3))),
        w4=jnp.pad(params["w4"], ((0, pad3), (0, 0))).reshape(1, H3_PAD),  # f32
        b4=params["b4"],
    )


def critic_reference(obs, acts, params):
    h1 = jax.nn.relu(obs @ params["w1"] + params["b1"])
    h2 = jax.nn.relu(jnp.concatenate([h1, acts], axis=1) @ params["w2"] + params["b2"])
    h3 = jax.nn.relu(h2 @ params["w3"] + params["b3"])
    return h3 @ params["w4"] + params["b4"]


if __name__ == "__main__":
    # Critic-consistent shapes: n_agent=3, dim_observation=32, dim_action=5.
    n_agent, dim_observation, dim_action = 3, 32, 5
    obs_dim = dim_observation
    act_dim = dim_action * n_agent
    batch = 256   # -> 2 parallel grid steps of 128 rows each

    key = jax.random.PRNGKey(0)
    k_obs, k_acts, k_params = jax.random.split(key, 3)

    obs = jax.random.normal(k_obs, (batch, obs_dim), jnp.float32)
    acts = jax.random.normal(k_acts, (batch, act_dim), jnp.float32)

    params = init_params(k_params, obs_dim, act_dim)
    prepared = prepare_params(params)

    out = critic_forward(obs, acts, prepared)
    out = jax.block_until_ready(out)

    ref = critic_reference(obs, acts, params)
    assert out.shape == (batch, 1), out.shape
    # bf16 matmul operands (f32 accumulation) => loosened tolerance.
    max_err = float(jnp.max(jnp.abs(out - ref)))
    assert jnp.allclose(out, ref, atol=3e-2, rtol=3e-2), ("max_err", max_err)

    print("KERNEL_OK")
</pallas_src>

<mosaic_0001>
module attributes {stable_mosaic.version = 11 : i64} {
  func.func @critic_kernel(%arg0: i32, %arg1: memref<128x128xbf16, #tpu.memory_space<vmem>>, %arg2: memref<128x1024xbf16, #tpu.memory_space<vmem>>, %arg3: memref<1x1024xf32, #tpu.memory_space<vmem>>, %arg4: memref<1024x512xbf16, #tpu.memory_space<vmem>>, %arg5: memref<128x512xbf16, #tpu.memory_space<vmem>>, %arg6: memref<1x512xf32, #tpu.memory_space<vmem>>, %arg7: memref<512x384xbf16, #tpu.memory_space<vmem>>, %arg8: memref<1x384xf32, #tpu.memory_space<vmem>>, %arg9: memref<1x384xf32, #tpu.memory_space<vmem>>, %arg10: memref<1x1xf32, #tpu.memory_space<vmem>>, %arg11: memref<1x128xf32, #tpu.memory_space<vmem>>) attributes {dimension_semantics = [#tpu.dimension_semantics<parallel>], iteration_bounds = array<i64: 2>, scalar_prefetch = 0 : i64, scratch_operands = 0 : i64, tpu.core_type = #tpu.core_type<tc>, window_params = [{transform_indices = @transform_0, window_bounds = array<i64: 128, 128>}, {pipeline_mode = #tpu.pipeline_mode<synchronous>, transform_indices = @transform_1, window_bounds = array<i64: 128, 1024>}, {pipeline_mode = #tpu.pipeline_mode<synchronous>, transform_indices = @transform_2, window_bounds = array<i64: 1, 1024>}, {pipeline_mode = #tpu.pipeline_mode<synchronous>, transform_indices = @transform_3, window_bounds = array<i64: 1024, 512>}, {pipeline_mode = #tpu.pipeline_mode<synchronous>, transform_indices = @transform_4, window_bounds = array<i64: 128, 512>}, {pipeline_mode = #tpu.pipeline_mode<synchronous>, transform_indices = @transform_5, window_bounds = array<i64: 1, 512>}, {pipeline_mode = #tpu.pipeline_mode<synchronous>, transform_indices = @transform_6, window_bounds = array<i64: 512, 384>}, {pipeline_mode = #tpu.pipeline_mode<synchronous>, transform_indices = @transform_7, window_bounds = array<i64: 1, 384>}, {pipeline_mode = #tpu.pipeline_mode<synchronous>, transform_indices = @transform_8, window_bounds = array<i64: 1, 384>}, {pipeline_mode = #tpu.pipeline_mode<synchronous>, transform_indices = @transform_9, window_bounds = array<i64: 1, 1>}, {transform_indices = @transform_10, window_bounds = array<i64: 1, 128>}]} {
    %c0 = arith.constant 0 : index
    %c0_0 = arith.constant 0 : index
    %0 = vector.load %arg1[%c0, %c0_0] : memref<128x128xbf16, #tpu.memory_space<vmem>>, vector<128x128xbf16>
    %c0_1 = arith.constant 0 : index
    %c0_2 = arith.constant 0 : index
    %1 = vector.load %arg2[%c0_1, %c0_2] : memref<128x1024xbf16, #tpu.memory_space<vmem>>, vector<128x1024xbf16>
    %cst = arith.constant dense<0.000000e+00> : vector<128x1024xf32>
    %2 = tpu.matmul %0, %1, %cst {dimension_numbers = #tpu.dot_dimension_numbers<[1], [0], [0], [1], [0, 0, 1, 1], [], []>} : vector<128x128xbf16>, vector<128x1024xbf16>, vector<128x1024xf32> -> vector<128x1024xf32>
    %c0_3 = arith.constant 0 : index
    %c0_4 = arith.constant 0 : index
    %3 = vector.load %arg3[%c0_3, %c0_4] : memref<1x1024xf32, #tpu.memory_space<vmem>>, vector<1x1024xf32>
    %4 = vector.broadcast %3 : vector<1x1024xf32> to vector<128x1024xf32>
    %5 = arith.addf %2, %4 : vector<128x1024xf32>
    %cst_5 = arith.constant 0.000000e+00 : f32
    %6 = vector.broadcast %cst_5 : f32 to vector<128x1024xf32>
    %7 = arith.maximumf %5, %6 : vector<128x1024xf32>
    %8 = arith.truncf %7 : vector<128x1024xf32> to vector<128x1024xbf16>
    %c0_6 = arith.constant 0 : index
    %c0_7 = arith.constant 0 : index
    %9 = vector.load %arg4[%c0_6, %c0_7] : memref<1024x512xbf16, #tpu.memory_space<vmem>>, vector<1024x512xbf16>
    %cst_8 = arith.constant dense<0.000000e+00> : vector<128x512xf32>
    %10 = tpu.matmul %8, %9, %cst_8 {dimension_numbers = #tpu.dot_dimension_numbers<[1], [0], [0], [1], [0, 0, 1, 1], [], []>} : vector<128x1024xbf16>, vector<1024x512xbf16>, vector<128x512xf32> -> vector<128x512xf32>
    %c0_9 = arith.constant 0 : index
    %c0_10 = arith.constant 0 : index
    %11 = vector.load %arg5[%c0_9, %c0_10] : memref<128x512xbf16, #tpu.memory_space<vmem>>, vector<128x512xbf16>
    %cst_11 = arith.constant dense<0.000000e+00> : vector<128x512xf32>
    %12 = tpu.matmul %0, %11, %cst_11 {dimension_numbers = #tpu.dot_dimension_numbers<[1], [0], [0], [1], [0, 0, 1, 1], [], []>} : vector<128x128xbf16>, vector<128x512xbf16>, vector<128x512xf32> -> vector<128x512xf32>
    %13 = arith.addf %10, %12 : vector<128x512xf32>
    %c0_12 = arith.constant 0 : index
    %c0_13 = arith.constant 0 : index
    %14 = vector.load %arg6[%c0_12, %c0_13] : memref<1x512xf32, #tpu.memory_space<vmem>>, vector<1x512xf32>
    %15 = vector.broadcast %14 : vector<1x512xf32> to vector<128x512xf32>
    %16 = arith.addf %13, %15 : vector<128x512xf32>
    %cst_14 = arith.constant 0.000000e+00 : f32
    %17 = vector.broadcast %cst_14 : f32 to vector<128x512xf32>
    %18 = arith.maximumf %16, %17 : vector<128x512xf32>
    %19 = arith.truncf %18 : vector<128x512xf32> to vector<128x512xbf16>
    %c0_15 = arith.constant 0 : index
    %c0_16 = arith.constant 0 : index
    %20 = vector.load %arg7[%c0_15, %c0_16] : memref<512x384xbf16, #tpu.memory_space<vmem>>, vector<512x384xbf16>
    %cst_17 = arith.constant dense<0.000000e+00> : vector<128x384xf32>
    %21 = tpu.matmul %19, %20, %cst_17 {dimension_numbers = #tpu.dot_dimension_numbers<[1], [0], [0], [1], [0, 0, 1, 1], [], []>} : vector<128x512xbf16>, vector<512x384xbf16>, vector<128x384xf32> -> vector<128x384xf32>
    %c0_18 = arith.constant 0 : index
    %c0_19 = arith.constant 0 : index
    %22 = vector.load %arg8[%c0_18, %c0_19] : memref<1x384xf32, #tpu.memory_space<vmem>>, vector<1x384xf32>
    %23 = vector.broadcast %22 : vector<1x384xf32> to vector<128x384xf32>
    %24 = arith.addf %21, %23 : vector<128x384xf32>
    %cst_20 = arith.constant 0.000000e+00 : f32
    %25 = vector.broadcast %cst_20 : f32 to vector<128x384xf32>
    %26 = arith.maximumf %24, %25 : vector<128x384xf32>
    %c0_21 = arith.constant 0 : index
    %c0_22 = arith.constant 0 : index
    %27 = vector.load %arg9[%c0_21, %c0_22] : memref<1x384xf32, #tpu.memory_space<vmem>>, vector<1x384xf32>
    %cst_23 = arith.constant dense<0.000000e+00> : vector<1x128xf32>
    %28 = tpu.matmul %27, %26, %cst_23 {dimension_numbers = #tpu.dot_dimension_numbers<[1], [1], [0], [0], [0, 0, 1, 0], [], []>} : vector<1x384xf32>, vector<128x384xf32>, vector<1x128xf32> -> vector<1x128xf32>
    %c0_24 = arith.constant 0 : index
    %c0_25 = arith.constant 0 : index
    %29 = vector.load %arg10[%c0_24, %c0_25] : memref<1x1xf32, #tpu.memory_space<vmem>>, vector<1x1xf32>
    %30 = vector.broadcast %29 : vector<1x1xf32> to vector<1x128xf32>
    %31 = arith.addf %28, %30 : vector<1x128xf32>
    %c0_26 = arith.constant 0 : index
    %c0_27 = arith.constant 0 : index
    %32 = vector.load %arg11[%c0_26, %c0_27] : memref<1x128xf32, #tpu.memory_space<vmem>>, vector<1x128xf32>
    tpu.vector_store %arg11[%c0_26, %c0_27], %31 {strides = array<i32>} : memref<1x128xf32, #tpu.memory_space<vmem>>, vector<1x128xf32>,
    return
  }
  func.func @transform_0(%arg0: i32) -> (i32, i32) {
    %c0_i32 = arith.constant 0 : i32
    %c0_i32_0 = arith.constant 0 : i32
    return %arg0, %c0_i32 : i32, i32
  }
  func.func @transform_1(%arg0: i32) -> (i32, i32) {
    %c0_i32 = arith.constant 0 : i32
    %c0_i32_0 = arith.constant 0 : i32
    %c0_i32_1 = arith.constant 0 : i32
    return %c0_i32, %c0_i32_0 : i32, i32
  }
  func.func @transform_2(%arg0: i32) -> (i32, i32) {
    %c0_i32 = arith.constant 0 : i32
    %c0_i32_0 = arith.constant 0 : i32
    %c0_i32_1 = arith.constant 0 : i32
    return %c0_i32, %c0_i32_0 : i32, i32
  }
  func.func @transform_3(%arg0: i32) -> (i32, i32) {
    %c0_i32 = arith.constant 0 : i32
    %c0_i32_0 = arith.constant 0 : i32
    %c0_i32_1 = arith.constant 0 : i32
    return %c0_i32, %c0_i32_0 : i32, i32
  }
  func.func @transform_4(%arg0: i32) -> (i32, i32) {
    %c0_i32 = arith.constant 0 : i32
    %c0_i32_0 = arith.constant 0 : i32
    %c0_i32_1 = arith.constant 0 : i32
    return %c0_i32, %c0_i32_0 : i32, i32
  }
  func.func @transform_5(%arg0: i32) -> (i32, i32) {
    %c0_i32 = arith.constant 0 : i32
    %c0_i32_0 = arith.constant 0 : i32
    %c0_i32_1 = arith.constant 0 : i32
    return %c0_i32, %c0_i32_0 : i32, i32
  }
  func.func @transform_6(%arg0: i32) -> (i32, i32) {
    %c0_i32 = arith.constant 0 : i32
    %c0_i32_0 = arith.constant 0 : i32
    %c0_i32_1 = arith.constant 0 : i32
    return %c0_i32, %c0_i32_0 : i32, i32
  }
  func.func @transform_7(%arg0: i32) -> (i32, i32) {
    %c0_i32 = arith.constant 0 : i32
    %c0_i32_0 = arith.constant 0 : i32
    %c0_i32_1 = arith.constant 0 : i32
    return %c0_i32, %c0_i32_0 : i32, i32
  }
  func.func @transform_8(%arg0: i32) -> (i32, i32) {
    %c0_i32 = arith.constant 0 : i32
    %c0_i32_0 = arith.constant 0 : i32
    %c0_i32_1 = arith.constant 0 : i32
    return %c0_i32, %c0_i32_0 : i32, i32
  }
  func.func @transform_9(%arg0: i32) -> (i32, i32) {
    %c0_i32 = arith.constant 0 : i32
    %c0_i32_0 = arith.constant 0 : i32
    %c0_i32_1 = arith.constant 0 : i32
    return %c0_i32, %c0_i32_0 : i32, i32
  }
  func.func @transform_10(%arg0: i32) -> (i32, i32) {
    %c0_i32 = arith.constant 0 : i32
    %c0_i32_0 = arith.constant 0 : i32
    return %c0_i32, %arg0 : i32, i32
  }
}

</mosaic_0001>

<llo_original>
// kernel: tpu_custom_call.1
$region0: #{tpu_custom_call.1}
  #allocation0 [shape = 'u32[]', space=smem, size = 0x4, offset = 0x4, fixed_abs, tag = 'smem constant byte address 0x4 - core index']
  #allocation1 [shape = 'u32[144,128]{1,0:T(1,128)}', space=vmem, size = 0x12000, scoped, tag = 'internal scratch']
  #allocation2 [shape = 'f32[1,1]{1,0:T(1,128)S(1)}', space=vmem, size = 0x200, scoped, tag = 'scoped memory for tpu_custom_call.1']
  %s0 = inlined_call_operand.hbm [shape: bf16[256,128], index: 0, kind: input, shape index: {}]
  %s1 = inlined_call_operand.hbm [shape: bf16[128,1024], index: 1, kind: input, shape index: {}]
  %s2 = inlined_call_operand.vmem [shape: f32[1,1024], index: 2, kind: input, shape index: {}]
  %s3 = inlined_call_operand.hbm [shape: bf16[1024,512], index: 3, kind: input, shape index: {}]
  %s4 = inlined_call_operand.hbm [shape: bf16[128,512], index: 4, kind: input, shape index: {}]
  %s5 = inlined_call_operand.vmem [shape: f32[1,512], index: 5, kind: input, shape index: {}]
  %s6 = inlined_call_operand.hbm [shape: bf16[512,384], index: 6, kind: input, shape index: {}]
  %s7 = inlined_call_operand.vmem [shape: f32[1,384], index: 7, kind: input, shape index: {}]
  %s8 = inlined_call_operand.vmem [shape: f32[1,384], index: 8, kind: input, shape index: {}]
  %s9 = inlined_call_operand.<no memory space> [shape: f32[1,1], index: 9, kind: input, shape index: {}]
  %s10 = inlined_call_operand.hbm [shape: f32[1,256], index: 10, kind: output, shape index: {}]
  %s11 = sld [smem:[#allocation0]]
  $region93: #{tpu_custom_call.1} parent=0
    _
  %s13 = ssub.s32 1, %s11
  %s14 = scalar_select 0, %s13, %s11
  %v15 = vstv %s9
  %16 = vst [vmem:[#allocation2] sm:$0x1] %v15
  $region1: #{tpu_custom_call.1} parent=0
    #allocation3 [shape = 'u8[65536]{0}', space=vmem, size = 0x10000, scoped, tag = 'input window, operand 0']
    #allocation4 [shape = 's32[2]{0}', space=sflag, size = 0x8, scoped, tag = 'scoped memory for tpu_custom_call.1']
    #allocation5 [shape = 's32[2]{0}', space=sflag, size = 0x8, scoped, tag = 'scoped memory for tpu_custom_call.1']
    #allocation6 [shape = 'u8[262144]{0}', space=vmem, size = 0x40000, scoped, tag = 'input window, operand 1, single buffered']
    #allocation7 [shape = 's32[1]{0}', space=sflag, size = 0x4, scoped, tag = 'scoped memory for tpu_custom_call.1']
    #allocation8 [shape = 'u8[1048576]{0}', space=vmem, size = 0x100000, scoped, tag = 'input window, operand 3, single buffered']
    #allocation9 [shape = 'u8[131072]{0}', space=vmem, size = 0x20000, scoped, tag = 'input window, operand 4, single buffered']
    #allocation10 [shape = 's32[1]{0}', space=sflag, size = 0x4, scoped, tag = 'scoped memory for tpu_custom_call.1']
    #allocation11 [shape = 'u8[393216]{0}', space=vmem, size = 0x60000, scoped, tag = 'input window, operand 6, single buffered']
    #allocation12 [shape = 'u8[1024]{0}', space=vmem, size = 0x400, scoped, tag = 'output window, operand 0']
    %17 = vsyncpa [#allocation4], 0
    %s18 = scalar_lea.sflag [#allocation4], 1
    %19 = vsyncpa %s18, 0
    %20 = vsyncpa [#allocation7], 0
    %21 = vsyncpa [#allocation10], 0
    %22 = vsyncpa [#allocation5], 0
    %s23 = scalar_lea.sflag [#allocation5], 1
    %24 = vsyncpa %s23, 0
    loop: start=0, step=1, limit=4
    $region2: #{tpu_custom_call.1} parent=1 // loop_pre_header
      _
    $region3: #{tpu_custom_call.1} parent=1 // loop_header
      %s26 = sphi 0, %s30
      %p27 = scmp.ge.s32.totalorder %s26, 4
      %s36 = sphi 0, %s38
      %s39 = sphi 0, %s36
      %s40 = sphi 0, %s39
      %s56 = sphi 0, %s40
      %s60 = sphi 0, %s60
      %s62 = sphi 0, %s60
      %s63 = sphi 0, %s62
      %s77 = sphi 0, %s63
      %s81 = sphi 0, %s81
      %s83 = sphi 0, %s81
      %s84 = sphi 0, %s83
      %s98 = sphi 0, %s84
      %s102 = sphi 0, %s102
      %s104 = sphi 0, %s102
      %s105 = sphi 0, %s104
      %s119 = sphi 0, %s105
      %s123 = sphi 0, %s123
      %s125 = sphi 0, %s123
      %s126 = sphi 0, %s125
      %s140 = sphi 0, %s126
      %s144 = sphi 0, %s144
      %s146 = sphi 0, %s144
      %s147 = sphi 0, %s146
      %s161 = sphi 0, %s147
      %s165 = sphi 0, %s165
      %s167 = sphi 0, %s165
      %s168 = sphi 0, %s167
      %s182 = sphi 0, %s168
      %s186 = sphi 0, %s186
      %s188 = sphi 0, %s186
      %s189 = sphi 0, %s188
      %s203 = sphi 0, %s189
      %s207 = sphi 0, %s207
      %s209 = sphi 0, %s207
      %s210 = sphi 0, %s209
      %s224 = sphi 0, %s210
      %s228 = sphi 0, %s228
      %s230 = sphi 0, %s228
      %s231 = sphi 0, %s230
      %s245 = sphi 0, %s231
      %s251 = sphi 0, %s253
      %s254 = sphi 0, %s251
      %s255 = sphi 0, %s254
      %s271 = sphi 0, %s255
    $region4: #{tpu_custom_call.1} parent=1 // loop_header_branch
      %29 = sbr.rel (%p27) target = $region8
    $region5: #{tpu_custom_call.1} parent=1 // loop_body
      %s31 = ssub.s32 %s26, 1
      %s32 = ssub.s32 %s26, 2
      %s33 = sadd.s32 %s26, 1
      %s34 = ssub.s32 %s26, %s33
      %p35 = scmp.eq.s32.totalorder %s34, 0
      %s37 = sadd.s32 %s36, 1
      %s38 = scalar_select %p35, %s36, %s37
      %p41 = pneg %p35
      %p42 = scmp.eq.s32.totalorder %s26, 1
      %p43 = por %p41, %p42
      %p44 = scmp.ne.s32.totalorder %s36, %s39
      %p45 = scmp.eq.s32.totalorder %s26, 0
      %p46 = por %p44, %p45
      %p47 = scmp.ne.s32.totalorder %s36, %s39
      %p48 = scmp.eq.s32.totalorder %s31, 1
      %p49 = por %p47, %p48
      %p50 = scmp.ne.s32.totalorder %s39, %s40
      %p51 = scmp.eq.s32.totalorder %s31, 0
      %p52 = por %p50, %p51
      %p53 = scmp.ne.s32.totalorder %s39, %s40
      %p54 = scmp.eq.s32.totalorder %s32, 1
      %p55 = por %p53, %p54
      %p57 = scmp.ne.s32.totalorder %s40, %s56
      %p58 = scmp.eq.s32.totalorder %s32, 0
      %p59 = por %p57, %p58
      %s61 = sadd.s32 %s60, 1
      %p64 = scmp.eq.s32.totalorder %s26, 1
      %p65 = scmp.ne.s32.totalorder %s60, %s62
      %p66 = scmp.eq.s32.totalorder %s26, 0
      %p67 = por %p65, %p66
      %p68 = scmp.ne.s32.totalorder %s60, %s62
      %p69 = scmp.eq.s32.totalorder %s31, 1
      %p70 = por %p68, %p69
      %p71 = scmp.ne.s32.totalorder %s62, %s63
      %p72 = scmp.eq.s32.totalorder %s31, 0
      %p73 = por %p71, %p72
      %p74 = scmp.ne.s32.totalorder %s62, %s63
      %p75 = scmp.eq.s32.totalorder %s32, 1
      %p76 = por %p74, %p75
      %p78 = scmp.ne.s32.totalorder %s63, %s77
      %p79 = scmp.eq.s32.totalorder %s32, 0
      %p80 = por %p78, %p79
      %s82 = sadd.s32 %s81, 1
      %p85 = scmp.eq.s32.totalorder %s26, 1
      %p86 = scmp.ne.s32.totalorder %s81, %s83
      %p87 = scmp.eq.s32.totalorder %s26, 0
      %p88 = por %p86, %p87
      %p89 = scmp.ne.s32.totalorder %s81, %s83
      %p90 = scmp.eq.s32.totalorder %s31, 1
      %p91 = por %p89, %p90
      %p92 = scmp.ne.s32.totalorder %s83, %s84
      %p93 = scmp.eq.s32.totalorder %s31, 0
      %p94 = por %p92, %p93
      %p95 = scmp.ne.s32.totalorder %s83, %s84
      %p96 = scmp.eq.s32.totalorder %s32, 1
      %p97 = por %p95, %p96
      %p99 = scmp.ne.s32.totalorder %s84, %s98
      %p100 = scmp.eq.s32.totalorder %s32, 0
      %p101 = por %p99, %p100
      %s103 = sadd.s32 %s102, 1
      %p106 = scmp.eq.s32.totalorder %s26, 1
      %p107 = scmp.ne.s32.totalorder %s102, %s104
      %p108 = scmp.eq.s32.totalorder %s26, 0
      %p109 = por %p107, %p108
      %p110 = scmp.ne.s32.totalorder %s102, %s104
      %p111 = scmp.eq.s32.totalorder %s31, 1
      %p112 = por %p110, %p111
      %p113 = scmp.ne.s32.totalorder %s104, %s105
      %p114 = scmp.eq.s32.totalorder %s31, 0
      %p115 = por %p113, %p114
      %p116 = scmp.ne.s32.totalorder %s104, %s105
      %p117 = scmp.eq.s32.totalorder %s32, 1
      %p118 = por %p116, %p117
      %p120 = scmp.ne.s32.totalorder %s105, %s119
      %p121 = scmp.eq.s32.totalorder %s32, 0
      %p122 = por %p120, %p121
      %s124 = sadd.s32 %s123, 1
      %p127 = scmp.eq.s32.totalorder %s26, 1
      %p128 = scmp.ne.s32.totalorder %s123, %s125
      %p129 = scmp.eq.s32.totalorder %s26, 0
      %p130 = por %p128, %p129
      %p131 = scmp.ne.s32.totalorder %s123, %s125
      %p132 = scmp.eq.s32.totalorder %s31, 1
      %p133 = por %p131, %p132
      %p134 = scmp.ne.s32.totalorder %s125, %s126
      %p135 = scmp.eq.s32.totalorder %s31, 0
      %p136 = por %p134, %p135
      %p137 = scmp.ne.s32.totalorder %s125, %s126
      %p138 = scmp.eq.s32.totalorder %s32, 1
      %p139 = por %p137, %p138
      %p141 = scmp.ne.s32.totalorder %s126, %s140
      %p142 = scmp.eq.s32.totalorder %s32, 0
      %p143 = por %p141, %p142
      %s145 = sadd.s32 %s144, 1
      %p148 = scmp.eq.s32.totalorder %s26, 1
      %p149 = scmp.ne.s32.totalorder %s144, %s146
      %p150 = scmp.eq.s32.totalorder %s26, 0
      %p151 = por %p149, %p150
      %p152 = scmp.ne.s32.totalorder %s144, %s146
      %p153 = scmp.eq.s32.totalorder %s31, 1
      %p154 = por %p152, %p153
      %p155 = scmp.ne.s32.totalorder %s146, %s147
      %p156 = scmp.eq.s32.totalorder %s31, 0
      %p157 = por %p155, %p156
      %p158 = scmp.ne.s32.totalorder %s146, %s147
      %p159 = scmp.eq.s32.totalorder %s32, 1
      %p160 = por %p158, %p159
      %p162 = scmp.ne.s32.totalorder %s147, %s161
      %p163 = scmp.eq.s32.totalorder %s32, 0
      %p164 = por %p162, %p163
      %s166 = sadd.s32 %s165, 1
      %p169 = scmp.eq.s32.totalorder %s26, 1
      %p170 = scmp.ne.s32.totalorder %s165, %s167
      %p171 = scmp.eq.s32.totalorder %s26, 0
      %p172 = por %p170, %p171
      %p173 = scmp.ne.s32.totalorder %s165, %s167
      %p174 = scmp.eq.s32.totalorder %s31, 1
      %p175 = por %p173, %p174
      %p176 = scmp.ne.s32.totalorder %s167, %s168
      %p177 = scmp.eq.s32.totalorder %s31, 0
      %p178 = por %p176, %p177
      %p179 = scmp.ne.s32.totalorder %s167, %s168
      %p180 = scmp.eq.s32.totalorder %s32, 1
      %p181 = por %p179, %p180
      %p183 = scmp.ne.s32.totalorder %s168, %s182
      %p184 = scmp.eq.s32.totalorder %s32, 0
      %p185 = por %p183, %p184
      %s187 = sadd.s32 %s186, 1
      %p190 = scmp.eq.s32.totalorder %s26, 1
      %p191 = scmp.ne.s32.totalorder %s186, %s188
      %p192 = scmp.eq.s32.totalorder %s26, 0
      %p193 = por %p191, %p192
      %p194 = scmp.ne.s32.totalorder %s186, %s188
      %p195 = scmp.eq.s32.totalorder %s31, 1
      %p196 = por %p194, %p195
      %p197 = scmp.ne.s32.totalorder %s188, %s189
      %p198 = scmp.eq.s32.totalorder %s31, 0
      %p199 = por %p197, %p198
      %p200 = scmp.ne.s32.totalorder %s188, %s189
      %p201 = scmp.eq.s32.totalorder %s32, 1
      %p202 = por %p200, %p201
      %p204 = scmp.ne.s32.totalorder %s189, %s203
      %p205 = scmp.eq.s32.totalorder %s32, 0
      %p206 = por %p204, %p205
      %s208 = sadd.s32 %s207, 1
      %p211 = scmp.eq.s32.totalorder %s26, 1
      %p212 = scmp.ne.s32.totalorder %s207, %s209
      %p213 = scmp.eq.s32.totalorder %s26, 0
      %p214 = por %p212, %p213
      %p215 = scmp.ne.s32.totalorder %s207, %s209
      %p216 = scmp.eq.s32.totalorder %s31, 1
      %p217 = por %p215, %p216
      %p218 = scmp.ne.s32.totalorder %s209, %s210
      %p219 = scmp.eq.s32.totalorder %s31, 0
      %p220 = por %p218, %p219
      %p221 = scmp.ne.s32.totalorder %s209, %s210
      %p222 = scmp.eq.s32.totalorder %s32, 1
      %p223 = por %p221, %p222
      %p225 = scmp.ne.s32.totalorder %s210, %s224
      %p226 = scmp.eq.s32.totalorder %s32, 0
      %p227 = por %p225, %p226
      %s229 = sadd.s32 %s228, 1
      %p232 = scmp.eq.s32.totalorder %s26, 1
      %p233 = scmp.ne.s32.totalorder %s228, %s230
      %p234 = scmp.eq.s32.totalorder %s26, 0
      %p235 = por %p233, %p234
      %p236 = scmp.ne.s32.totalorder %s228, %s230
      %p237 = scmp.eq.s32.totalorder %s31, 1
      %p238 = por %p236, %p237
      %p239 = scmp.ne.s32.totalorder %s230, %s231
      %p240 = scmp.eq.s32.totalorder %s31, 0
      %p241 = por %p239, %p240
      %p242 = scmp.ne.s32.totalorder %s230, %s231
      %p243 = scmp.eq.s32.totalorder %s32, 1
      %p244 = por %p242, %p243
      %p246 = scmp.ne.s32.totalorder %s231, %s245
      %p247 = scmp.eq.s32.totalorder %s32, 0
      %p248 = por %p246, %p247
      %s249 = ssub.s32 %s26, %s33
      %p250 = scmp.eq.s32.totalorder %s249, 0
      %s252 = sadd.s32 %s251, 1
      %s253 = scalar_select %p250, %s251, %s252
      %p256 = pneg %p250
      %p257 = scmp.eq.s32.totalorder %s26, 1
      %p258 = por %p256, %p257
      %p259 = scmp.ne.s32.totalorder %s251, %s254
      %p260 = scmp.eq.s32.totalorder %s26, 0
      %p261 = por %p259, %p260
      %p262 = scmp.ne.s32.totalorder %s251, %s254
      %p263 = scmp.eq.s32.totalorder %s31, 1
      %p264 = por %p262, %p263
      %p265 = scmp.ne.s32.totalorder %s254, %s255
      %p266 = scmp.eq.s32.totalorder %s31, 0
      %p267 = por %p265, %p266
      %p268 = scmp.ne.s32.totalorder %s254, %s255
      %p269 = scmp.eq.s32.totalorder %s32, 1
      %p270 = por %p268, %p269
      %p272 = scmp.ne.s32.totalorder %s255, %s271
      %p273 = scmp.eq.s32.totalorder %s32, 0
      %p274 = por %p272, %p273
      %p275 = scmp.le.s32.totalorder 1, %s26
      %p276 = scmp.lt.s32.totalorder %s26, 3
      %p277 = pnand %p275, %p276
      %p278 = pneg %p277
      // Predicated region
      $region9: #{tpu_custom_call.1} parent=5 // pred_check
        _
      $region10: #{tpu_custom_call.1} parent=5 // pred_check_branch
        %280 = sbr.rel (%p277) target = $region12
      $region11: #{tpu_custom_call.1} parent=5 // pred_region
        %s281 = ssub.s32 %s26, 1
        // Predicated region
        $region13: #{tpu_custom_call.1} parent=11 // pred_check
          %p282 = pneg %p73
        $region14: #{tpu_custom_call.1} parent=11 // pred_check_branch
          %284 = sbr.rel (%p282) target = $region16
        $region15: #{tpu_custom_call.1} parent=11 // pred_region
          %s286 = ssub.s32 8192, 8192
          %287 = vsyncadd [#allocation7], %s286
          %s288 = sshll.u32 [#allocation6], 4
          %s289 = int_to_ptr.vmem [resolvable:$true] %s288
          %294 = dma.hbm_to_vmem [thread:$0]  %s1, 8192, %s289, [#allocation7], 512, 512, 32
        $region16: #{tpu_custom_call.1} parent=11 // pred_fallthru
          _
        // Predicated region
        $region17: #{tpu_custom_call.1} parent=11 // pred_check
          %p295 = pneg %p94
        $region18: #{tpu_custom_call.1} parent=11 // pred_check_branch
          %297 = sbr.rel (%p295) target = $region20
        $region19: #{tpu_custom_call.1} parent=11 // pred_region
          _
        $region20: #{tpu_custom_call.1} parent=11 // pred_fallthru
          _
        // Predicated region
        $region21: #{tpu_custom_call.1} parent=11 // pred_check
          %p298 = pneg %p115
        $region22: #{tpu_custom_call.1} parent=11 // pred_check_branch
          %300 = sbr.rel (%p298) target = $region24
        $region23: #{tpu_custom_call.1} parent=11 // pred_region
          %s302 = ssub.s32 32768, 32768
          %303 = vsyncadd [#allocation7], %s302
          %s304 = sshll.u32 [#allocation8], 4
          %s305 = int_to_ptr.vmem [resolvable:$true] %s304
          %310 = dma.hbm_to_vmem [thread:$0]  %s3, 32768, %s305, [#allocation7], 256, 256, 16
        $region24: #{tpu_custom_call.1} parent=11 // pred_fallthru
          _
        // Predicated region
        $region25: #{tpu_custom_call.1} parent=11 // pred_check
          %p311 = pneg %p136
        $region26: #{tpu_custom_call.1} parent=11 // pred_check_branch
          %313 = sbr.rel (%p311) target = $region28
        $region27: #{tpu_custom_call.1} parent=11 // pred_region
          %s315 = ssub.s32 4096, 4096
          %316 = vsyncadd [#allocation10], %s315
          %s317 = sshll.u32 [#allocation9], 4
          %s318 = int_to_ptr.vmem [resolvable:$true] %s317
          %323 = dma.hbm_to_vmem [thread:$0]  %s4, 4096, %s318, [#allocation10], 256, 256, 16
        $region28: #{tpu_custom_call.1} parent=11 // pred_fallthru
          _
        // Predicated region
        $region29: #{tpu_custom_call.1} parent=11 // pred_check
          %p324 = pneg %p157
        $region30: #{tpu_custom_call.1} parent=11 // pred_check_branch
          %326 = sbr.rel (%p324) target = $region32
        $region31: #{tpu_custom_call.1} parent=11 // pred_region
          _
        $region32: #{tpu_custom_call.1} parent=11 // pred_fallthru
          _
        // Predicated region
        $region33: #{tpu_custom_call.1} parent=11 // pred_check
          %p327 = pneg %p178
        $region34: #{tpu_custom_call.1} parent=11 // pred_check_branch
          %329 = sbr.rel (%p327) target = $region36
        $region35: #{tpu_custom_call.1} parent=11 // pred_region
          %s331 = ssub.s32 12288, 12288
          %332 = vsyncadd [#allocation10], %s331
          %s333 = sshll.u32 [#allocation11], 4
          %s334 = int_to_ptr.vmem [resolvable:$true] %s333
          %339 = dma.hbm_to_vmem [thread:$0]  %s6, 12288, %s334, [#allocation10], 192, 192, 12
        $region36: #{tpu_custom_call.1} parent=11 // pred_fallthru
          _
        // Predicated region
        $region37: #{tpu_custom_call.1} parent=11 // pred_check
          %p340 = pneg %p199
        $region38: #{tpu_custom_call.1} parent=11 // pred_check_branch
          %342 = sbr.rel (%p340) target = $region40
        $region39: #{tpu_custom_call.1} parent=11 // pred_region
          _
        $region40: #{tpu_custom_call.1} parent=11 // pred_fallthru
          _
        // Predicated region
        $region41: #{tpu_custom_call.1} parent=11 // pred_check
          %p343 = pneg %p220
        $region42: #{tpu_custom_call.1} parent=11 // pred_check_branch
          %345 = sbr.rel (%p343) target = $region44
        $region43: #{tpu_custom_call.1} parent=11 // pred_region
          _
        $region44: #{tpu_custom_call.1} parent=11 // pred_fallthru
          _
        // Predicated region
        $region45: #{tpu_custom_call.1} parent=11 // pred_check
          %p346 = pneg %p241
        $region46: #{tpu_custom_call.1} parent=11 // pred_check_branch
          %348 = sbr.rel (%p346) target = $region48
        $region47: #{tpu_custom_call.1} parent=11 // pred_region
          _
        $region48: #{tpu_custom_call.1} parent=11 // pred_fallthru
          _
      $region12: #{tpu_custom_call.1} parent=5 // pred_fallthru
        _
      %p349 = scmp.lt.s32.totalorder %s26, 2
      // Predicated region
      $region49: #{tpu_custom_call.1} parent=5 // pred_check
        %p350 = pneg %p349
      $region50: #{tpu_custom_call.1} parent=5 // pred_check_branch
        %352 = sbr.rel (%p350) target = $region52
      $region51: #{tpu_custom_call.1} parent=5 // pred_region
        // Predicated region
        $region53: #{tpu_custom_call.1} parent=51 // pred_check
          %p353 = pneg %p46
        $region54: #{tpu_custom_call.1} parent=51 // pred_check_branch
          %355 = sbr.rel (%p353) target = $region56
        $region55: #{tpu_custom_call.1} parent=51 // pred_region
          %s356 = sand.u32 %s36, 1
          %s357 = scalar_lea.sflag [#allocation4], %s356
          %s358 = sand.u32 %s36, 1
          %s359 = smul.addr %s358, 64
          %s360 = scalar_lea.vmem [#allocation3], %s359
          %s361 = smul.u32 16, %s26
          %s363 = ssub.s32 1024, 1024
          %364 = vsyncadd %s357, %s363
          %s365 = smul.addr %s361, 64
          %s366 = scalar_lea.hbm %s0, %s365
          %s367 = sshll.u32 %s360, 4
          %s368 = int_to_ptr.vmem [resolvable:$true] %s367
          %373 = dma.hbm_to_vmem [thread:$0]  %s366, 1024, %s368, %s357, 64, 64, 4
        $region56: #{tpu_custom_call.1} parent=51 // pred_fallthru
          _
      $region52: #{tpu_custom_call.1} parent=5 // pred_fallthru
        _
      %p374 = scmp.le.s32.totalorder 1, %s26
      %p375 = scmp.lt.s32.totalorder %s26, 3
      %p376 = pnand %p374, %p375
      %p377 = pneg %p376
      // Predicated region
      $region57: #{tpu_custom_call.1} parent=5 // pred_check
        _
      $region58: #{tpu_custom_call.1} parent=5 // pred_check_branch
        %379 = sbr.rel (%p376) target = $region60
      $region59: #{tpu_custom_call.1} parent=5 // pred_region
        %s380 = ssub.s32 %s26, 1
        %s381 = sand.u32 %s39, 1
        %s382 = scalar_lea.sflag [#allocation4], %s381
        %s383 = sand.u32 %s39, 1
        %s384 = smul.addr %s383, 64
        %s385 = scalar_lea.vmem [#allocation3], %s384
        // Predicated region
        $region61: #{tpu_custom_call.1} parent=59 // pred_check
          %p386 = pneg %p52
        $region62: #{tpu_custom_call.1} parent=59 // pred_check_branch
          %388 = sbr.rel (%p386) target = $region64
        $region63: #{tpu_custom_call.1} parent=59 // pred_region
          %389 = dma.done %s382, 1024
        $region64: #{tpu_custom_call.1} parent=59 // pred_fallthru
          _
        // Predicated region
        $region65: #{tpu_custom_call.1} parent=59 // pred_check
          %p390 = pneg %p73
        $region66: #{tpu_custom_call.1} parent=59 // pred_check_branch
          %392 = sbr.rel (%p390) target = $region68
        $region67: #{tpu_custom_call.1} parent=59 // pred_region
          %393 = dma.done [#allocation7], 8192
        $region68: #{tpu_custom_call.1} parent=59 // pred_fallthru
          _
        // Predicated region
        $region69: #{tpu_custom_call.1} parent=59 // pred_check
          %p394 = pneg %p115
        $region70: #{tpu_custom_call.1} parent=59 // pred_check_branch
          %396 = sbr.rel (%p394) target = $region72
        $region71: #{tpu_custom_call.1} parent=59 // pred_region
          %397 = dma.done [#allocation7], 32768
        $region72: #{tpu_custom_call.1} parent=59 // pred_fallthru
          _
        // Predicated region
        $region73: #{tpu_custom_call.1} parent=59 // pred_check
          %p398 = pneg %p136
        $region74: #{tpu_custom_call.1} parent=59 // pred_check_branch
          %400 = sbr.rel (%p398) target = $region76
        $region75: #{tpu_custom_call.1} parent=59 // pred_region
          %401 = dma.done [#allocation10], 4096
        $region76: #{tpu_custom_call.1} parent=59 // pred_fallthru
          _
        // Predicated region
        $region77: #{tpu_custom_call.1} parent=59 // pred_check
          %p402 = pneg %p178
        $region78: #{tpu_custom_call.1} parent=59 // pred_check_branch
          %404 = sbr.rel (%p402) target = $region80
        $region79: #{tpu_custom_call.1} parent=59 // pred_region
          %405 = dma.done [#allocation10], 12288
        $region80: #{tpu_custom_call.1} parent=59 // pred_fallthru
          _
        %s406 = sand.u32 %s39, 1
        %s407 = scalar_lea.sflag [#allocation4], %s406
        %s408 = sand.u32 %s39, 1
        %s409 = smul.addr %s408, 64
        %s410 = scalar_lea.vmem [#allocation3], %s409
        %p411 = pneg %p52
        %p412 = pneg %p49
        %p413 = pneg %p73
        %p414 = pneg %p70
        %p415 = pneg %p94
        %p416 = pneg %p91
        %p417 = pneg %p115
        %p418 = pneg %p112
        %p419 = pneg %p136
        %p420 = pneg %p133
        %p421 = pneg %p157
        %p422 = pneg %p154
        %p423 = pneg %p178
        %p424 = pneg %p175
        %p425 = pneg %p199
        %p426 = pneg %p196
        %p427 = pneg %p220
        %p428 = pneg %p217
        %p429 = pneg %p241
        %p430 = pneg %p238
        %p431 = pneg %p267
        %p432 = pneg %p264
        %s433 = sand.u32 %s254, 1
        %s434 = scalar_lea.sflag [#allocation5], %s433
        %s435 = sand.u32 %s254, 1
        %s436 = scalar_lea.vmem [#allocation12], %s435
        %s437 = smul.u32 16, %s31
        %v439 = vld [vmem:[%s385] sm:$0xf]
        %v440 = vld [vmem:[%s385 + $0x4] sm:$0xf]
        %v441 = vld [vmem:[%s385 + $0x8] sm:$0xf]
        %v442 = vld [vmem:[%s385 + $0xc] sm:$0xf]
        %v443 = vld [vmem:[%s385 + $0x10] sm:$0xf]
        %v444 = vld [vmem:[%s385 + $0x14] sm:$0xf]
        %v445 = vld [vmem:[%s385 + $0x18] sm:$0xf]
        %v446 = vld [vmem:[%s385 + $0x1c] sm:$0xf]
        %v447 = vld [vmem:[%s385 + $0x20] sm:$0xf]
        %v448 = vld [vmem:[%s385 + $0x24] sm:$0xf]
        %v449 = vld [vmem:[%s385 + $0x28] sm:$0xf]
        %v450 = vld [vmem:[%s385 + $0x2c] sm:$0xf]
        %v451 = vld [vmem:[%s385 + $0x30] sm:$0xf]
        %v452 = vld [vmem:[%s385 + $0x34] sm:$0xf]
        %v453 = vld [vmem:[%s385 + $0x38] sm:$0xf]
        %v454 = vld [vmem:[%s385 + $0x3c] sm:$0xf]
        %v455 = vld [vmem:[#allocation6] sm:$0xff]
        %v456 = vld [vmem:[#allocation6 + $0x8] sm:$0xff]
        %v457 = vld [vmem:[#allocation6 + $0x10] sm:$0xff]
        %v458 = vld [vmem:[#allocation6 + $0x18] sm:$0xff]
        %v459 = vld [vmem:[#allocation6 + $0x20] sm:$0xff]
        %v460 = vld [vmem:[#allocation6 + $0x28] sm:$0xff]
        %v461 = vld [vmem:[#allocation6 + $0x30] sm:$0xff]
        %v462 = vld [vmem:[#allocation6 + $0x38] sm:$0xff]
        %v463 = vld [vmem:[#allocation6 + $0x40] sm:$0xff]
        %v464 = vld [vmem:[#allocation6 + $0x48] sm:$0xff]
        %v465 = vld [vmem:[#allocation6 + $0x50] sm:$0xff]
        %v466 = vld [vmem:[#allocation6 + $0x58] sm:$0xff]
        %v467 = vld [vmem:[#allocation6 + $0x60] sm:$0xff]
        %v468 = vld [vmem:[#allocation6 + $0x68] sm:$0xff]
        %v469 = vld [vmem:[#allocation6 + $0x70] sm:$0xff]
        %v470 = vld [vmem:[#allocation6 + $0x78] sm:$0xff]
        %v471 = vld [vmem:[#allocation6 + $0x80] sm:$0xff]
        %v472 = vld [vmem:[#allocation6 + $0x88] sm:$0xff]
        %v473 = vld [vmem:[#allocation6 + $0x90] sm:$0xff]
        %v474 = vld [vmem:[#allocation6 + $0x98] sm:$0xff]
        %v475 = vld [vmem:[#allocation6 + $0xa0] sm:$0xff]
        %v476 = vld [vmem:[#allocation6 + $0xa8] sm:$0xff]
        %v477 = vld [vmem:[#allocation6 + $0xb0] sm:$0xff]
        %v478 = vld [vmem:[#allocation6 + $0xb8] sm:$0xff]
        %v479 = vld [vmem:[#allocation6 + $0xc0] sm:$0xff]
        %v480 = vld [vmem:[#allocation6 + $0xc8] sm:$0xff]
        %v481 = vld [vmem:[#allocation6 + $0xd0] sm:$0xff]
        %v482 = vld [vmem:[#allocation6 + $0xd8] sm:$0xff]
        %v483 = vld [vmem:[#allocation6 + $0xe0] sm:$0xff]
        %v484 = vld [vmem:[#allocation6 + $0xe8] sm:$0xff]
        %v485 = vld [vmem:[#allocation6 + $0xf0] sm:$0xff]
        %v486 = vld [vmem:[#allocation6 + $0xf8] sm:$0xff]
        %v487 = vld [vmem:[#allocation6 + $0x100] sm:$0xff]
        %v488 = vld [vmem:[#allocation6 + $0x108] sm:$0xff]
        %v489 = vld [vmem:[#allocation6 + $0x110] sm:$0xff]
        %v490 = vld [vmem:[#allocation6 + $0x118] sm:$0xff]
        %v491 = vld [vmem:[#allocation6 + $0x120] sm:$0xff]
        %v492 = vld [vmem:[#allocation6 + $0x128] sm:$0xff]
        %v493 = vld [vmem:[#allocation6 + $0x130] sm:$0xff]
        %v494 = vld [vmem:[#allocation6 + $0x138] sm:$0xff]
        %v495 = vld [vmem:[#allocation6 + $0x140] sm:$0xff]
        %v496 = vld [vmem:[#allocation6 + $0x148] sm:$0xff]
        %v497 = vld [vmem:[#allocation6 + $0x150] sm:$0xff]
        %v498 = vld [vmem:[#allocation6 + $0x158] sm:$0xff]
        %v499 = vld [vmem:[#allocation6 + $0x160] sm:$0xff]
        %v500 = vld [vmem:[#allocation6 + $0x168] sm:$0xff]
        %v501 = vld [vmem:[#allocation6 + $0x170] sm:$0xff]
        %v502 = vld [vmem:[#allocation6 + $0x178] sm:$0xff]
        %v503 = vld [vmem:[#allocation6 + $0x180] sm:$0xff]
        %v504 = vld [vmem:[#allocation6 + $0x188] sm:$0xff]
        %v505 = vld [vmem:[#allocation6 + $0x190] sm:$0xff]
        %v506 = vld [vmem:[#allocation6 + $0x198] sm:$0xff]
        %v507 = vld [vmem:[#allocation6 + $0x1a0] sm:$0xff]
        %v508 = vld [vmem:[#allocation6 + $0x1a8] sm:$0xff]
        %v509 = vld [vmem:[#allocation6 + $0x1b0] sm:$0xff]
        %v510 = vld [vmem:[#allocation6 + $0x1b8] sm:$0xff]
        %v511 = vld [vmem:[#allocation6 + $0x1c0] sm:$0xff]
        %v512 = vld [vmem:[#allocation6 + $0x1c8] sm:$0xff]
        %v513 = vld [vmem:[#allocation6 + $0x1d0] sm:$0xff]
        %v514 = vld [vmem:[#allocation6 + $0x1d8] sm:$0xff]
        %v515 = vld [vmem:[#allocation6 + $0x1e0] sm:$0xff]
        %v516 = vld [vmem:[#allocation6 + $0x1e8] sm:$0xff]
        %v517 = vld [vmem:[#allocation6 + $0x1f0] sm:$0xff]
        %v518 = vld [vmem:[#allocation6 + $0x1f8] sm:$0xff]
        %v519 = vld [vmem:[%s2] sm:$0xff]
        %v521 = vlaneseq
        %v522 = vshrl.u32 %v521, 7
        %v523 = vsub.s32 0, %v522
        %v524 = vrot.slane %v519, %v523
        %v525 = vlaneseq
        %v526 = vshrl.u32 %v525, 7
        %v527 = vsub.s32 1, %v526
        %v528 = vrot.slane %v519, %v527
        %v529 = vlaneseq
        %v530 = vshrl.u32 %v529, 7
        %v531 = vsub.s32 2, %v530
        %v532 = vrot.slane %v519, %v531
        %v533 = vlaneseq
        %v534 = vshrl.u32 %v533, 7
        %v535 = vsub.s32 3, %v534
        %v536 = vrot.slane %v519, %v535
        %v537 = vlaneseq
        %v538 = vshrl.u32 %v537, 7
        %v539 = vsub.s32 4, %v538
        %v540 = vrot.slane %v519, %v539
        %v541 = vlaneseq
        %v542 = vshrl.u32 %v541, 7
        %v543 = vsub.s32 5, %v542
        %v544 = vrot.slane %v519, %v543
        %v545 = vlaneseq
        %v546 = vshrl.u32 %v545, 7
        %v547 = vsub.s32 6, %v546
        %v548 = vrot.slane %v519, %v547
        %v549 = vlaneseq
        %v550 = vshrl.u32 %v549, 7
        %v551 = vsub.s32 7, %v550
        %v552 = vrot.slane %v519, %v551
        %v577 = vunpack.c.l.b16 %v439
        %v578 = vunpack.c.l.b16 %v440
        %v579 = vunpack.c.l.b16 %v441
        %v580 = vunpack.c.l.b16 %v442
        %v581 = vunpack.c.l.b16 %v443
        %v582 = vunpack.c.l.b16 %v444
        %v583 = vunpack.c.l.b16 %v445
        %v584 = vunpack.c.l.b16 %v446
        %v585 = vunpack.c.l.b16 %v447
        %v586 = vunpack.c.l.b16 %v448
        %v587 = vunpack.c.l.b16 %v449
        %v588 = vunpack.c.l.b16 %v450
        %v589 = vunpack.c.l.b16 %v451
        %v590 = vunpack.c.l.b16 %v452
        %v591 = vunpack.c.l.b16 %v453
        %v592 = vunpack.c.l.b16 %v454
        %v593 = vpack.c.b16 %v578, %v577
        %v594 = vpack.c.b16 %v580, %v579
        %v595 = vpack.c.b16 %v582, %v581
        %v596 = vpack.c.b16 %v584, %v583
        %v597 = vpack.c.b16 %v586, %v585
        %v598 = vpack.c.b16 %v588, %v587
        %v599 = vpack.c.b16 %v590, %v589
        %v600 = vpack.c.b16 %v592, %v591
        %v673 = vunpack.c.l.b16 %v455
        %v674 = vunpack.c.h.b16 %v455
        %v675 = vunpack.c.l.b16 %v456
        %v676 = vunpack.c.h.b16 %v456
        %v677 = vunpack.c.l.b16 %v457
        %v678 = vunpack.c.h.b16 %v457
        %v679 = vunpack.c.l.b16 %v458
        %v680 = vunpack.c.h.b16 %v458
        %v681 = vunpack.c.l.b16 %v459
        %v682 = vunpack.c.h.b16 %v459
        %v683 = vunpack.c.l.b16 %v460
        %v684 = vunpack.c.h.b16 %v460
        %v685 = vunpack.c.l.b16 %v461
        %v686 = vunpack.c.h.b16 %v461
        %v687 = vunpack.c.l.b16 %v462
        %v688 = vunpack.c.h.b16 %v462
        %v689 = vunpack.c.l.b16 %v463
        %v690 = vunpack.c.h.b16 %v463
        %v691 = vunpack.c.l.b16 %v464
        %v692 = vunpack.c.h.b16 %v464
        %v693 = vunpack.c.l.b16 %v465
        %v694 = vunpack.c.h.b16 %v465
        %v695 = vunpack.c.l.b16 %v466
        %v696 = vunpack.c.h.b16 %v466
        %v697 = vunpack.c.l.b16 %v467
        %v698 = vunpack.c.h.b16 %v467
        %v699 = vunpack.c.l.b16 %v468
        %v700 = vunpack.c.h.b16 %v468
        %v701 = vunpack.c.l.b16 %v469
        %v702 = vunpack.c.h.b16 %v469
        %v703 = vunpack.c.l.b16 %v470
        %v704 = vunpack.c.h.b16 %v470
        %v705 = vunpack.c.l.b16 %v471
        %v706 = vunpack.c.h.b16 %v471
        %v707 = vunpack.c.l.b16 %v472
        %v708 = vunpack.c.h.b16 %v472
        %v709 = vunpack.c.l.b16 %v473
        %v710 = vunpack.c.h.b16 %v473
        %v711 = vunpack.c.l.b16 %v474
        %v712 = vunpack.c.h.b16 %v474
        %v713 = vunpack.c.l.b16 %v475
        %v714 = vunpack.c.h.b16 %v475
        %v715 = vunpack.c.l.b16 %v476
        %v716 = vunpack.c.h.b16 %v476
        %v717 = vunpack.c.l.b16 %v477
        %v718 = vunpack.c.h.b16 %v477
        %v719 = vunpack.c.l.b16 %v478
        %v720 = vunpack.c.h.b16 %v478
        %v721 = vunpack.c.l.b16 %v479
        %v722 = vunpack.c.h.b16 %v479
        %v723 = vunpack.c.l.b16 %v480
        %v724 = vunpack.c.h.b16 %v480
        %v725 = vunpack.c.l.b16 %v481
        %v726 = vunpack.c.h.b16 %v481
        %v727 = vunpack.c.l.b16 %v482
        %v728 = vunpack.c.h.b16 %v482
        %v729 = vunpack.c.l.b16 %v483
        %v730 = vunpack.c.h.b16 %v483
        %v731 = vunpack.c.l.b16 %v484
        %v732 = vunpack.c.h.b16 %v484
        %v733 = vunpack.c.l.b16 %v485
        %v734 = vunpack.c.h.b16 %v485
        %v735 = vunpack.c.l.b16 %v486
        %v736 = vunpack.c.h.b16 %v486
        %v737 = vunpack.c.l.b16 %v487
        %v738 = vunpack.c.h.b16 %v487
        %v739 = vunpack.c.l.b16 %v488
        %v740 = vunpack.c.h.b16 %v488
        %v741 = vunpack.c.l.b16 %v489
        %v742 = vunpack.c.h.b16 %v489
        %v743 = vunpack.c.l.b16 %v490
        %v744 = vunpack.c.h.b16 %v490
        %v745 = vunpack.c.l.b16 %v491
        %v746 = vunpack.c.h.b16 %v491
        %v747 = vunpack.c.l.b16 %v492
        %v748 = vunpack.c.h.b16 %v492
        %v749 = vunpack.c.l.b16 %v493
        %v750 = vunpack.c.h.b16 %v493
        %v751 = vunpack.c.l.b16 %v494
        %v752 = vunpack.c.h.b16 %v494
        %v753 = vunpack.c.l.b16 %v495
        %v754 = vunpack.c.h.b16 %v495
        %v755 = vunpack.c.l.b16 %v496
        %v756 = vunpack.c.h.b16 %v496
        %v757 = vunpack.c.l.b16 %v497
        %v758 = vunpack.c.h.b16 %v497
        %v759 = vunpack.c.l.b16 %v498
        %v760 = vunpack.c.h.b16 %v498
        %v761 = vunpack.c.l.b16 %v499
        %v762 = vunpack.c.h.b16 %v499
        %v763 = vunpack.c.l.b16 %v500
        %v764 = vunpack.c.h.b16 %v500
        %v765 = vunpack.c.l.b16 %v501
        %v766 = vunpack.c.h.b16 %v501
        %v767 = vunpack.c.l.b16 %v502
        %v768 = vunpack.c.h.b16 %v502
        %v769 = vunpack.c.l.b16 %v503
        %v770 = vunpack.c.h.b16 %v503
        %v771 = vunpack.c.l.b16 %v504
        %v772 = vunpack.c.h.b16 %v504
        %v773 = vunpack.c.l.b16 %v505
        %v774 = vunpack.c.h.b16 %v505
        %v775 = vunpack.c.l.b16 %v506
        %v776 = vunpack.c.h.b16 %v506
        %v777 = vunpack.c.l.b16 %v507
        %v778 = vunpack.c.h.b16 %v507
        %v779 = vunpack.c.l.b16 %v508
        %v780 = vunpack.c.h.b16 %v508
        %v781 = vunpack.c.l.b16 %v509
        %v782 = vunpack.c.h.b16 %v509
        %v783 = vunpack.c.l.b16 %v510
        %v784 = vunpack.c.h.b16 %v510
        %v785 = vunpack.c.l.b16 %v511
        %v786 = vunpack.c.h.b16 %v511
        %v787 = vunpack.c.l.b16 %v512
        %v788 = vunpack.c.h.b16 %v512
        %v789 = vunpack.c.l.b16 %v513
        %v790 = vunpack.c.h.b16 %v513
        %v791 = vunpack.c.l.b16 %v514
        %v792 = vunpack.c.h.b16 %v514
        %v793 = vunpack.c.l.b16 %v515
        %v794 = vunpack.c.h.b16 %v515
        %v795 = vunpack.c.l.b16 %v516
        %v796 = vunpack.c.h.b16 %v516
        %v797 = vunpack.c.l.b16 %v517
        %v798 = vunpack.c.h.b16 %v517
        %v799 = vunpack.c.l.b16 %v518
        %v800 = vunpack.c.h.b16 %v518
        %v801 = vpack.c.b16 %v681, %v673
        %v802 = vpack.c.b16 %v682, %v674
        %v803 = vpack.c.b16 %v683, %v675
        %v804 = vpack.c.b16 %v684, %v676
        %v805 = vpack.c.b16 %v685, %v677
        %v806 = vpack.c.b16 %v686, %v678
        %v807 = vpack.c.b16 %v687, %v679
        %v808 = vpack.c.b16 %v688, %v680
        %v809 = vpack.c.b16 %v697, %v689
        %v810 = vpack.c.b16 %v698, %v690
        %v811 = vpack.c.b16 %v699, %v691
        %v812 = vpack.c.b16 %v700, %v692
        %v813 = vpack.c.b16 %v701, %v693
        %v814 = vpack.c.b16 %v702, %v694
        %v815 = vpack.c.b16 %v703, %v695
        %v816 = vpack.c.b16 %v704, %v696
        %v817 = vpack.c.b16 %v713, %v705
        %v818 = vpack.c.b16 %v714, %v706
        %v819 = vpack.c.b16 %v715, %v707
        %v820 = vpack.c.b16 %v716, %v708
        %v821 = vpack.c.b16 %v717, %v709
        %v822 = vpack.c.b16 %v718, %v710
        %v823 = vpack.c.b16 %v719, %v711
        %v824 = vpack.c.b16 %v720, %v712
        %v825 = vpack.c.b16 %v729, %v721
        %v826 = vpack.c.b16 %v730, %v722
        %v827 = vpack.c.b16 %v731, %v723
        %v828 = vpack.c.b16 %v732, %v724
        %v829 = vpack.c.b16 %v733, %v725
        %v830 = vpack.c.b16 %v734, %v726
        %v831 = vpack.c.b16 %v735, %v727
        %v832 = vpack.c.b16 %v736, %v728
        %v833 = vpack.c.b16 %v745, %v737
        %v834 = vpack.c.b16 %v746, %v738
        %v835 = vpack.c.b16 %v747, %v739
        %v836 = vpack.c.b16 %v748, %v740
        %v837 = vpack.c.b16 %v749, %v741
        %v838 = vpack.c.b16 %v750, %v742
        %v839 = vpack.c.b16 %v751, %v743
        %v840 = vpack.c.b16 %v752, %v744
        %v841 = vpack.c.b16 %v761, %v753
        %v842 = vpack.c.b16 %v762, %v754
        %v843 = vpack.c.b16 %v763, %v755
        %v844 = vpack.c.b16 %v764, %v756
        %v845 = vpack.c.b16 %v765, %v757
        %v846 = vpack.c.b16 %v766, %v758
        %v847 = vpack.c.b16 %v767, %v759
        %v848 = vpack.c.b16 %v768, %v760
        %v849 = vpack.c.b16 %v777, %v769
        %v850 = vpack.c.b16 %v778, %v770
        %v851 = vpack.c.b16 %v779, %v771
        %v852 = vpack.c.b16 %v780, %v772
        %v853 = vpack.c.b16 %v781, %v773
        %v854 = vpack.c.b16 %v782, %v774
        %v855 = vpack.c.b16 %v783, %v775
        %v856 = vpack.c.b16 %v784, %v776
        %v857 = vpack.c.b16 %v793, %v785
        %v858 = vpack.c.b16 %v794, %v786
        %v859 = vpack.c.b16 %v795, %v787
        %v860 = vpack.c.b16 %v796, %v788
        %v861 = vpack.c.b16 %v797, %v789
        %v862 = vpack.c.b16 %v798, %v790
        %v863 = vpack.c.b16 %v799, %v791
        %v864 = vpack.c.b16 %v800, %v792
        %929 = vmatprep.subr.bf16.mxu0 %v802
        %930 = vmatpush1.bf16.msra.mxu0 %v801
        %931 = vmatprep.subr.bf16.mxu0 %v810
        %932 = vmatpush1.bf16.msra.mxu0 %v809
        %933 = vmatprep.subr.bf16.mxu0 %v818
        %934 = vmatpush1.bf16.msra.mxu0 %v817
        %935 = vmatprep.subr.bf16.mxu0 %v826
        %936 = vmatpush1.bf16.msra.mxu0 %v825
        %937 = vmatprep.subr.bf16.mxu0 %v834
        %938 = vmatpush1.bf16.msra.mxu0 %v833
        %939 = vmatprep.subr.bf16.mxu0 %v842
        %940 = vmatpush1.bf16.msra.mxu0 %v841
        %941 = vmatprep.subr.bf16.mxu0 %v850
        %942 = vmatpush1.bf16.msra.mxu0 %v849
        %943 = vmatprep.subr.bf16.mxu0 %v858
        %944 = vmatpush1.bf16.msra.mxu0 %v857
        %945 = vmatprep.subr.bf16.mxu0 0
        %946 = vmatpush1.bf16.msra.mxu0 0
        %947 = vmatprep.subr.bf16.mxu0 0
        %948 = vmatpush1.bf16.msra.mxu0 0
        %949 = vmatprep.subr.bf16.mxu0 0
        %950 = vmatpush1.bf16.msra.mxu0 0
        %951 = vmatprep.subr.bf16.mxu0 0
        %952 = vmatpush1.bf16.msra.mxu0 0
        %953 = vmatprep.subr.bf16.mxu0 0
        %954 = vmatpush1.bf16.msra.mxu0 0
        %955 = vmatprep.subr.bf16.mxu0 0
        %956 = vmatpush1.bf16.msra.mxu0 0
        %957 = vmatprep.subr.bf16.mxu0 0
        %958 = vmatpush1.bf16.msra.mxu0 0
        %959 = vmatprep.subr.bf16.mxu0 0
        %960 = vmatpush1.bf16.msra.mxu0 0
        %961 = vmatprep.mubr.bf16.mxu0 0
        %962 = vmatmul.mubr.bf16.gmra.mrb[0].mxu0 %v593
        %v963 = vpop.f32.mrb[0].mxu0
        %v964 = vadd.f32 %v524, %v963
        %v965 = vpop.f32.mrb[0].mxu0
        %v966 = vadd.f32 %v528, %v965
        %v967 = vpop.f32.mrb[0].mxu0
        %v968 = vadd.f32 %v524, %v967
        %v969 = vpop.f32.mrb[0].mxu0
        %v970 = vadd.f32 %v528, %v969
        %971 = vmatprep.mubr.bf16.mxu0 0
        %972 = vmatmul.mubr.bf16.gmra.mrb[0].mxu0 %v594
        %v973 = vpop.f32.mrb[0].mxu0
        %v974 = vadd.f32 %v524, %v973
        %v975 = vpop.f32.mrb[0].mxu0
        %v976 = vadd.f32 %v528, %v975
        %v977 = vpop.f32.mrb[0].mxu0
        %v978 = vadd.f32 %v524, %v977
        %v979 = vpop.f32.mrb[0].mxu0
        %v980 = vadd.f32 %v528, %v979
        %981 = vmatprep.mubr.bf16.mxu0 0
        %982 = vmatmul.mubr.bf16.gmra.mrb[0].mxu0 %v595
        %v983 = vpop.f32.mrb[0].mxu0
        %v984 = vadd.f32 %v524, %v983
        %v985 = vpop.f32.mrb[0].mxu0
        %v986 = vadd.f32 %v528, %v985
        %v987 = vpop.f32.mrb[0].mxu0
        %v988 = vadd.f32 %v524, %v987
        %v989 = vpop.f32.mrb[0].mxu0
        %v990 = vadd.f32 %v528, %v989
        %991 = vmatprep.mubr.bf16.mxu0 0
        %992 = vmatmul.mubr.bf16.gmra.mrb[0].mxu0 %v596
        %v993 = vpop.f32.mrb[0].mxu0
        %v994 = vadd.f32 %v524, %v993
        %v995 = vpop.f32.mrb[0].mxu0
        %v996 = vadd.f32 %v528, %v995
        %v997 = vpop.f32.mrb[0].mxu0
        %v998 = vadd.f32 %v524, %v997
        %v999 = vpop.f32.mrb[0].mxu0
        %v1000 = vadd.f32 %v528, %v999
        %1001 = vmatprep.mubr.bf16.mxu0 0
        %1002 = vmatmul.mubr.bf16.gmra.mrb[0].mxu0 %v597
        %v1003 = vpop.f32.mrb[0].mxu0
        %v1004 = vadd.f32 %v524, %v1003
        %v1005 = vpop.f32.mrb[0].mxu0
        %v1006 = vadd.f32 %v528, %v1005
        %v1007 = vpop.f32.mrb[0].mxu0
        %v1008 = vadd.f32 %v524, %v1007
        %v1009 = vpop.f32.mrb[0].mxu0
        %v1010 = vadd.f32 %v528, %v1009
        %1011 = vmatprep.mubr.bf16.mxu0 0
        %1012 = vmatmul.mubr.bf16.gmra.mrb[0].mxu0 %v598
        %v1013 = vpop.f32.mrb[0].mxu0
        %v1014 = vadd.f32 %v524, %v1013
        %v1015 = vpop.f32.mrb[0].mxu0
        %v1016 = vadd.f32 %v528, %v1015
        %v1017 = vpop.f32.mrb[0].mxu0
        %v1018 = vadd.f32 %v524, %v1017
        %v1019 = vpop.f32.mrb[0].mxu0
        %v1020 = vadd.f32 %v528, %v1019
        %1021 = vmatprep.mubr.bf16.mxu0 0
        %1022 = vmatmul.mubr.bf16.gmra.mrb[0].mxu0 %v599
        %v1023 = vpop.f32.mrb[0].mxu0
        %v1024 = vadd.f32 %v524, %v1023
        %v1025 = vpop.f32.mrb[0].mxu0
        %v1026 = vadd.f32 %v528, %v1025
        %v1027 = vpop.f32.mrb[0].mxu0
        %v1028 = vadd.f32 %v524, %v1027
        %v1029 = vpop.f32.mrb[0].mxu0
        %v1030 = vadd.f32 %v528, %v1029
        %1031 = vmatprep.mubr.bf16.mxu0 0
        %1032 = vmatmul.mubr.bf16.gmra.mrb[0].mxu0 %v600
        %v1033 = vpop.f32.mrb[0].mxu0
        %v1034 = vadd.f32 %v524, %v1033
        %v1035 = vpop.f32.mrb[0].mxu0
        %v1036 = vadd.f32 %v528, %v1035
        %v1037 = vpop.f32.mrb[0].mxu0
        %v1038 = vadd.f32 %v524, %v1037
        %v1039 = vpop.f32.mrb[0].mxu0
        %v1040 = vadd.f32 %v528, %v1039
        %1041 = vdwg.mxu0
        %1042 = vmatprep.subr.bf16.mxu0 %v804
        %1043 = vmatpush1.bf16.msra.mxu0 %v803
        %1044 = vmatprep.subr.bf16.mxu0 %v812
        %1045 = vmatpush1.bf16.msra.mxu0 %v811
        %1046 = vmatprep.subr.bf16.mxu0 %v820
        %1047 = vmatpush1.bf16.msra.mxu0 %v819
        %1048 = vmatprep.subr.bf16.mxu0 %v828
        %1049 = vmatpush1.bf16.msra.mxu0 %v827
        %1050 = vmatprep.subr.bf16.mxu0 %v836
        %1051 = vmatpush1.bf16.msra.mxu0 %v835
        %1052 = vmatprep.subr.bf16.mxu0 %v844
        %1053 = vmatpush1.bf16.msra.mxu0 %v843
        %1054 = vmatprep.subr.bf16.mxu0 %v852
        %1055 = vmatpush1.bf16.msra.mxu0 %v851
        %1056 = vmatprep.subr.bf16.mxu0 %v860
        %1057 = vmatpush1.bf16.msra.mxu0 %v859
        %1058 = vmatprep.subr.bf16.mxu0 0
        %1059 = vmatpush1.bf16.msra.mxu0 0
        %1060 = vmatprep.subr.bf16.mxu0 0
        %1061 = vmatpush1.bf16.msra.mxu0 0
        %1062 = vmatprep.subr.bf16.mxu0 0
        %1063 = vmatpush1.bf16.msra.mxu0 0
        %1064 = vmatprep.subr.bf16.mxu0 0
        %1065 = vmatpush1.bf16.msra.mxu0 0
        %1066 = vmatprep.subr.bf16.mxu0 0
        %1067 = vmatpush1.bf16.msra.mxu0 0
        %1068 = vmatprep.subr.bf16.mxu0 0
        %1069 = vmatpush1.bf16.msra.mxu0 0
        %1070 = vmatprep.subr.bf16.mxu0 0
        %1071 = vmatpush1.bf16.msra.mxu0 0
        %1072 = vmatprep.subr.bf16.mxu0 0
        %1073 = vmatpush1.bf16.msra.mxu0 0
        %1074 = vmatprep.mubr.bf16.mxu0 0
        %1075 = vmatmul.mubr.bf16.gmra.mrb[0].mxu0 %v593
        %v1076 = vpop.f32.mrb[0].mxu0
        %v1077 = vadd.f32 %v532, %v1076
        %v1078 = vpop.f32.mrb[0].mxu0
        %v1079 = vadd.f32 %v536, %v1078
        %v1080 = vpop.f32.mrb[0].mxu0
        %v1081 = vadd.f32 %v532, %v1080
        %v1082 = vpop.f32.mrb[0].mxu0
        %v1083 = vadd.f32 %v536, %v1082
        %1084 = vmatprep.mubr.bf16.mxu0 0
        %1085 = vmatmul.mubr.bf16.gmra.mrb[0].mxu0 %v594
        %v1086 = vpop.f32.mrb[0].mxu0
        %v1087 = vadd.f32 %v532, %v1086
        %v1088 = vpop.f32.mrb[0].mxu0
        %v1089 = vadd.f32 %v536, %v1088
        %v1090 = vpop.f32.mrb[0].mxu0
        %v1091 = vadd.f32 %v532, %v1090
        %v1092 = vpop.f32.mrb[0].mxu0
        %v1093 = vadd.f32 %v536, %v1092
        %1094 = vmatprep.mubr.bf16.mxu0 0
        %1095 = vmatmul.mubr.bf16.gmra.mrb[0].mxu0 %v595
        %v1096 = vpop.f32.mrb[0].mxu0
        %v1097 = vadd.f32 %v532, %v1096
        %v1098 = vpop.f32.mrb[0].mxu0
        %v1099 = vadd.f32 %v536, %v1098
        %v1100 = vpop.f32.mrb[0].mxu0
        %v1101 = vadd.f32 %v532, %v1100
        %v1102 = vpop.f32.mrb[0].mxu0
        %v1103 = vadd.f32 %v536, %v1102
        %1104 = vmatprep.mubr.bf16.mxu0 0
        %1105 = vmatmul.mubr.bf16.gmra.mrb[0].mxu0 %v596
        %v1106 = vpop.f32.mrb[0].mxu0
        %v1107 = vadd.f32 %v532, %v1106
        %v1108 = vpop.f32.mrb[0].mxu0
        %v1109 = vadd.f32 %v536, %v1108
        %v1110 = vpop.f32.mrb[0].mxu0
        %v1111 = vadd.f32 %v532, %v1110
        %v1112 = vpop.f32.mrb[0].mxu0
        %v1113 = vadd.f32 %v536, %v1112
        %1114 = vmatprep.mubr.bf16.mxu0 0
        %1115 = vmatmul.mubr.bf16.gmra.mrb[0].mxu0 %v597
        %v1116 = vpop.f32.mrb[0].mxu0
        %v1117 = vadd.f32 %v532, %v1116
        %v1118 = vpop.f32.mrb[0].mxu0
        %v1119 = vadd.f32 %v536, %v1118
        %v1120 = vpop.f32.mrb[0].mxu0
        %v1121 = vadd.f32 %v532, %v1120
        %v1122 = vpop.f32.mrb[0].mxu0
        %v1123 = vadd.f32 %v536, %v1122
        %1124 = vmatprep.mubr.bf16.mxu0 0
        %1125 = vmatmul.mubr.bf16.gmra.mrb[0].mxu0 %v598
        %v1126 = vpop.f32.mrb[0].mxu0
        %v1127 = vadd.f32 %v532, %v1126
        %v1128 = vpop.f32.mrb[0].mxu0
        %v1129 = vadd.f32 %v536, %v1128
        %v1130 = vpop.f32.mrb[0].mxu0
        %v1131 = vadd.f32 %v532, %v1130
        %v1132 = vpop.f32.mrb[0].mxu0
        %v1133 = vadd.f32 %v536, %v1132
        %1134 = vmatprep.mubr.bf16.mxu0 0
        %1135 = vmatmul.mubr.bf16.gmra.mrb[0].mxu0 %v599
        %v1136 = vpop.f32.mrb[0].mxu0
        %v1137 = vadd.f32 %v532, %v1136
        %v1138 = vpop.f32.mrb[0].mxu0
        %v1139 = vadd.f32 %v536, %v1138
        %v1140 = vpop.f32.mrb[0].mxu0
        %v1141 = vadd.f32 %v532, %v1140
        %v1142 = vpop.f32.mrb[0].mxu0
        %v1143 = vadd.f32 %v536, %v1142
        %1144 = vmatprep.mubr.bf16.mxu0 0
        %1145 = vmatmul.mubr.bf16.gmra.mrb[0].mxu0 %v600
        %v1146 = vpop.f32.mrb[0].mxu0
        %v1147 = vadd.f32 %v532, %v1146
        %v1148 = vpop.f32.mrb[0].mxu0
        %v1149 = vadd.f32 %v536, %v1148
        %v1150 = vpop.f32.mrb[0].mxu0
        %v1151 = vadd.f32 %v532, %v1150
        %v1152 = vpop.f32.mrb[0].mxu0
        %v1153 = vadd.f32 %v536, %v1152
        %1154 = vdwg.mxu0
        %1155 = vmatprep.subr.bf16.mxu0 %v806
        %1156 = vmatpush1.bf16.msra.mxu0 %v805
        %1157 = vmatprep.subr.bf16.mxu0 %v814
        %1158 = vmatpush1.bf16.msra.mxu0 %v813
        %1159 = vmatprep.subr.bf16.mxu0 %v822
        %1160 = vmatpush1.bf16.msra.mxu0 %v821
        %1161 = vmatprep.subr.bf16.mxu0 %v830
        %1162 = vmatpush1.bf16.msra.mxu0 %v829
        %1163 = vmatprep.subr.bf16.mxu0 %v838
        %1164 = vmatpush1.bf16.msra.mxu0 %v837
        %1165 = vmatprep.subr.bf16.mxu0 %v846
        %1166 = vmatpush1.bf16.msra.mxu0 %v845
        %1167 = vmatprep.subr.bf16.mxu0 %v854
        %1168 = vmatpush1.bf16.msra.mxu0 %v853
        %1169 = vmatprep.subr.bf16.mxu0 %v862
        %1170 = vmatpush1.bf16.msra.mxu0 %v861
        %1171 = vmatprep.subr.bf16.mxu0 0
        %1172 = vmatpush1.bf16.msra.mxu0 0
        %1173 = vmatprep.subr.bf16.mxu0 0
        %1174 = vmatpush1.bf16.msra.mxu0 0
        %1175 = vmatprep.subr.bf16.mxu0 0
        %1176 = vmatpush1.bf16.msra.mxu0 0
        %1177 = vmatprep.subr.bf16.mxu0 0
        %1178 = vmatpush1.bf16.msra.mxu0 0
        %1179 = vmatprep.subr.bf16.mxu0 0
        %1180 = vmatpush1.bf16.msra.mxu0 0
        %1181 = vmatprep.subr.bf16.mxu0 0
        %1182 = vmatpush1.bf16.msra.mxu0 0
        %1183 = vmatprep.subr.bf16.mxu0 0
        %1184 = vmatpush1.bf16.msra.mxu0 0
        %1185 = vmatprep.subr.bf16.mxu0 0
        %1186 = vmatpush1.bf16.msra.mxu0 0
        %1187 = vmatprep.mubr.bf16.mxu0 0
        %1188 = vmatmul.mubr.bf16.gmra.mrb[0].mxu0 %v593
        %v1189 = vpop.f32.mrb[0].mxu0
        %v1190 = vadd.f32 %v540, %v1189
        %v1191 = vpop.f32.mrb[0].mxu0
        %v1192 = vadd.f32 %v544, %v1191
        %v1193 = vpop.f32.mrb[0].mxu0
        %v1194 = vadd.f32 %v540, %v1193
        %v1195 = vpop.f32.mrb[0].mxu0
        %v1196 = vadd.f32 %v544, %v1195
        %1197 = vmatprep.mubr.bf16.mxu0 0
        %1198 = vmatmul.mubr.bf16.gmra.mrb[0].mxu0 %v594
        %v1199 = vpop.f32.mrb[0].mxu0
        %v1200 = vadd.f32 %v540, %v1199
        %v1201 = vpop.f32.mrb[0].mxu0
        %v1202 = vadd.f32 %v544, %v1201
        %v1203 = vpop.f32.mrb[0].mxu0
        %v1204 = vadd.f32 %v540, %v1203
        %v1205 = vpop.f32.mrb[0].mxu0
        %v1206 = vadd.f32 %v544, %v1205
        %1207 = vmatprep.mubr.bf16.mxu0 0
        %1208 = vmatmul.mubr.bf16.gmra.mrb[0].mxu0 %v595
        %v1209 = vpop.f32.mrb[0].mxu0
        %v1210 = vadd.f32 %v540, %v1209
        %v1211 = vpop.f32.mrb[0].mxu0
        %v1212 = vadd.f32 %v544, %v1211
        %v1213 = vpop.f32.mrb[0].mxu0
        %v1214 = vadd.f32 %v540, %v1213
        %v1215 = vpop.f32.mrb[0].mxu0
        %v1216 = vadd.f32 %v544, %v1215
        %1217 = vmatprep.mubr.bf16.mxu0 0
        %1218 = vmatmul.mubr.bf16.gmra.mrb[0].mxu0 %v596
        %v1219 = vpop.f32.mrb[0].mxu0
        %v1220 = vadd.f32 %v540, %v1219
        %v1221 = vpop.f32.mrb[0].mxu0
        %v1222 = vadd.f32 %v544, %v1221
        %v1223 = vpop.f32.mrb[0].mxu0
        %v1224 = vadd.f32 %v540, %v1223
        %v1225 = vpop.f32.mrb[0].mxu0
        %v1226 = vadd.f32 %v544, %v1225
        %1227 = vmatprep.mubr.bf16.mxu0 0
        %1228 = vmatmul.mubr.bf16.gmra.mrb[0].mxu0 %v597
        %v1229 = vpop.f32.mrb[0].mxu0
        %v1230 = vadd.f32 %v540, %v1229
        %v1231 = vpop.f32.mrb[0].mxu0
        %v1232 = vadd.f32 %v544, %v1231
        %v1233 = vpop.f32.mrb[0].mxu0
        %v1234 = vadd.f32 %v540, %v1233
        %v1235 = vpop.f32.mrb[0].mxu0
        %v1236 = vadd.f32 %v544, %v1235
        %1237 = vmatprep.mubr.bf16.mxu0 0
        %1238 = vmatmul.mubr.bf16.gmra.mrb[0].mxu0 %v598
        %v1239 = vpop.f32.mrb[0].mxu0
        %v1240 = vadd.f32 %v540, %v1239
        %v1241 = vpop.f32.mrb[0].mxu0
        %v1242 = vadd.f32 %v544, %v1241
        %v1243 = vpop.f32.mrb[0].mxu0
        %v1244 = vadd.f32 %v540, %v1243
        %v1245 = vpop.f32.mrb[0].mxu0
        %v1246 = vadd.f32 %v544, %v1245
        %1247 = vmatprep.mubr.bf16.mxu0 0
        %1248 = vmatmul.mubr.bf16.gmra.mrb[0].mxu0 %v599
        %v1249 = vpop.f32.mrb[0].mxu0
        %v1250 = vadd.f32 %v540, %v1249
        %v1251 = vpop.f32.mrb[0].mxu0
        %v1252 = vadd.f32 %v544, %v1251
        %v1253 = vpop.f32.mrb[0].mxu0
        %v1254 = vadd.f32 %v540, %v1253
        %v1255 = vpop.f32.mrb[0].mxu0
        %v1256 = vadd.f32 %v544, %v1255
        %1257 = vmatprep.mubr.bf16.mxu0 0
        %1258 = vmatmul.mubr.bf16.gmra.mrb[0].mxu0 %v600
        %v1259 = vpop.f32.mrb[0].mxu0
        %v1260 = vadd.f32 %v540, %v1259
        %v1261 = vpop.f32.mrb[0].mxu0
        %v1262 = vadd.f32 %v544, %v1261
        %v1263 = vpop.f32.mrb[0].mxu0
        %v1264 = vadd.f32 %v540, %v1263
        %v1265 = vpop.f32.mrb[0].mxu0
        %v1266 = vadd.f32 %v544, %v1265
        %1267 = vdwg.mxu0
        %1268 = vmatprep.subr.bf16.mxu0 %v808
        %1269 = vmatpush1.bf16.msra.mxu0 %v807
        %1270 = vmatprep.subr.bf16.mxu0 %v816
        %1271 = vmatpush1.bf16.msra.mxu0 %v815
        %1272 = vmatprep.subr.bf16.mxu0 %v824
        %1273 = vmatpush1.bf16.msra.mxu0 %v823
        %1274 = vmatprep.subr.bf16.mxu0 %v832
        %1275 = vmatpush1.bf16.msra.mxu0 %v831
        %1276 = vmatprep.subr.bf16.mxu0 %v840
        %1277 = vmatpush1.bf16.msra.mxu0 %v839
        %1278 = vmatprep.subr.bf16.mxu0 %v848
        %1279 = vmatpush1.bf16.msra.mxu0 %v847
        %1280 = vmatprep.subr.bf16.mxu0 %v856
        %1281 = vmatpush1.bf16.msra.mxu0 %v855
        %1282 = vmatprep.subr.bf16.mxu0 %v864
        %1283 = vmatpush1.bf16.msra.mxu0 %v863
        %1284 = vmatprep.subr.bf16.mxu0 0
        %1285 = vmatpush1.bf16.msra.mxu0 0
        %1286 = vmatprep.subr.bf16.mxu0 0
        %1287 = vmatpush1.bf16.msra.mxu0 0
        %1288 = vmatprep.subr.bf16.mxu0 0
        %1289 = vmatpush1.bf16.msra.mxu0 0
        %1290 = vmatprep.subr.bf16.mxu0 0
        %1291 = vmatpush1.bf16.msra.mxu0 0
        %1292 = vmatprep.subr.bf16.mxu0 0
        %1293 = vmatpush1.bf16.msra.mxu0 0
        %1294 = vmatprep.subr.bf16.mxu0 0
        %1295 = vmatpush1.bf16.msra.mxu0 0
        %1296 = vmatprep.subr.bf16.mxu0 0
        %1297 = vmatpush1.bf16.msra.mxu0 0
        %1298 = vmatprep.subr.bf16.mxu0 0
        %1299 = vmatpush1.bf16.msra.mxu0 0
        %1300 = vmatprep.mubr.bf16.mxu0 0
        %1301 = vmatmul.mubr.bf16.gmra.mrb[0].mxu0 %v593
        %v1302 = vpop.f32.mrb[0].mxu0
        %v1303 = vadd.f32 %v548, %v1302
        %v1304 = vpop.f32.mrb[0].mxu0
        %v1305 = vadd.f32 %v552, %v1304
        %v1306 = vpop.f32.mrb[0].mxu0
        %v1307 = vadd.f32 %v548, %v1306
        %v1308 = vpop.f32.mrb[0].mxu0
        %v1309 = vadd.f32 %v552, %v1308
        %1310 = vmatprep.mubr.bf16.mxu0 0
        %1311 = vmatmul.mubr.bf16.gmra.mrb[0].mxu0 %v594
        %v1312 = vpop.f32.mrb[0].mxu0
        %v1313 = vadd.f32 %v548, %v1312
        %v1314 = vpop.f32.mrb[0].mxu0
        %v1315 = vadd.f32 %v552, %v1314
        %v1316 = vpop.f32.mrb[0].mxu0
        %v1317 = vadd.f32 %v548, %v1316
        %v1318 = vpop.f32.mrb[0].mxu0
        %v1319 = vadd.f32 %v552, %v1318
        %1320 = vmatprep.mubr.bf16.mxu0 0
        %1321 = vmatmul.mubr.bf16.gmra.mrb[0].mxu0 %v595
        %v1322 = vpop.f32.mrb[0].mxu0
        %v1323 = vadd.f32 %v548, %v1322
        %v1324 = vpop.f32.mrb[0].mxu0
        %v1325 = vadd.f32 %v552, %v1324
        %v1326 = vpop.f32.mrb[0].mxu0
        %v1327 = vadd.f32 %v548, %v1326
        %v1328 = vpop.f32.mrb[0].mxu0
        %v1329 = vadd.f32 %v552, %v1328
        %1330 = vmatprep.mubr.bf16.mxu0 0
        %1331 = vmatmul.mubr.bf16.gmra.mrb[0].mxu0 %v596
        %v1332 = vpop.f32.mrb[0].mxu0
        %v1333 = vadd.f32 %v548, %v1332
        %v1334 = vpop.f32.mrb[0].mxu0
        %v1335 = vadd.f32 %v552, %v1334
        %v1336 = vpop.f32.mrb[0].mxu0
        %v1337 = vadd.f32 %v548, %v1336
        %v1338 = vpop.f32.mrb[0].mxu0
        %v1339 = vadd.f32 %v552, %v1338
        %1340 = vmatprep.mubr.bf16.mxu0 0
        %1341 = vmatmul.mubr.bf16.gmra.mrb[0].mxu0 %v597
        %v1342 = vpop.f32.mrb[0].mxu0
        %v1343 = vadd.f32 %v548, %v1342
        %v1344 = vpop.f32.mrb[0].mxu0
        %v1345 = vadd.f32 %v552, %v1344
        %v1346 = vpop.f32.mrb[0].mxu0
        %v1347 = vadd.f32 %v548, %v1346
        %v1348 = vpop.f32.mrb[0].mxu0
        %v1349 = vadd.f32 %v552, %v1348
        %1350 = vmatprep.mubr.bf16.mxu0 0
        %1351 = vmatmul.mubr.bf16.gmra.mrb[0].mxu0 %v598
        %v1352 = vpop.f32.mrb[0].mxu0
        %v1353 = vadd.f32 %v548, %v1352
        %v1354 = vpop.f32.mrb[0].mxu0
        %v1355 = vadd.f32 %v552, %v1354
        %v1356 = vpop.f32.mrb[0].mxu0
        %v1357 = vadd.f32 %v548, %v1356
        %v1358 = vpop.f32.mrb[0].mxu0
        %v1359 = vadd.f32 %v552, %v1358
        %1360 = vmatprep.mubr.bf16.mxu0 0
        %1361 = vmatmul.mubr.bf16.gmra.mrb[0].mxu0 %v599
        %v1362 = vpop.f32.mrb[0].mxu0
        %v1363 = vadd.f32 %v548, %v1362
        %v1364 = vpop.f32.mrb[0].mxu0
        %v1365 = vadd.f32 %v552, %v1364
        %v1366 = vpop.f32.mrb[0].mxu0
        %v1367 = vadd.f32 %v548, %v1366
        %v1368 = vpop.f32.mrb[0].mxu0
        %v1369 = vadd.f32 %v552, %v1368
        %1370 = vmatprep.mubr.bf16.mxu0 0
        %1371 = vmatmul.mubr.bf16.gmra.mrb[0].mxu0 %v600
        %v1372 = vpop.f32.mrb[0].mxu0
        %v1373 = vadd.f32 %v548, %v1372
        %v1374 = vpop.f32.mrb[0].mxu0
        %v1375 = vadd.f32 %v552, %v1374
        %v1376 = vpop.f32.mrb[0].mxu0
        %v1377 = vadd.f32 %v548, %v1376
        %v1378 = vpop.f32.mrb[0].mxu0
        %v1379 = vadd.f32 %v552, %v1378
        %1380 = vdwg.mxu0
        %v1381 = vmax.f32 %v964, 0.0
        %v1382 = vmax.f32 %v966, 0.0
        %v1383 = vmax.f32 %v1077, 0.0
        %v1384 = vmax.f32 %v1079, 0.0
        %v1385 = vmax.f32 %v1190, 0.0
        %v1386 = vmax.f32 %v1192, 0.0
        %v1387 = vmax.f32 %v1303, 0.0
        %v1388 = vmax.f32 %v1305, 0.0
        %v1389 = vmax.f32 %v968, 0.0
        %v1390 = vmax.f32 %v970, 0.0
        %v1391 = vmax.f32 %v1081, 0.0
        %v1392 = vmax.f32 %v1083, 0.0
        %v1393 = vmax.f32 %v1194, 0.0
        %v1394 = vmax.f32 %v1196, 0.0
        %v1395 = vmax.f32 %v1307, 0.0
        %v1396 = vmax.f32 %v1309, 0.0
        %v1397 = vmax.f32 %v974, 0.0
        %v1398 = vmax.f32 %v976, 0.0
        %v1399 = vmax.f32 %v1087, 0.0
        %v1400 = vmax.f32 %v1089, 0.0
        %v1401 = vmax.f32 %v1200, 0.0
        %v1402 = vmax.f32 %v1202, 0.0
        %v1403 = vmax.f32 %v1313, 0.0
        %v1404 = vmax.f32 %v1315, 0.0
        %v1405 = vmax.f32 %v978, 0.0
        %v1406 = vmax.f32 %v980, 0.0
        %v1407 = vmax.f32 %v1091, 0.0
        %v1408 = vmax.f32 %v1093, 0.0
        %v1409 = vmax.f32 %v1204, 0.0
        %v1410 = vmax.f32 %v1206, 0.0
        %v1411 = vmax.f32 %v1317, 0.0
        %v1412 = vmax.f32 %v1319, 0.0
        %v1413 = vmax.f32 %v984, 0.0
        %v1414 = vmax.f32 %v986, 0.0
        %v1415 = vmax.f32 %v1097, 0.0
        %v1416 = vmax.f32 %v1099, 0.0
        %v1417 = vmax.f32 %v1210, 0.0
        %v1418 = vmax.f32 %v1212, 0.0
        %v1419 = vmax.f32 %v1323, 0.0
        %v1420 = vmax.f32 %v1325, 0.0
        %v1421 = vmax.f32 %v988, 0.0
        %v1422 = vmax.f32 %v990, 0.0
        %v1423 = vmax.f32 %v1101, 0.0
        %v1424 = vmax.f32 %v1103, 0.0
        %v1425 = vmax.f32 %v1214, 0.0
        %v1426 = vmax.f32 %v1216, 0.0
        %v1427 = vmax.f32 %v1327, 0.0
        %v1428 = vmax.f32 %v1329, 0.0
        %v1429 = vmax.f32 %v994, 0.0
        %v1430 = vmax.f32 %v996, 0.0
        %v1431 = vmax.f32 %v1107, 0.0
        %v1432 = vmax.f32 %v1109, 0.0
        %v1433 = vmax.f32 %v1220, 0.0
        %v1434 = vmax.f32 %v1222, 0.0
        %v1435 = vmax.f32 %v1333, 0.0
        %v1436 = vmax.f32 %v1335, 0.0
        %v1437 = vmax.f32 %v998, 0.0
        %v1438 = vmax.f32 %v1000, 0.0
        %v1439 = vmax.f32 %v1111, 0.0
        %v1440 = vmax.f32 %v1113, 0.0
        %v1441 = vmax.f32 %v1224, 0.0
        %v1442 = vmax.f32 %v1226, 0.0
        %v1443 = vmax.f32 %v1337, 0.0
        %v1444 = vmax.f32 %v1339, 0.0
        %v1445 = vmax.f32 %v1004, 0.0
        %v1446 = vmax.f32 %v1006, 0.0
        %v1447 = vmax.f32 %v1117, 0.0
        %v1448 = vmax.f32 %v1119, 0.0
        %v1449 = vmax.f32 %v1230, 0.0
        %v1450 = vmax.f32 %v1232, 0.0
        %v1451 = vmax.f32 %v1343, 0.0
        %v1452 = vmax.f32 %v1345, 0.0
        %v1453 = vmax.f32 %v1008, 0.0
        %v1454 = vmax.f32 %v1010, 0.0
        %v1455 = vmax.f32 %v1121, 0.0
        %v1456 = vmax.f32 %v1123, 0.0
        %v1457 = vmax.f32 %v1234, 0.0
        %v1458 = vmax.f32 %v1236, 0.0
        %v1459 = vmax.f32 %v1347, 0.0
        %v1460 = vmax.f32 %v1349, 0.0
        %v1461 = vmax.f32 %v1014, 0.0
        %v1462 = vmax.f32 %v1016, 0.0
        %v1463 = vmax.f32 %v1127, 0.0
        %v1464 = vmax.f32 %v1129, 0.0
        %v1465 = vmax.f32 %v1240, 0.0
        %v1466 = vmax.f32 %v1242, 0.0
        %v1467 = vmax.f32 %v1353, 0.0
        %v1468 = vmax.f32 %v1355, 0.0
        %v1469 = vmax.f32 %v1018, 0.0
        %v1470 = vmax.f32 %v1020, 0.0
        %v1471 = vmax.f32 %v1131, 0.0
        %v1472 = vmax.f32 %v1133, 0.0
        %v1473 = vmax.f32 %v1244, 0.0
        %v1474 = vmax.f32 %v1246, 0.0
        %v1475 = vmax.f32 %v1357, 0.0
        %v1476 = vmax.f32 %v1359, 0.0
        %v1477 = vmax.f32 %v1024, 0.0
        %v1478 = vmax.f32 %v1026, 0.0
        %v1479 = vmax.f32 %v1137, 0.0
        %v1480 = vmax.f32 %v1139, 0.0
        %v1481 = vmax.f32 %v1250, 0.0
        %v1482 = vmax.f32 %v1252, 0.0
        %v1483 = vmax.f32 %v1363, 0.0
        %v1484 = vmax.f32 %v1365, 0.0
        %v1485 = vmax.f32 %v1028, 0.0
        %v1486 = vmax.f32 %v1030, 0.0
        %v1487 = vmax.f32 %v1141, 0.0
        %v1488 = vmax.f32 %v1143, 0.0
        %v1489 = vmax.f32 %v1254, 0.0
        %v1490 = vmax.f32 %v1256, 0.0
        %v1491 = vmax.f32 %v1367, 0.0
        %v1492 = vmax.f32 %v1369, 0.0
        %v1493 = vmax.f32 %v1034, 0.0
        %v1494 = vmax.f32 %v1036, 0.0
        %v1495 = vmax.f32 %v1147, 0.0
        %v1496 = vmax.f32 %v1149, 0.0
        %v1497 = vmax.f32 %v1260, 0.0
        %v1498 = vmax.f32 %v1262, 0.0
        %v1499 = vmax.f32 %v1373, 0.0
        %v1500 = vmax.f32 %v1375, 0.0
        %v1501 = vmax.f32 %v1038, 0.0
        %v1502 = vmax.f32 %v1040, 0.0
        %v1503 = vmax.f32 %v1151, 0.0
        %v1504 = vmax.f32 %v1153, 0.0
        %v1505 = vmax.f32 %v1264, 0.0
        %v1506 = vmax.f32 %v1266, 0.0
        %v1507 = vmax.f32 %v1377, 0.0
        %v1508 = vmax.f32 %v1379, 0.0
        %v1509 = vpack.c.bf16 %v1389, %v1381
        %v1510 = vpack.c.bf16 %v1390, %v1382
        %v1511 = vpack.c.bf16 %v1391, %v1383
        %v1512 = vpack.c.bf16 %v1392, %v1384
        %v1513 = vpack.c.bf16 %v1393, %v1385
        %v1514 = vpack.c.bf16 %v1394, %v1386
        %v1515 = vpack.c.bf16 %v1395, %v1387
        %v1516 = vpack.c.bf16 %v1396, %v1388
        %v1517 = vpack.c.bf16 %v1405, %v1397
        %v1518 = vpack.c.bf16 %v1406, %v1398
        %v1519 = vpack.c.bf16 %v1407, %v1399
        %v1520 = vpack.c.bf16 %v1408, %v1400
        %v1521 = vpack.c.bf16 %v1409, %v1401
        %v1522 = vpack.c.bf16 %v1410, %v1402
        %v1523 = vpack.c.bf16 %v1411, %v1403
        %v1524 = vpack.c.bf16 %v1412, %v1404
        %v1525 = vpack.c.bf16 %v1421, %v1413
        %v1526 = vpack.c.bf16 %v1422, %v1414
        %v1527 = vpack.c.bf16 %v1423, %v1415
        %v1528 = vpack.c.bf16 %v1424, %v1416
        %v1529 = vpack.c.bf16 %v1425, %v1417
        %v1530 = vpack.c.bf16 %v1426, %v1418
        %v1531 = vpack.c.bf16 %v1427, %v1419
        %v1532 = vpack.c.bf16 %v1428, %v1420
        %v1533 = vpack.c.bf16 %v1437, %v1429
        %v1534 = vpack.c.bf16 %v1438, %v1430
        %v1535 = vpack.c.bf16 %v1439, %v1431
        %v1536 = vpack.c.bf16 %v1440, %v1432
        %v1537 = vpack.c.bf16 %v1441, %v1433
        %v1538 = vpack.c.bf16 %v1442, %v1434
        %v1539 = vpack.c.bf16 %v1443, %v1435
        %v1540 = vpack.c.bf16 %v1444, %v1436
        %v1541 = vpack.c.bf16 %v1453, %v1445
        %v1542 = vpack.c.bf16 %v1454, %v1446
        %v1543 = vpack.c.bf16 %v1455, %v1447
        %v1544 = vpack.c.bf16 %v1456, %v1448
        %v1545 = vpack.c.bf16 %v1457, %v1449
        %v1546 = vpack.c.bf16 %v1458, %v1450
        %v1547 = vpack.c.bf16 %v1459, %v1451
        %v1548 = vpack.c.bf16 %v1460, %v1452
        %v1549 = vpack.c.bf16 %v1469, %v1461
        %v1550 = vpack.c.bf16 %v1470, %v1462
        %v1551 = vpack.c.bf16 %v1471, %v1463
        %v1552 = vpack.c.bf16 %v1472, %v1464
        %v1553 = vpack.c.bf16 %v1473, %v1465
        %v1554 = vpack.c.bf16 %v1474, %v1466
        %v1555 = vpack.c.bf16 %v1475, %v1467
        %v1556 = vpack.c.bf16 %v1476, %v1468
        %v1557 = vpack.c.bf16 %v1485, %v1477
        %v1558 = vpack.c.bf16 %v1486, %v1478
        %v1559 = vpack.c.bf16 %v1487, %v1479
        %v1560 = vpack.c.bf16 %v1488, %v1480
        %v1561 = vpack.c.bf16 %v1489, %v1481
        %v1562 = vpack.c.bf16 %v1490, %v1482
        %v1563 = vpack.c.bf16 %v1491, %v1483
        %v1564 = vpack.c.bf16 %v1492, %v1484
        %v1565 = vpack.c.bf16 %v1501, %v1493
        %v1566 = vpack.c.bf16 %v1502, %v1494
        %v1567 = vpack.c.bf16 %v1503, %v1495
        %v1568 = vpack.c.bf16 %v1504, %v1496
        %v1569 = vpack.c.bf16 %v1505, %v1497
        %v1570 = vpack.c.bf16 %v1506, %v1498
        %v1571 = vpack.c.bf16 %v1507, %v1499
        %v1572 = vpack.c.bf16 %v1508, %v1500
        %v1573 = vld [vmem:[#allocation8] sm:$0xff]
        %v1574 = vld [vmem:[#allocation8 + $0x8] sm:$0xff]
        %v1575 = vld [vmem:[#allocation8 + $0x10] sm:$0xff]
        %v1576 = vld [vmem:[#allocation8 + $0x18] sm:$0xff]
        %v1577 = vld [vmem:[#allocation8 + $0x20] sm:$0xff]
        %v1578 = vld [vmem:[#allocation8 + $0x28] sm:$0xff]
        %v1579 = vld [vmem:[#allocation8 + $0x30] sm:$0xff]
        %v1580 = vld [vmem:[#allocation8 + $0x38] sm:$0xff]
        %v1581 = vld [vmem:[#allocation8 + $0x40] sm:$0xff]
        %v1582 = vld [vmem:[#allocation8 + $0x48] sm:$0xff]
        %v1583 = vld [vmem:[#allocation8 + $0x50] sm:$0xff]
        %v1584 = vld [vmem:[#allocation8 + $0x58] sm:$0xff]
        %v1585 = vld [vmem:[#allocation8 + $0x60] sm:$0xff]
        %v1586 = vld [vmem:[#allocation8 + $0x68] sm:$0xff]
        %v1587 = vld [vmem:[#allocation8 + $0x70] sm:$0xff]
        %v1588 = vld [vmem:[#allocation8 + $0x78] sm:$0xff]
        %v1589 = vld [vmem:[#allocation8 + $0x80] sm:$0xff]
        %v1590 = vld [vmem:[#allocation8 + $0x88] sm:$0xff]
        %v1591 = vld [vmem:[#allocation8 + $0x90] sm:$0xff]
        %v1592 = vld [vmem:[#allocation8 + $0x98] sm:$0xff]
        %v1593 = vld [vmem:[#allocation8 + $0xa0] sm:$0xff]
        %v1594 = vld [vmem:[#allocation8 + $0xa8] sm:$0xff]
        %v1595 = vld [vmem:[#allocation8 + $0xb0] sm:$0xff]
        %v1596 = vld [vmem:[#allocation8 + $0xb8] sm:$0xff]
        %v1597 = vld [vmem:[#allocation8 + $0xc0] sm:$0xff]
        %v1598 = vld [vmem:[#allocation8 + $0xc8] sm:$0xff]
        %v1599 = vld [vmem:[#allocation8 + $0xd0] sm:$0xff]
        %v1600 = vld [vmem:[#allocation8 + $0xd8] sm:$0xff]
        %v1601 = vld [vmem:[#allocation8 + $0xe0] sm:$0xff]
        %v1602 = vld [vmem:[#allocation8 + $0xe8] sm:$0xff]
        %v1603 = vld [vmem:[#allocation8 + $0xf0] sm:$0xff]
        %v1604 = vld [vmem:[#allocation8 + $0xf8] sm:$0xff]
        %v1605 = vld [vmem:[#allocation8 + $0x100] sm:$0xff]
        %v1606 = vld [vmem:[#allocation8 + $0x108] sm:$0xff]
        %v1607 = vld [vmem:[#allocation8 + $0x110] sm:$0xff]
        %v1608 = vld [vmem:[#allocation8 + $0x118] sm:$0xff]
        %v1609 = vld [vmem:[#allocation8 + $0x120] sm:$0xff]
        %v1610 = vld [vmem:[#allocation8 + $0x128] sm:$0xff]
        %v1611 = vld [vmem:[#allocation8 + $0x130] sm:$0xff]
        %v1612 = vld [vmem:[#allocation8 + $0x138] sm:$0xff]
        %v1613 = vld [vmem:[#allocation8 + $0x140] sm:$0xff]
        %v1614 = vld [vmem:[#allocation8 + $0x148] sm:$0xff]
        %v1615 = vld [vmem:[#allocation8 + $0x150] sm:$0xff]
        %v1616 = vld [vmem:[#allocation8 + $0x158] sm:$0xff]
        %v1617 = vld [vmem:[#allocation8 + $0x160] sm:$0xff]
        %v1618 = vld [vmem:[#allocation8 + $0x168] sm:$0xff]
        %v1619 = vld [vmem:[#allocation8 + $0x170] sm:$0xff]
        %v1620 = vld [vmem:[#allocation8 + $0x178] sm:$0xff]
        %v1621 = vld [vmem:[#allocation8 + $0x180] sm:$0xff]
        %v1622 = vld [vmem:[#allocation8 + $0x188] sm:$0xff]
        %v1623 = vld [vmem:[#allocation8 + $0x190] sm:$0xff]
        %v1624 = vld [vmem:[#allocation8 + $0x198] sm:$0xff]
        %v1625 = vld [vmem:[#allocation8 + $0x1a0] sm:$0xff]
        %v1626 = vld [vmem:[#allocation8 + $0x1a8] sm:$0xff]
        %v1627 = vld [vmem:[#allocation8 + $0x1b0] sm:$0xff]
        %v1628 = vld [vmem:[#allocation8 + $0x1b8] sm:$0xff]
        %v1629 = vld [vmem:[#allocation8 + $0x1c0] sm:$0xff]
        %v1630 = vld [vmem:[#allocation8 + $0x1c8] sm:$0xff]
        %v1631 = vld [vmem:[#allocation8 + $0x1d0] sm:$0xff]
        %v1632 = vld [vmem:[#allocation8 + $0x1d8] sm:$0xff]
        %v1633 = vld [vmem:[#allocation8 + $0x1e0] sm:$0xff]
        %v1634 = vld [vmem:[#allocation8 + $0x1e8] sm:$0xff]
        %v1635 = vld [vmem:[#allocation8 + $0x1f0] sm:$0xff]
        %v1636 = vld [vmem:[#allocation8 + $0x1f8] sm:$0xff]
        %v1637 = vld [vmem:[#allocation8 + $0x200] sm:$0xff]
        %v1638 = vld [vmem:[#allocation8 + $0x208] sm:$0xff]
        %v1639 = vld [vmem:[#allocation8 + $0x210] sm:$0xff]
        %v1640 = vld [vmem:[#allocation8 + $0x218] sm:$0xff]
        %v1641 = vld [vmem:[#allocation8 + $0x220] sm:$0xff]
        %v1642 = vld [vmem:[#allocation8 + $0x228] sm:$0xff]
        %v1643 = vld [vmem:[#allocation8 + $0x230] sm:$0xff]
        %v1644 = vld [vmem:[#allocation8 + $0x238] sm:$0xff]
        %v1645 = vld [vmem:[#allocation8 + $0x240] sm:$0xff]
        %v1646 = vld [vmem:[#allocation8 + $0x248] sm:$0xff]
        %v1647 = vld [vmem:[#allocation8 + $0x250] sm:$0xff]
        %v1648 = vld [vmem:[#allocation8 + $0x258] sm:$0xff]
        %v1649 = vld [vmem:[#allocation8 + $0x260] sm:$0xff]
        %v1650 = vld [vmem:[#allocation8 + $0x268] sm:$0xff]
        %v1651 = vld [vmem:[#allocation8 + $0x270] sm:$0xff]
        %v1652 = vld [vmem:[#allocation8 + $0x278] sm:$0xff]
        %v1653 = vld [vmem:[#allocation8 + $0x280] sm:$0xff]
        %v1654 = vld [vmem:[#allocation8 + $0x288] sm:$0xff]
        %v1655 = vld [vmem:[#allocation8 + $0x290] sm:$0xff]
        %v1656 = vld [vmem:[#allocation8 + $0x298] sm:$0xff]
        %v1657 = vld [vmem:[#allocation8 + $0x2a0] sm:$0xff]
        %v1658 = vld [vmem:[#allocation8 + $0x2a8] sm:$0xff]
        %v1659 = vld [vmem:[#allocation8 + $0x2b0] sm:$0xff]
        %v1660 = vld [vmem:[#allocation8 + $0x2b8] sm:$0xff]
        %v1661 = vld [vmem:[#allocation8 + $0x2c0] sm:$0xff]
        %v1662 = vld [vmem:[#allocation8 + $0x2c8] sm:$0xff]
        %v1663 = vld [vmem:[#allocation8 + $0x2d0] sm:$0xff]
        %v1664 = vld [vmem:[#allocation8 + $0x2d8] sm:$0xff]
        %v1665 = vld [vmem:[#allocation8 + $0x2e0] sm:$0xff]
        %v1666 = vld [vmem:[#allocation8 + $0x2e8] sm:$0xff]
        %v1667 = vld [vmem:[#allocation8 + $0x2f0] sm:$0xff]
        %v1668 = vld [vmem:[#allocation8 + $0x2f8] sm:$0xff]
        %v1669 = vld [vmem:[#allocation8 + $0x300] sm:$0xff]
        %v1670 = vld [vmem:[#allocation8 + $0x308] sm:$0xff]
        %v1671 = vld [vmem:[#allocation8 + $0x310] sm:$0xff]
        %v1672 = vld [vmem:[#allocation8 + $0x318] sm:$0xff]
        %v1673 = vld [vmem:[#allocation8 + $0x320] sm:$0xff]
        %v1674 = vld [vmem:[#allocation8 + $0x328] sm:$0xff]
        %v1675 = vld [vmem:[#allocation8 + $0x330] sm:$0xff]
        %v1676 = vld [vmem:[#allocation8 + $0x338] sm:$0xff]
        %v1677 = vld [vmem:[#allocation8 + $0x340] sm:$0xff]
        %v1678 = vld [vmem:[#allocation8 + $0x348] sm:$0xff]
        %v1679 = vld [vmem:[#allocation8 + $0x350] sm:$0xff]
        %v1680 = vld [vmem:[#allocation8 + $0x358] sm:$0xff]
        %v1681 = vld [vmem:[#allocation8 + $0x360] sm:$0xff]
        %v1682 = vld [vmem:[#allocation8 + $0x368] sm:$0xff]
        %v1683 = vld [vmem:[#allocation8 + $0x370] sm:$0xff]
        %v1684 = vld [vmem:[#allocation8 + $0x378] sm:$0xff]
        %v1685 = vld [vmem:[#allocation8 + $0x380] sm:$0xff]
        %v1686 = vld [vmem:[#allocation8 + $0x388] sm:$0xff]
        %v1687 = vld [vmem:[#allocation8 + $0x390] sm:$0xff]
        %v1688 = vld [vmem:[#allocation8 + $0x398] sm:$0xff]
        %v1689 = vld [vmem:[#allocation8 + $0x3a0] sm:$0xff]
        %v1690 = vld [vmem:[#allocation8 + $0x3a8] sm:$0xff]
        %v1691 = vld [vmem:[#allocation8 + $0x3b0] sm:$0xff]
        %v1692 = vld [vmem:[#allocation8 + $0x3b8] sm:$0xff]
        %v1693 = vld [vmem:[#allocation8 + $0x3c0] sm:$0xff]
        %v1694 = vld [vmem:[#allocation8 + $0x3c8] sm:$0xff]
        %v1695 = vld [vmem:[#allocation8 + $0x3d0] sm:$0xff]
        %v1696 = vld [vmem:[#allocation8 + $0x3d8] sm:$0xff]
        %v1697 = vld [vmem:[#allocation8 + $0x3e0] sm:$0xff]
        %v1698 = vld [vmem:[#allocation8 + $0x3e8] sm:$0xff]
        %v1699 = vld [vmem:[#allocation8 + $0x3f0] sm:$0xff]
        %v1700 = vld [vmem:[#allocation8 + $0x3f8] sm:$0xff]
        %v1701 = vld [vmem:[#allocation8 + $0x400] sm:$0xff]
        %v1702 = vld [vmem:[#allocation8 + $0x408] sm:$0xff]
        %v1703 = vld [vmem:[#allocation8 + $0x410] sm:$0xff]
        %v1704 = vld [vmem:[#allocation8 + $0x418] sm:$0xff]
        %v1705 = vld [vmem:[#allocation8 + $0x420] sm:$0xff]
        %v1706 = vld [vmem:[#allocation8 + $0x428] sm:$0xff]
        %v1707 = vld [vmem:[#allocation8 + $0x430] sm:$0xff]
        %v1708 = vld [vmem:[#allocation8 + $0x438] sm:$0xff]
        %v1709 = vld [vmem:[#allocation8 + $0x440] sm:$0xff]
        %v1710 = vld [vmem:[#allocation8 + $0x448] sm:$0xff]
        %v1711 = vld [vmem:[#allocation8 + $0x450] sm:$0xff]
        %v1712 = vld [vmem:[#allocation8 + $0x458] sm:$0xff]
        %v1713 = vld [vmem:[#allocation8 + $0x460] sm:$0xff]
        %v1714 = vld [vmem:[#allocation8 + $0x468] sm:$0xff]
        %v1715 = vld [vmem:[#allocation8 + $0x470] sm:$0xff]
        %v1716 = vld [vmem:[#allocation8 + $0x478] sm:$0xff]
        %v1717 = vld [vmem:[#allocation8 + $0x480] sm:$0xff]
        %v1718 = vld [vmem:[#allocation8 + $0x488] sm:$0xff]
        %v1719 = vld [vmem:[#allocation8 + $0x490] sm:$0xff]
        %v1720 = vld [vmem:[#allocation8 + $0x498] sm:$0xff]
        %v1721 = vld [vmem:[#allocation8 + $0x4a0] sm:$0xff]
        %v1722 = vld [vmem:[#allocation8 + $0x4a8] sm:$0xff]
        %v1723 = vld [vmem:[#allocation8 + $0x4b0] sm:$0xff]
        %v1724 = vld [vmem:[#allocation8 + $0x4b8] sm:$0xff]
        %v1725 = vld [vmem:[#allocation8 + $0x4c0] sm:$0xff]
        %v1726 = vld [vmem:[#allocation8 + $0x4c8] sm:$0xff]
        %v1727 = vld [vmem:[#allocation8 + $0x4d0] sm:$0xff]
        %v1728 = vld [vmem:[#allocation8 + $0x4d8] sm:$0xff]
        %v1729 = vld [vmem:[#allocation8 + $0x4e0] sm:$0xff]
        %v1730 = vld [vmem:[#allocation8 + $0x4e8] sm:$0xff]
        %v1731 = vld [vmem:[#allocation8 + $0x4f0] sm:$0xff]
        %v1732 = vld [vmem:[#allocation8 + $0x4f8] sm:$0xff]
        %v1733 = vld [vmem:[#allocation8 + $0x500] sm:$0xff]
        %v1734 = vld [vmem:[#allocation8 + $0x508] sm:$0xff]
        %v1735 = vld [vmem:[#allocation8 + $0x510] sm:$0xff]
        %v1736 = vld [vmem:[#allocation8 + $0x518] sm:$0xff]
        %v1737 = vld [vmem:[#allocation8 + $0x520] sm:$0xff]
        %v1738 = vld [vmem:[#allocation8 + $0x528] sm:$0xff]
        %v1739 = vld [vmem:[#allocation8 + $0x530] sm:$0xff]
        %v1740 = vld [vmem:[#allocation8 + $0x538] sm:$0xff]
        %v1741 = vld [vmem:[#allocation8 + $0x540] sm:$0xff]
        %v1742 = vld [vmem:[#allocation8 + $0x548] sm:$0xff]
        %v1743 = vld [vmem:[#allocation8 + $0x550] sm:$0xff]
        %v1744 = vld [vmem:[#allocation8 + $0x558] sm:$0xff]
        %v1745 = vld [vmem:[#allocation8 + $0x560] sm:$0xff]
        %v1746 = vld [vmem:[#allocation8 + $0x568] sm:$0xff]
        %v1747 = vld [vmem:[#allocation8 + $0x570] sm:$0xff]
        %v1748 = vld [vmem:[#allocation8 + $0x578] sm:$0xff]
        %v1749 = vld [vmem:[#allocation8 + $0x580] sm:$0xff]
        %v1750 = vld [vmem:[#allocation8 + $0x588] sm:$0xff]
        %v1751 = vld [vmem:[#allocation8 + $0x590] sm:$0xff]
        %v1752 = vld [vmem:[#allocation8 + $0x598] sm:$0xff]
        %v1753 = vld [vmem:[#allocation8 + $0x5a0] sm:$0xff]
        %v1754 = vld [vmem:[#allocation8 + $0x5a8] sm:$0xff]
        %v1755 = vld [vmem:[#allocation8 + $0x5b0] sm:$0xff]
        %v1756 = vld [vmem:[#allocation8 + $0x5b8] sm:$0xff]
        %v1757 = vld [vmem:[#allocation8 + $0x5c0] sm:$0xff]
        %v1758 = vld [vmem:[#allocation8 + $0x5c8] sm:$0xff]
        %v1759 = vld [vmem:[#allocation8 + $0x5d0] sm:$0xff]
        %v1760 = vld [vmem:[#allocation8 + $0x5d8] sm:$0xff]
        %v1761 = vld [vmem:[#allocation8 + $0x5e0] sm:$0xff]
        %v1762 = vld [vmem:[#allocation8 + $0x5e8] sm:$0xff]
        %v1763 = vld [vmem:[#allocation8 + $0x5f0] sm:$0xff]
        %v1764 = vld [vmem:[#allocation8 + $0x5f8] sm:$0xff]
        %v1765 = vld [vmem:[#allocation8 + $0x600] sm:$0xff]
        %v1766 = vld [vmem:[#allocation8 + $0x608] sm:$0xff]
        %v1767 = vld [vmem:[#allocation8 + $0x610] sm:$0xff]
        %v1768 = vld [vmem:[#allocation8 + $0x618] sm:$0xff]
        %v1769 = vld [vmem:[#allocation8 + $0x620] sm:$0xff]
        %v1770 = vld [vmem:[#allocation8 + $0x628] sm:$0xff]
        %v1771 = vld [vmem:[#allocation8 + $0x630] sm:$0xff]
        %v1772 = vld [vmem:[#allocation8 + $0x638] sm:$0xff]
        %v1773 = vld [vmem:[#allocation8 + $0x640] sm:$0xff]
        %v1774 = vld [vmem:[#allocation8 + $0x648] sm:$0xff]
        %v1775 = vld [vmem:[#allocation8 + $0x650] sm:$0xff]
        %v1776 = vld [vmem:[#allocation8 + $0x658] sm:$0xff]
        %v1777 = vld [vmem:[#allocation8 + $0x660] sm:$0xff]
        %v1778 = vld [vmem:[#allocation8 + $0x668] sm:$0xff]
        %v1779 = vld [vmem:[#allocation8 + $0x670] sm:$0xff]
        %v1780 = vld [vmem:[#allocation8 + $0x678] sm:$0xff]
        %v1781 = vld [vmem:[#allocation8 + $0x680] sm:$0xff]
        %v1782 = vld [vmem:[#allocation8 + $0x688] sm:$0xff]
        %v1783 = vld [vmem:[#allocation8 + $0x690] sm:$0xff]
        %v1784 = vld [vmem:[#allocation8 + $0x698] sm:$0xff]
        %v1785 = vld [vmem:[#allocation8 + $0x6a0] sm:$0xff]
        %v1786 = vld [vmem:[#allocation8 + $0x6a8] sm:$0xff]
        %v1787 = vld [vmem:[#allocation8 + $0x6b0] sm:$0xff]
        %v1788 = vld [vmem:[#allocation8 + $0x6b8] sm:$0xff]
        %v1789 = vld [vmem:[#allocation8 + $0x6c0] sm:$0xff]
        %v1790 = vld [vmem:[#allocation8 + $0x6c8] sm:$0xff]
        %v1791 = vld [vmem:[#allocation8 + $0x6d0] sm:$0xff]
        %v1792 = vld [vmem:[#allocation8 + $0x6d8] sm:$0xff]
        %v1793 = vld [vmem:[#allocation8 + $0x6e0] sm:$0xff]
        %v1794 = vld [vmem:[#allocation8 + $0x6e8] sm:$0xff]
        %v1795 = vld [vmem:[#allocation8 + $0x6f0] sm:$0xff]
        %v1796 = vld [vmem:[#allocation8 + $0x6f8] sm:$0xff]
        %v1797 = vld [vmem:[#allocation8 + $0x700] sm:$0xff]
        %v1798 = vld [vmem:[#allocation8 + $0x708] sm:$0xff]
        %v1799 = vld [vmem:[#allocation8 + $0x710] sm:$0xff]
        %v1800 = vld [vmem:[#allocation8 + $0x718] sm:$0xff]
        %v1801 = vld [vmem:[#allocation8 + $0x720] sm:$0xff]
        %v1802 = vld [vmem:[#allocation8 + $0x728] sm:$0xff]
        %v1803 = vld [vmem:[#allocation8 + $0x730] sm:$0xff]
        %v1804 = vld [vmem:[#allocation8 + $0x738] sm:$0xff]
        %v1805 = vld [vmem:[#allocation8 + $0x740] sm:$0xff]
        %v1806 = vld [vmem:[#allocation8 + $0x748] sm:$0xff]
        %v1807 = vld [vmem:[#allocation8 + $0x750] sm:$0xff]
        %v1808 = vld [vmem:[#allocation8 + $0x758] sm:$0xff]
        %v1809 = vld [vmem:[#allocation8 + $0x760] sm:$0xff]
        %v1810 = vld [vmem:[#allocation8 + $0x768] sm:$0xff]
        %v1811 = vld [vmem:[#allocation8 + $0x770] sm:$0xff]
        %v1812 = vld [vmem:[#allocation8 + $0x778] sm:$0xff]
        %v1813 = vld [vmem:[#allocation8 + $0x780] sm:$0xff]
        %v1814 = vld [vmem:[#allocation8 + $0x788] sm:$0xff]
        %v1815 = vld [vmem:[#allocation8 + $0x790] sm:$0xff]
        %v1816 = vld [vmem:[#allocation8 + $0x798] sm:$0xff]
        %v1817 = vld [vmem:[#allocation8 + $0x7a0] sm:$0xff]
        %v1818 = vld [vmem:[#allocation8 + $0x7a8] sm:$0xff]
        %v1819 = vld [vmem:[#allocation8 + $0x7b0] sm:$0xff]
        %v1820 = vld [vmem:[#allocation8 + $0x7b8] sm:$0xff]
        %v1821 = vld [vmem:[#allocation8 + $0x7c0] sm:$0xff]
        %v1822 = vld [vmem:[#allocation8 + $0x7c8] sm:$0xff]
        %v1823 = vld [vmem:[#allocation8 + $0x7d0] sm:$0xff]
        %v1824 = vld [vmem:[#allocation8 + $0x7d8] sm:$0xff]
        %v1825 = vld [vmem:[#allocation8 + $0x7e0] sm:$0xff]
        %v1826 = vld [vmem:[#allocation8 + $0x7e8] sm:$0xff]
        %v1827 = vld [vmem:[#allocation8 + $0x7f0] sm:$0xff]
        %v1828 = vld [vmem:[#allocation8 + $0x7f8] sm:$0xff]
        %v1829 = vld [vmem:[#allocation9] sm:$0xff]
        %v1830 = vld [vmem:[#allocation9 + $0x8] sm:$0xff]
        %v1831 = vld [vmem:[#allocation9 + $0x10] sm:$0xff]
        %v1832 = vld [vmem:[#allocation9 + $0x18] sm:$0xff]
        %v1833 = vld [vmem:[#allocation9 + $0x20] sm:$0xff]
        %v1834 = vld [vmem:[#allocation9 + $0x28] sm:$0xff]
        %v1835 = vld [vmem:[#allocation9 + $0x30] sm:$0xff]
        %v1836 = vld [vmem:[#allocation9 + $0x38] sm:$0xff]
        %v1837 = vld [vmem:[#allocation9 + $0x40] sm:$0xff]
        %v1838 = vld [vmem:[#allocation9 + $0x48] sm:$0xff]
        %v1839 = vld [vmem:[#allocation9 + $0x50] sm:$0xff]
        %v1840 = vld [vmem:[#allocation9 + $0x58] sm:$0xff]
        %v1841 = vld [vmem:[#allocation9 + $0x60] sm:$0xff]
        %v1842 = vld [vmem:[#allocation9 + $0x68] sm:$0xff]
        %v1843 = vld [vmem:[#allocation9 + $0x70] sm:$0xff]
        %v1844 = vld [vmem:[#allocation9 + $0x78] sm:$0xff]
        %v1845 = vld [vmem:[#allocation9 + $0x80] sm:$0xff]
        %v1846 = vld [vmem:[#allocation9 + $0x88] sm:$0xff]
        %v1847 = vld [vmem:[#allocation9 + $0x90] sm:$0xff]
        %v1848 = vld [vmem:[#allocation9 + $0x98] sm:$0xff]
        %v1849 = vld [vmem:[#allocation9 + $0xa0] sm:$0xff]
        %v1850 = vld [vmem:[#allocation9 + $0xa8] sm:$0xff]
        %v1851 = vld [vmem:[#allocation9 + $0xb0] sm:$0xff]
        %v1852 = vld [vmem:[#allocation9 + $0xb8] sm:$0xff]
        %v1853 = vld [vmem:[#allocation9 + $0xc0] sm:$0xff]
        %v1854 = vld [vmem:[#allocation9 + $0xc8] sm:$0xff]
        %v1855 = vld [vmem:[#allocation9 + $0xd0] sm:$0xff]
        %v1856 = vld [vmem:[#allocation9 + $0xd8] sm:$0xff]
        %v1857 = vld [vmem:[#allocation9 + $0xe0] sm:$0xff]
        %v1858 = vld [vmem:[#allocation9 + $0xe8] sm:$0xff]
        %v1859 = vld [vmem:[#allocation9 + $0xf0] sm:$0xff]
        %v1860 = vld [vmem:[#allocation9 + $0xf8] sm:$0xff]
        %v1893 = vunpack.c.l.b16 %v1829
        %v1894 = vunpack.c.h.b16 %v1829
        %v1895 = vunpack.c.l.b16 %v1830
        %v1896 = vunpack.c.h.b16 %v1830
        %v1897 = vunpack.c.l.b16 %v1831
        %v1898 = vunpack.c.h.b16 %v1831
        %v1899 = vunpack.c.l.b16 %v1832
        %v1900 = vunpack.c.h.b16 %v1832
        %v1901 = vunpack.c.l.b16 %v1833
        %v1902 = vunpack.c.h.b16 %v1833
        %v1903 = vunpack.c.l.b16 %v1834
        %v1904 = vunpack.c.h.b16 %v1834
        %v1905 = vunpack.c.l.b16 %v1835
        %v1906 = vunpack.c.h.b16 %v1835
        %v1907 = vunpack.c.l.b16 %v1836
        %v1908 = vunpack.c.h.b16 %v1836
        %v1909 = vunpack.c.l.b16 %v1837
        %v1910 = vunpack.c.h.b16 %v1837
        %v1911 = vunpack.c.l.b16 %v1838
        %v1912 = vunpack.c.h.b16 %v1838
        %v1913 = vunpack.c.l.b16 %v1839
        %v1914 = vunpack.c.h.b16 %v1839
        %v1915 = vunpack.c.l.b16 %v1840
        %v1916 = vunpack.c.h.b16 %v1840
        %v1917 = vunpack.c.l.b16 %v1841
        %v1918 = vunpack.c.h.b16 %v1841
        %v1919 = vunpack.c.l.b16 %v1842
        %v1920 = vunpack.c.h.b16 %v1842
        %v1921 = vunpack.c.l.b16 %v1843
        %v1922 = vunpack.c.h.b16 %v1843
        %v1923 = vunpack.c.l.b16 %v1844
        %v1924 = vunpack.c.h.b16 %v1844
        %v1925 = vunpack.c.l.b16 %v1845
        %v1926 = vunpack.c.h.b16 %v1845
        %v1927 = vunpack.c.l.b16 %v1846
        %v1928 = vunpack.c.h.b16 %v1846
        %v1929 = vunpack.c.l.b16 %v1847
        %v1930 = vunpack.c.h.b16 %v1847
        %v1931 = vunpack.c.l.b16 %v1848
        %v1932 = vunpack.c.h.b16 %v1848
        %v1933 = vunpack.c.l.b16 %v1849
        %v1934 = vunpack.c.h.b16 %v1849
        %v1935 = vunpack.c.l.b16 %v1850
        %v1936 = vunpack.c.h.b16 %v1850
        %v1937 = vunpack.c.l.b16 %v1851
        %v1938 = vunpack.c.h.b16 %v1851
        %v1939 = vunpack.c.l.b16 %v1852
        %v1940 = vunpack.c.h.b16 %v1852
        %v1941 = vunpack.c.l.b16 %v1853
        %v1942 = vunpack.c.h.b16 %v1853
        %v1943 = vunpack.c.l.b16 %v1854
        %v1944 = vunpack.c.h.b16 %v1854
        %v1945 = vunpack.c.l.b16 %v1855
        %v1946 = vunpack.c.h.b16 %v1855
        %v1947 = vunpack.c.l.b16 %v1856
        %v1948 = vunpack.c.h.b16 %v1856
        %v1949 = vunpack.c.l.b16 %v1857
        %v1950 = vunpack.c.h.b16 %v1857
        %v1951 = vunpack.c.l.b16 %v1858
        %v1952 = vunpack.c.h.b16 %v1858
        %v1953 = vunpack.c.l.b16 %v1859
        %v1954 = vunpack.c.h.b16 %v1859
        %v1955 = vunpack.c.l.b16 %v1860
        %v1956 = vunpack.c.h.b16 %v1860
        %v1957 = vpack.c.b16 %v1897, %v1893
        %v1958 = vpack.c.b16 %v1898, %v1894
        %v1959 = vpack.c.b16 %v1899, %v1895
        %v1960 = vpack.c.b16 %v1900, %v1896
        %v1961 = vpack.c.b16 %v1905, %v1901
        %v1962 = vpack.c.b16 %v1906, %v1902
        %v1963 = vpack.c.b16 %v1907, %v1903
        %v1964 = vpack.c.b16 %v1908, %v1904
        %v1965 = vpack.c.b16 %v1913, %v1909
        %v1966 = vpack.c.b16 %v1914, %v1910
        %v1967 = vpack.c.b16 %v1915, %v1911
        %v1968 = vpack.c.b16 %v1916, %v1912
        %v1969 = vpack.c.b16 %v1921, %v1917
        %v1970 = vpack.c.b16 %v1922, %v1918
        %v1971 = vpack.c.b16 %v1923, %v1919
        %v1972 = vpack.c.b16 %v1924, %v1920
        %v1973 = vpack.c.b16 %v1929, %v1925
        %v1974 = vpack.c.b16 %v1930, %v1926
        %v1975 = vpack.c.b16 %v1931, %v1927
        %v1976 = vpack.c.b16 %v1932, %v1928
        %v1977 = vpack.c.b16 %v1937, %v1933
        %v1978 = vpack.c.b16 %v1938, %v1934
        %v1979 = vpack.c.b16 %v1939, %v1935
        %v1980 = vpack.c.b16 %v1940, %v1936
        %v1981 = vpack.c.b16 %v1945, %v1941
        %v1982 = vpack.c.b16 %v1946, %v1942
        %v1983 = vpack.c.b16 %v1947, %v1943
        %v1984 = vpack.c.b16 %v1948, %v1944
        %v1985 = vpack.c.b16 %v1953, %v1949
        %v1986 = vpack.c.b16 %v1954, %v1950
        %v1987 = vpack.c.b16 %v1955, %v1951
        %v1988 = vpack.c.b16 %v1956, %v1952
        %2021 = vmatprep.subr.bf16.mxu0 %v1958
        %2022 = vmatpush1.bf16.msra.mxu0 %v1957
        %2023 = vmatprep.subr.bf16.mxu0 %v1962
        %2024 = vmatpush1.bf16.msra.mxu0 %v1961
        %2025 = vmatprep.subr.bf16.mxu0 %v1966
        %2026 = vmatpush1.bf16.msra.mxu0 %v1965
        %2027 = vmatprep.subr.bf16.mxu0 %v1970
        %2028 = vmatpush1.bf16.msra.mxu0 %v1969
        %2029 = vmatprep.subr.bf16.mxu0 %v1974
        %2030 = vmatpush1.bf16.msra.mxu0 %v1973
        %2031 = vmatprep.subr.bf16.mxu0 %v1978
        %2032 = vmatpush1.bf16.msra.mxu0 %v1977
        %2033 = vmatprep.subr.bf16.mxu0 %v1982
        %2034 = vmatpush1.bf16.msra.mxu0 %v1981
        %2035 = vmatprep.subr.bf16.mxu0 %v1986
        %2036 = vmatpush1.bf16.msra.mxu0 %v1985
        %2037 = vmatprep.subr.bf16.mxu0 0
        %2038 = vmatpush1.bf16.msra.mxu0 0
        %2039 = vmatprep.subr.bf16.mxu0 0
        %2040 = vmatpush1.bf16.msra.mxu0 0
        %2041 = vmatprep.subr.bf16.mxu0 0
        %2042 = vmatpush1.bf16.msra.mxu0 0
        %2043 = vmatprep.subr.bf16.mxu0 0
        %2044 = vmatpush1.bf16.msra.mxu0 0
        %2045 = vmatprep.subr.bf16.mxu0 0
        %2046 = vmatpush1.bf16.msra.mxu0 0
        %2047 = vmatprep.subr.bf16.mxu0 0
        %2048 = vmatpush1.bf16.msra.mxu0 0
        %2049 = vmatprep.subr.bf16.mxu0 0
        %2050 = vmatpush1.bf16.msra.mxu0 0
        %2051 = vmatprep.subr.bf16.mxu0 0
        %2052 = vmatpush1.bf16.msra.mxu0 0
        %2053 = vmatprep.mubr.bf16.mxu0 0
        %2054 = vmatmul.mubr.bf16.gmra.mrb[0].mxu0 %v593
        %v2055 = vpop.f32.mrb[0].mxu0
        %v2056 = vadd.f32 0.0, %v2055
        %v2057 = vpop.f32.mrb[0].mxu0
        %v2058 = vadd.f32 0.0, %v2057
        %v2059 = vpop.f32.mrb[0].mxu0
        %v2060 = vadd.f32 0.0, %v2059
        %v2061 = vpop.f32.mrb[0].mxu0
        %v2062 = vadd.f32 0.0, %v2061
        %2063 = vmatprep.mubr.bf16.mxu0 0
        %2064 = vmatmul.mubr.bf16.gmra.mrb[0].mxu0 %v594
        %v2065 = vpop.f32.mrb[0].mxu0
        %v2066 = vadd.f32 0.0, %v2065
        %v2067 = vpop.f32.mrb[0].mxu0
        %v2068 = vadd.f32 0.0, %v2067
        %v2069 = vpop.f32.mrb[0].mxu0
        %v2070 = vadd.f32 0.0, %v2069
        %v2071 = vpop.f32.mrb[0].mxu0
        %v2072 = vadd.f32 0.0, %v2071
        %2073 = vmatprep.mubr.bf16.mxu0 0
        %2074 = vmatmul.mubr.bf16.gmra.mrb[0].mxu0 %v595
        %v2075 = vpop.f32.mrb[0].mxu0
        %v2076 = vadd.f32 0.0, %v2075
        %v2077 = vpop.f32.mrb[0].mxu0
        %v2078 = vadd.f32 0.0, %v2077
        %v2079 = vpop.f32.mrb[0].mxu0
        %v2080 = vadd.f32 0.0, %v2079
        %v2081 = vpop.f32.mrb[0].mxu0
        %v2082 = vadd.f32 0.0, %v2081
        %2083 = vmatprep.mubr.bf16.mxu0 0
        %2084 = vmatmul.mubr.bf16.gmra.mrb[0].mxu0 %v596
        %v2085 = vpop.f32.mrb[0].mxu0
        %v2086 = vadd.f32 0.0, %v2085
        %v2087 = vpop.f32.mrb[0].mxu0
        %v2088 = vadd.f32 0.0, %v2087
        %v2089 = vpop.f32.mrb[0].mxu0
        %v2090 = vadd.f32 0.0, %v2089
        %v2091 = vpop.f32.mrb[0].mxu0
        %v2092 = vadd.f32 0.0, %v2091
        %2093 = vmatprep.mubr.bf16.mxu0 0
        %2094 = vmatmul.mubr.bf16.gmra.mrb[0].mxu0 %v597
        %v2095 = vpop.f32.mrb[0].mxu0
        %v2096 = vadd.f32 0.0, %v2095
        %v2097 = vpop.f32.mrb[0].mxu0
        %v2098 = vadd.f32 0.0, %v2097
        %v2099 = vpop.f32.mrb[0].mxu0
        %v2100 = vadd.f32 0.0, %v2099
        %v2101 = vpop.f32.mrb[0].mxu0
        %v2102 = vadd.f32 0.0, %v2101
        %2103 = vmatprep.mubr.bf16.mxu0 0
        %2104 = vmatmul.mubr.bf16.gmra.mrb[0].mxu0 %v598
        %v2105 = vpop.f32.mrb[0].mxu0
        %v2106 = vadd.f32 0.0, %v2105
        %v2107 = vpop.f32.mrb[0].mxu0
        %v2108 = vadd.f32 0.0, %v2107
        %v2109 = vpop.f32.mrb[0].mxu0
        %v2110 = vadd.f32 0.0, %v2109
        %v2111 = vpop.f32.mrb[0].mxu0
        %v2112 = vadd.f32 0.0, %v2111
        %2113 = vmatprep.mubr.bf16.mxu0 0
        %2114 = vmatmul.mubr.bf16.gmra.mrb[0].mxu0 %v599
        %v2115 = vpop.f32.mrb[0].mxu0
        %v2116 = vadd.f32 0.0, %v2115
        %v2117 = vpop.f32.mrb[0].mxu0
        %v2118 = vadd.f32 0.0, %v2117
        %v2119 = vpop.f32.mrb[0].mxu0
        %v2120 = vadd.f32 0.0, %v2119
        %v2121 = vpop.f32.mrb[0].mxu0
        %v2122 = vadd.f32 0.0, %v2121
        %2123 = vmatprep.mubr.bf16.mxu0 0
        %2124 = vmatmul.mubr.bf16.gmra.mrb[0].mxu0 %v600
        %v2125 = vpop.f32.mrb[0].mxu0
        %v2126 = vadd.f32 0.0, %v2125
        %v2127 = vpop.f32.mrb[0].mxu0
        %v2128 = vadd.f32 0.0, %v2127
        %v2129 = vpop.f32.mrb[0].mxu0
        %v2130 = vadd.f32 0.0, %v2129
        %v2131 = vpop.f32.mrb[0].mxu0
        %v2132 = vadd.f32 0.0, %v2131
        %2133 = vdwg.mxu0
        %2134 = vmatprep.subr.bf16.mxu0 %v1960
        %2135 = vmatpush1.bf16.msra.mxu0 %v1959
        %2136 = vmatprep.subr.bf16.mxu0 %v1964
        %2137 = vmatpush1.bf16.msra.mxu0 %v1963
        %2138 = vmatprep.subr.bf16.mxu0 %v1968
        %2139 = vmatpush1.bf16.msra.mxu0 %v1967
        %2140 = vmatprep.subr.bf16.mxu0 %v1972
        %2141 = vmatpush1.bf16.msra.mxu0 %v1971
        %2142 = vmatprep.subr.bf16.mxu0 %v1976
        %2143 = vmatpush1.bf16.msra.mxu0 %v1975
        %2144 = vmatprep.subr.bf16.mxu0 %v1980
        %2145 = vmatpush1.bf16.msra.mxu0 %v1979
        %2146 = vmatprep.subr.bf16.mxu0 %v1984
        %2147 = vmatpush1.bf16.msra.mxu0 %v1983
        %2148 = vmatprep.subr.bf16.mxu0 %v1988
        %2149 = vmatpush1.bf16.msra.mxu0 %v1987
        %2150 = vmatprep.subr.bf16.mxu0 0
        %2151 = vmatpush1.bf16.msra.mxu0 0
        %2152 = vmatprep.subr.bf16.mxu0 0
        %2153 = vmatpush1.bf16.msra.mxu0 0
        %2154 = vmatprep.subr.bf16.mxu0 0
        %2155 = vmatpush1.bf16.msra.mxu0 0
        %2156 = vmatprep.subr.bf16.mxu0 0
        %2157 = vmatpush1.bf16.msra.mxu0 0
        %2158 = vmatprep.subr.bf16.mxu0 0
        %2159 = vmatpush1.bf16.msra.mxu0 0
        %2160 = vmatprep.subr.bf16.mxu0 0
        %2161 = vmatpush1.bf16.msra.mxu0 0
        %2162 = vmatprep.subr.bf16.mxu0 0
        %2163 = vmatpush1.bf16.msra.mxu0 0
        %2164 = vmatprep.subr.bf16.mxu0 0
        %2165 = vmatpush1.bf16.msra.mxu0 0
        %2166 = vmatprep.mubr.bf16.mxu0 0
        %2167 = vmatmul.mubr.bf16.gmra.mrb[0].mxu0 %v593
        %v2168 = vpop.f32.mrb[0].mxu0
        %v2169 = vadd.f32 0.0, %v2168
        %v2170 = vpop.f32.mrb[0].mxu0
        %v2171 = vadd.f32 0.0, %v2170
        %v2172 = vpop.f32.mrb[0].mxu0
        %v2173 = vadd.f32 0.0, %v2172
        %v2174 = vpop.f32.mrb[0].mxu0
        %v2175 = vadd.f32 0.0, %v2174
        %2176 = vmatprep.mubr.bf16.mxu0 0
        %2177 = vmatmul.mubr.bf16.gmra.mrb[0].mxu0 %v594
        %v2178 = vpop.f32.mrb[0].mxu0
        %v2179 = vadd.f32 0.0, %v2178
        %v2180 = vpop.f32.mrb[0].mxu0
        %v2181 = vadd.f32 0.0, %v2180
        %v2182 = vpop.f32.mrb[0].mxu0
        %v2183 = vadd.f32 0.0, %v2182
        %v2184 = vpop.f32.mrb[0].mxu0
        %v2185 = vadd.f32 0.0, %v2184
        %2186 = vmatprep.mubr.bf16.mxu0 0
        %2187 = vmatmul.mubr.bf16.gmra.mrb[0].mxu0 %v595
        %v2188 = vpop.f32.mrb[0].mxu0
        %v2189 = vadd.f32 0.0, %v2188
        %v2190 = vpop.f32.mrb[0].mxu0
        %v2191 = vadd.f32 0.0, %v2190
        %v2192 = vpop.f32.mrb[0].mxu0
        %v2193 = vadd.f32 0.0, %v2192
        %v2194 = vpop.f32.mrb[0].mxu0
        %v2195 = vadd.f32 0.0, %v2194
        %2196 = vmatprep.mubr.bf16.mxu0 0
        %2197 = vmatmul.mubr.bf16.gmra.mrb[0].mxu0 %v596
        %v2198 = vpop.f32.mrb[0].mxu0
        %v2199 = vadd.f32 0.0, %v2198
        %v2200 = vpop.f32.mrb[0].mxu0
        %v2201 = vadd.f32 0.0, %v2200
        %v2202 = vpop.f32.mrb[0].mxu0
        %v2203 = vadd.f32 0.0, %v2202
        %v2204 = vpop.f32.mrb[0].mxu0
        %v2205 = vadd.f32 0.0, %v2204
        %2206 = vmatprep.mubr.bf16.mxu0 0
        %2207 = vmatmul.mubr.bf16.gmra.mrb[0].mxu0 %v597
        %v2208 = vpop.f32.mrb[0].mxu0
        %v2209 = vadd.f32 0.0, %v2208
        %v2210 = vpop.f32.mrb[0].mxu0
        %v2211 = vadd.f32 0.0, %v2210
        %v2212 = vpop.f32.mrb[0].mxu0
        %v2213 = vadd.f32 0.0, %v2212
        %v2214 = vpop.f32.mrb[0].mxu0
        %v2215 = vadd.f32 0.0, %v2214
        %2216 = vmatprep.mubr.bf16.mxu0 0
        %2217 = vmatmul.mubr.bf16.gmra.mrb[0].mxu0 %v598
        %v2218 = vpop.f32.mrb[0].mxu0
        %v2219 = vadd.f32 0.0, %v2218
        %v2220 = vpop.f32.mrb[0].mxu0
        %v2221 = vadd.f32 0.0, %v2220
        %v2222 = vpop.f32.mrb[0].mxu0
        %v2223 = vadd.f32 0.0, %v2222
        %v2224 = vpop.f32.mrb[0].mxu0
        %v2225 = vadd.f32 0.0, %v2224
        %2226 = vmatprep.mubr.bf16.mxu0 0
        %2227 = vmatmul.mubr.bf16.gmra.mrb[0].mxu0 %v599
        %v2228 = vpop.f32.mrb[0].mxu0
        %v2229 = vadd.f32 0.0, %v2228
        %v2230 = vpop.f32.mrb[0].mxu0
        %v2231 = vadd.f32 0.0, %v2230
        %v2232 = vpop.f32.mrb[0].mxu0
        %v2233 = vadd.f32 0.0, %v2232
        %v2234 = vpop.f32.mrb[0].mxu0
        %v2235 = vadd.f32 0.0, %v2234
        %2236 = vmatprep.mubr.bf16.mxu0 0
        %2237 = vmatmul.mubr.bf16.gmra.mrb[0].mxu0 %v600
        %v2238 = vpop.f32.mrb[0].mxu0
        %v2239 = vadd.f32 0.0, %v2238
        %v2240 = vpop.f32.mrb[0].mxu0
        %v2241 = vadd.f32 0.0, %v2240
        %v2242 = vpop.f32.mrb[0].mxu0
        %v2243 = vadd.f32 0.0, %v2242
        %v2244 = vpop.f32.mrb[0].mxu0
        %v2245 = vadd.f32 0.0, %v2244
        %2246 = vdwg.mxu0
        %v2503 = vunpack.c.l.b16 %v1573
        %v2504 = vunpack.c.h.b16 %v1573
        %v2505 = vunpack.c.l.b16 %v1574
        %v2506 = vunpack.c.h.b16 %v1574
        %v2507 = vunpack.c.l.b16 %v1575
        %v2508 = vunpack.c.h.b16 %v1575
        %v2509 = vunpack.c.l.b16 %v1576
        %v2510 = vunpack.c.h.b16 %v1576
        %v2511 = vunpack.c.l.b16 %v1577
        %v2512 = vunpack.c.h.b16 %v1577
        %v2513 = vunpack.c.l.b16 %v1578
        %v2514 = vunpack.c.h.b16 %v1578
        %v2515 = vunpack.c.l.b16 %v1579
        %v2516 = vunpack.c.h.b16 %v1579
        %v2517 = vunpack.c.l.b16 %v1580
        %v2518 = vunpack.c.h.b16 %v1580
        %v2519 = vunpack.c.l.b16 %v1581
        %v2520 = vunpack.c.h.b16 %v1581
        %v2521 = vunpack.c.l.b16 %v1582
        %v2522 = vunpack.c.h.b16 %v1582
        %v2523 = vunpack.c.l.b16 %v1583
        %v2524 = vunpack.c.h.b16 %v1583
        %v2525 = vunpack.c.l.b16 %v1584
        %v2526 = vunpack.c.h.b16 %v1584
        %v2527 = vunpack.c.l.b16 %v1585
        %v2528 = vunpack.c.h.b16 %v1585
        %v2529 = vunpack.c.l.b16 %v1586
        %v2530 = vunpack.c.h.b16 %v1586
        %v2531 = vunpack.c.l.b16 %v1587
        %v2532 = vunpack.c.h.b16 %v1587
        %v2533 = vunpack.c.l.b16 %v1588
        %v2534 = vunpack.c.h.b16 %v1588
        %v2535 = vunpack.c.l.b16 %v1589
        %v2536 = vunpack.c.h.b16 %v1589
        %v2537 = vunpack.c.l.b16 %v1590
        %v2538 = vunpack.c.h.b16 %v1590
        %v2539 = vunpack.c.l.b16 %v1591
        %v2540 = vunpack.c.h.b16 %v1591
        %v2541 = vunpack.c.l.b16 %v1592
        %v2542 = vunpack.c.h.b16 %v1592
        %v2543 = vunpack.c.l.b16 %v1593
        %v2544 = vunpack.c.h.b16 %v1593
        %v2545 = vunpack.c.l.b16 %v1594
        %v2546 = vunpack.c.h.b16 %v1594
        %v2547 = vunpack.c.l.b16 %v1595
        %v2548 = vunpack.c.h.b16 %v1595
        %v2549 = vunpack.c.l.b16 %v1596
        %v2550 = vunpack.c.h.b16 %v1596
        %v2551 = vunpack.c.l.b16 %v1597
        %v2552 = vunpack.c.h.b16 %v1597
        %v2553 = vunpack.c.l.b16 %v1598
        %v2554 = vunpack.c.h.b16 %v1598
        %v2555 = vunpack.c.l.b16 %v1599
        %v2556 = vunpack.c.h.b16 %v1599
        %v2557 = vunpack.c.l.b16 %v1600
        %v2558 = vunpack.c.h.b16 %v1600
        %v2559 = vunpack.c.l.b16 %v1601
        %v2560 = vunpack.c.h.b16 %v1601
        %v2561 = vunpack.c.l.b16 %v1602
        %v2562 = vunpack.c.h.b16 %v1602
        %v2563 = vunpack.c.l.b16 %v1603
        %v2564 = vunpack.c.h.b16 %v1603
        %v2565 = vunpack.c.l.b16 %v1604
        %v2566 = vunpack.c.h.b16 %v1604
        %v2567 = vunpack.c.l.b16 %v1605
        %v2568 = vunpack.c.h.b16 %v1605
        %v2569 = vunpack.c.l.b16 %v1606
        %v2570 = vunpack.c.h.b16 %v1606
        %v2571 = vunpack.c.l.b16 %v1607
        %v2572 = vunpack.c.h.b16 %v1607
        %v2573 = vunpack.c.l.b16 %v1608
        %v2574 = vunpack.c.h.b16 %v1608
        %v2575 = vunpack.c.l.b16 %v1609
        %v2576 = vunpack.c.h.b16 %v1609
        %v2577 = vunpack.c.l.b16 %v1610
        %v2578 = vunpack.c.h.b16 %v1610
        %v2579 = vunpack.c.l.b16 %v1611
        %v2580 = vunpack.c.h.b16 %v1611
        %v2581 = vunpack.c.l.b16 %v1612
        %v2582 = vunpack.c.h.b16 %v1612
        %v2583 = vunpack.c.l.b16 %v1613
        %v2584 = vunpack.c.h.b16 %v1613
        %v2585 = vunpack.c.l.b16 %v1614
        %v2586 = vunpack.c.h.b16 %v1614
        %v2587 = vunpack.c.l.b16 %v1615
        %v2588 = vunpack.c.h.b16 %v1615
        %v2589 = vunpack.c.l.b16 %v1616
        %v2590 = vunpack.c.h.b16 %v1616
        %v2591 = vunpack.c.l.b16 %v1617
        %v2592 = vunpack.c.h.b16 %v1617
        %v2593 = vunpack.c.l.b16 %v1618
        %v2594 = vunpack.c.h.b16 %v1618
        %v2595 = vunpack.c.l.b16 %v1619
        %v2596 = vunpack.c.h.b16 %v1619
        %v2597 = vunpack.c.l.b16 %v1620
        %v2598 = vunpack.c.h.b16 %v1620
        %v2599 = vunpack.c.l.b16 %v1621
        %v2600 = vunpack.c.h.b16 %v1621
        %v2601 = vunpack.c.l.b16 %v1622
        %v2602 = vunpack.c.h.b16 %v1622
        %v2603 = vunpack.c.l.b16 %v1623
        %v2604 = vunpack.c.h.b16 %v1623
        %v2605 = vunpack.c.l.b16 %v1624
        %v2606 = vunpack.c.h.b16 %v1624
        %v2607 = vunpack.c.l.b16 %v1625
        %v2608 = vunpack.c.h.b16 %v1625
        %v2609 = vunpack.c.l.b16 %v1626
        %v2610 = vunpack.c.h.b16 %v1626
        %v2611 = vunpack.c.l.b16 %v1627
        %v2612 = vunpack.c.h.b16 %v1627
        %v2613 = vunpack.c.l.b16 %v1628
        %v2614 = vunpack.c.h.b16 %v1628
        %v2615 = vunpack.c.l.b16 %v1629
        %v2616 = vunpack.c.h.b16 %v1629
        %v2617 = vunpack.c.l.b16 %v1630
        %v2618 = vunpack.c.h.b16 %v1630
        %v2619 = vunpack.c.l.b16 %v1631
        %v2620 = vunpack.c.h.b16 %v1631
        %v2621 = vunpack.c.l.b16 %v1632
        %v2622 = vunpack.c.h.b16 %v1632
        %v2623 = vunpack.c.l.b16 %v1633
        %v2624 = vunpack.c.h.b16 %v1633
        %v2625 = vunpack.c.l.b16 %v1634
        %v2626 = vunpack.c.h.b16 %v1634
        %v2627 = vunpack.c.l.b16 %v1635
        %v2628 = vunpack.c.h.b16 %v1635
        %v2629 = vunpack.c.l.b16 %v1636
        %v2630 = vunpack.c.h.b16 %v1636
        %v2631 = vunpack.c.l.b16 %v1637
        %v2632 = vunpack.c.h.b16 %v1637
        %v2633 = vunpack.c.l.b16 %v1638
        %v2634 = vunpack.c.h.b16 %v1638
        %v2635 = vunpack.c.l.b16 %v1639
        %v2636 = vunpack.c.h.b16 %v1639
        %v2637 = vunpack.c.l.b16 %v1640
        %v2638 = vunpack.c.h.b16 %v1640
        %v2639 = vunpack.c.l.b16 %v1641
        %v2640 = vunpack.c.h.b16 %v1641
        %v2641 = vunpack.c.l.b16 %v1642
        %v2642 = vunpack.c.h.b16 %v1642
        %v2643 = vunpack.c.l.b16 %v1643
        %v2644 = vunpack.c.h.b16 %v1643
        %v2645 = vunpack.c.l.b16 %v1644
        %v2646 = vunpack.c.h.b16 %v1644
        %v2647 = vunpack.c.l.b16 %v1645
        %v2648 = vunpack.c.h.b16 %v1645
        %v2649 = vunpack.c.l.b16 %v1646
        %v2650 = vunpack.c.h.b16 %v1646
        %v2651 = vunpack.c.l.b16 %v1647
        %v2652 = vunpack.c.h.b16 %v1647
        %v2653 = vunpack.c.l.b16 %v1648
        %v2654 = vunpack.c.h.b16 %v1648
        %v2655 = vunpack.c.l.b16 %v1649
        %v2656 = vunpack.c.h.b16 %v1649
        %v2657 = vunpack.c.l.b16 %v1650
        %v2658 = vunpack.c.h.b16 %v1650
        %v2659 = vunpack.c.l.b16 %v1651
        %v2660 = vunpack.c.h.b16 %v1651
        %v2661 = vunpack.c.l.b16 %v1652
        %v2662 = vunpack.c.h.b16 %v1652
        %v2663 = vunpack.c.l.b16 %v1653
        %v2664 = vunpack.c.h.b16 %v1653
        %v2665 = vunpack.c.l.b16 %v1654
        %v2666 = vunpack.c.h.b16 %v1654
        %v2667 = vunpack.c.l.b16 %v1655
        %v2668 = vunpack.c.h.b16 %v1655
        %v2669 = vunpack.c.l.b16 %v1656
        %v2670 = vunpack.c.h.b16 %v1656
        %v2671 = vunpack.c.l.b16 %v1657
        %v2672 = vunpack.c.h.b16 %v1657
        %v2673 = vunpack.c.l.b16 %v1658
        %v2674 = vunpack.c.h.b16 %v1658
        %v2675 = vunpack.c.l.b16 %v1659
        %v2676 = vunpack.c.h.b16 %v1659
        %v2677 = vunpack.c.l.b16 %v1660
        %v2678 = vunpack.c.h.b16 %v1660
        %v2679 = vunpack.c.l.b16 %v1661
        %v2680 = vunpack.c.h.b16 %v1661
        %v2681 = vunpack.c.l.b16 %v1662
        %v2682 = vunpack.c.h.b16 %v1662
        %v2683 = vunpack.c.l.b16 %v1663
        %v2684 = vunpack.c.h.b16 %v1663
        %v2685 = vunpack.c.l.b16 %v1664
        %v2686 = vunpack.c.h.b16 %v1664
        %v2687 = vunpack.c.l.b16 %v1665
        %v2688 = vunpack.c.h.b16 %v1665
        %v2689 = vunpack.c.l.b16 %v1666
        %v2690 = vunpack.c.h.b16 %v1666
        %v2691 = vunpack.c.l.b16 %v1667
        %v2692 = vunpack.c.h.b16 %v1667
        %v2693 = vunpack.c.l.b16 %v1668
        %v2694 = vunpack.c.h.b16 %v1668
        %v2695 = vunpack.c.l.b16 %v1669
        %v2696 = vunpack.c.h.b16 %v1669
        %v2697 = vunpack.c.l.b16 %v1670
        %v2698 = vunpack.c.h.b16 %v1670
        %v2699 = vunpack.c.l.b16 %v1671
        %v2700 = vunpack.c.h.b16 %v1671
        %v2701 = vunpack.c.l.b16 %v1672
        %v2702 = vunpack.c.h.b16 %v1672
        %v2703 = vunpack.c.l.b16 %v1673
        %v2704 = vunpack.c.h.b16 %v1673
        %v2705 = vunpack.c.l.b16 %v1674
        %v2706 = vunpack.c.h.b16 %v1674
        %v2707 = vunpack.c.l.b16 %v1675
        %v2708 = vunpack.c.h.b16 %v1675
        %v2709 = vunpack.c.l.b16 %v1676
        %v2710 = vunpack.c.h.b16 %v1676
        %v2711 = vunpack.c.l.b16 %v1677
        %v2712 = vunpack.c.h.b16 %v1677
        %v2713 = vunpack.c.l.b16 %v1678
        %v2714 = vunpack.c.h.b16 %v1678
        %v2715 = vunpack.c.l.b16 %v1679
        %v2716 = vunpack.c.h.b16 %v1679
        %v2717 = vunpack.c.l.b16 %v1680
        %v2718 = vunpack.c.h.b16 %v1680
        %v2719 = vunpack.c.l.b16 %v1681
        %v2720 = vunpack.c.h.b16 %v1681
        %v2721 = vunpack.c.l.b16 %v1682
        %v2722 = vunpack.c.h.b16 %v1682
        %v2723 = vunpack.c.l.b16 %v1683
        %v2724 = vunpack.c.h.b16 %v1683
        %v2725 = vunpack.c.l.b16 %v1684
        %v2726 = vunpack.c.h.b16 %v1684
        %v2727 = vunpack.c.l.b16 %v1685
        %v2728 = vunpack.c.h.b16 %v1685
        %v2729 = vunpack.c.l.b16 %v1686
        %v2730 = vunpack.c.h.b16 %v1686
        %v2731 = vunpack.c.l.b16 %v1687
        %v2732 = vunpack.c.h.b16 %v1687
        %v2733 = vunpack.c.l.b16 %v1688
        %v2734 = vunpack.c.h.b16 %v1688
        %v2735 = vunpack.c.l.b16 %v1689
        %v2736 = vunpack.c.h.b16 %v1689
        %v2737 = vunpack.c.l.b16 %v1690
        %v2738 = vunpack.c.h.b16 %v1690
        %v2739 = vunpack.c.l.b16 %v1691
        %v2740 = vunpack.c.h.b16 %v1691
        %v2741 = vunpack.c.l.b16 %v1692
        %v2742 = vunpack.c.h.b16 %v1692
        %v2743 = vunpack.c.l.b16 %v1693
        %v2744 = vunpack.c.h.b16 %v1693
        %v2745 = vunpack.c.l.b16 %v1694
        %v2746 = vunpack.c.h.b16 %v1694
        %v2747 = vunpack.c.l.b16 %v1695
        %v2748 = vunpack.c.h.b16 %v1695
        %v2749 = vunpack.c.l.b16 %v1696
        %v2750 = vunpack.c.h.b16 %v1696
        %v2751 = vunpack.c.l.b16 %v1697
        %v2752 = vunpack.c.h.b16 %v1697
        %v2753 = vunpack.c.l.b16 %v1698
        %v2754 = vunpack.c.h.b16 %v1698
        %v2755 = vunpack.c.l.b16 %v1699
        %v2756 = vunpack.c.h.b16 %v1699
        %v2757 = vunpack.c.l.b16 %v1700
        %v2758 = vunpack.c.h.b16 %v1700
        %v2759 = vunpack.c.l.b16 %v1701
        %v2760 = vunpack.c.h.b16 %v1701
        %v2761 = vunpack.c.l.b16 %v1702
        %v2762 = vunpack.c.h.b16 %v1702
        %v2763 = vunpack.c.l.b16 %v1703
        %v2764 = vunpack.c.h.b16 %v1703
        %v2765 = vunpack.c.l.b16 %v1704
        %v2766 = vunpack.c.h.b16 %v1704
        %v2767 = vunpack.c.l.b16 %v1705
        %v2768 = vunpack.c.h.b16 %v1705
        %v2769 = vunpack.c.l.b16 %v1706
        %v2770 = vunpack.c.h.b16 %v1706
        %v2771 = vunpack.c.l.b16 %v1707
        %v2772 = vunpack.c.h.b16 %v1707
        %v2773 = vunpack.c.l.b16 %v1708
        %v2774 = vunpack.c.h.b16 %v1708
        %v2775 = vunpack.c.l.b16 %v1709
        %v2776 = vunpack.c.h.b16 %v1709
        %v2777 = vunpack.c.l.b16 %v1710
        %v2778 = vunpack.c.h.b16 %v1710
        %v2779 = vunpack.c.l.b16 %v1711
        %v2780 = vunpack.c.h.b16 %v1711
        %v2781 = vunpack.c.l.b16 %v1712
        %v2782 = vunpack.c.h.b16 %v1712
        %v2783 = vunpack.c.l.b16 %v1713
        %v2784 = vunpack.c.h.b16 %v1713
        %v2785 = vunpack.c.l.b16 %v1714
        %v2786 = vunpack.c.h.b16 %v1714
        %v2787 = vunpack.c.l.b16 %v1715
        %v2788 = vunpack.c.h.b16 %v1715
        %v2789 = vunpack.c.l.b16 %v1716
        %v2790 = vunpack.c.h.b16 %v1716
        %v2791 = vunpack.c.l.b16 %v1717
        %v2792 = vunpack.c.h.b16 %v1717
        %v2793 = vunpack.c.l.b16 %v1718
        %v2794 = vunpack.c.h.b16 %v1718
        %v2795 = vunpack.c.l.b16 %v1719
        %v2796 = vunpack.c.h.b16 %v1719
        %v2797 = vunpack.c.l.b16 %v1720
        %v2798 = vunpack.c.h.b16 %v1720
        %v2799 = vunpack.c.l.b16 %v1721
        %v2800 = vunpack.c.h.b16 %v1721
        %v2801 = vunpack.c.l.b16 %v1722
        %v2802 = vunpack.c.h.b16 %v1722
        %v2803 = vunpack.c.l.b16 %v1723
        %v2804 = vunpack.c.h.b16 %v1723
        %v2805 = vunpack.c.l.b16 %v1724
        %v2806 = vunpack.c.h.b16 %v1724
        %v2807 = vunpack.c.l.b16 %v1725
        %v2808 = vunpack.c.h.b16 %v1725
        %v2809 = vunpack.c.l.b16 %v1726
        %v2810 = vunpack.c.h.b16 %v1726
        %v2811 = vunpack.c.l.b16 %v1727
        %v2812 = vunpack.c.h.b16 %v1727
        %v2813 = vunpack.c.l.b16 %v1728
        %v2814 = vunpack.c.h.b16 %v1728
        %v2815 = vunpack.c.l.b16 %v1729
        %v2816 = vunpack.c.h.b16 %v1729
        %v2817 = vunpack.c.l.b16 %v1730
        %v2818 = vunpack.c.h.b16 %v1730
        %v2819 = vunpack.c.l.b16 %v1731
        %v2820 = vunpack.c.h.b16 %v1731
        %v2821 = vunpack.c.l.b16 %v1732
        %v2822 = vunpack.c.h.b16 %v1732
        %v2823 = vunpack.c.l.b16 %v1733
        %v2824 = vunpack.c.h.b16 %v1733
        %v2825 = vunpack.c.l.b16 %v1734
        %v2826 = vunpack.c.h.b16 %v1734
        %v2827 = vunpack.c.l.b16 %v1735
        %v2828 = vunpack.c.h.b16 %v1735
        %v2829 = vunpack.c.l.b16 %v1736
        %v2830 = vunpack.c.h.b16 %v1736
        %v2831 = vunpack.c.l.b16 %v1737
        %v2832 = vunpack.c.h.b16 %v1737
        %v2833 = vunpack.c.l.b16 %v1738
        %v2834 = vunpack.c.h.b16 %v1738
        %v2835 = vunpack.c.l.b16 %v1739
        %v2836 = vunpack.c.h.b16 %v1739
        %v2837 = vunpack.c.l.b16 %v1740
        %v2838 = vunpack.c.h.b16 %v1740
        %v2839 = vunpack.c.l.b16 %v1741
        %v2840 = vunpack.c.h.b16 %v1741
        %v2841 = vunpack.c.l.b16 %v1742
        %v2842 = vunpack.c.h.b16 %v1742
        %v2843 = vunpack.c.l.b16 %v1743
        %v2844 = vunpack.c.h.b16 %v1743
        %v2845 = vunpack.c.l.b16 %v1744
        %v2846 = vunpack.c.h.b16 %v1744
        %v2847 = vunpack.c.l.b16 %v1745
        %v2848 = vunpack.c.h.b16 %v1745
        %v2849 = vunpack.c.l.b16 %v1746
        %v2850 = vunpack.c.h.b16 %v1746
        %v2851 = vunpack.c.l.b16 %v1747
        %v2852 = vunpack.c.h.b16 %v1747
        %v2853 = vunpack.c.l.b16 %v1748
        %v2854 = vunpack.c.h.b16 %v1748
        %v2855 = vunpack.c.l.b16 %v1749
        %v2856 = vunpack.c.h.b16 %v1749
        %v2857 = vunpack.c.l.b16 %v1750
        %v2858 = vunpack.c.h.b16 %v1750
        %v2859 = vunpack.c.l.b16 %v1751
        %v2860 = vunpack.c.h.b16 %v1751
        %v2861 = vunpack.c.l.b16 %v1752
        %v2862 = vunpack.c.h.b16 %v1752
        %v2863 = vunpack.c.l.b16 %v1753
        %v2864 = vunpack.c.h.b16 %v1753
        %v2865 = vunpack.c.l.b16 %v1754
        %v2866 = vunpack.c.h.b16 %v1754
        %v2867 = vunpack.c.l.b16 %v1755
        %v2868 = vunpack.c.h.b16 %v1755
        %v2869 = vunpack.c.l.b16 %v1756
        %v2870 = vunpack.c.h.b16 %v1756
        %v2871 = vunpack.c.l.b16 %v1757
        %v2872 = vunpack.c.h.b16 %v1757
        %v2873 = vunpack.c.l.b16 %v1758
        %v2874 = vunpack.c.h.b16 %v1758
        %v2875 = vunpack.c.l.b16 %v1759
        %v2876 = vunpack.c.h.b16 %v1759
        %v2877 = vunpack.c.l.b16 %v1760
        %v2878 = vunpack.c.h.b16 %v1760
        %v2879 = vunpack.c.l.b16 %v1761
        %v2880 = vunpack.c.h.b16 %v1761
        %v2881 = vunpack.c.l.b16 %v1762
        %v2882 = vunpack.c.h.b16 %v1762
        %v2883 = vunpack.c.l.b16 %v1763
        %v2884 = vunpack.c.h.b16 %v1763
        %v2885 = vunpack.c.l.b16 %v1764
        %v2886 = vunpack.c.h.b16 %v1764
        %v2887 = vunpack.c.l.b16 %v1765
        %v2888 = vunpack.c.h.b16 %v1765
        %v2889 = vunpack.c.l.b16 %v1766
        %v2890 = vunpack.c.h.b16 %v1766
        %v2891 = vunpack.c.l.b16 %v1767
        %v2892 = vunpack.c.h.b16 %v1767
        %v2893 = vunpack.c.l.b16 %v1768
        %v2894 = vunpack.c.h.b16 %v1768
        %v2895 = vunpack.c.l.b16 %v1769
        %v2896 = vunpack.c.h.b16 %v1769
        %v2897 = vunpack.c.l.b16 %v1770
        %v2898 = vunpack.c.h.b16 %v1770
        %v2899 = vunpack.c.l.b16 %v1771
        %v2900 = vunpack.c.h.b16 %v1771
        %v2901 = vunpack.c.l.b16 %v1772
        %v2902 = vunpack.c.h.b16 %v1772
        %v2903 = vunpack.c.l.b16 %v1773
        %v2904 = vunpack.c.h.b16 %v1773
        %v2905 = vunpack.c.l.b16 %v1774
        %v2906 = vunpack.c.h.b16 %v1774
        %v2907 = vunpack.c.l.b16 %v1775
        %v2908 = vunpack.c.h.b16 %v1775
        %v2909 = vunpack.c.l.b16 %v1776
        %v2910 = vunpack.c.h.b16 %v1776
        %v2911 = vunpack.c.l.b16 %v1777
        %v2912 = vunpack.c.h.b16 %v1777
        %v2913 = vunpack.c.l.b16 %v1778
        %v2914 = vunpack.c.h.b16 %v1778
        %v2915 = vunpack.c.l.b16 %v1779
        %v2916 = vunpack.c.h.b16 %v1779
        %v2917 = vunpack.c.l.b16 %v1780
        %v2918 = vunpack.c.h.b16 %v1780
        %v2919 = vunpack.c.l.b16 %v1781
        %v2920 = vunpack.c.h.b16 %v1781
        %v2921 = vunpack.c.l.b16 %v1782
        %v2922 = vunpack.c.h.b16 %v1782
        %v2923 = vunpack.c.l.b16 %v1783
        %v2924 = vunpack.c.h.b16 %v1783
        %v2925 = vunpack.c.l.b16 %v1784
        %v2926 = vunpack.c.h.b16 %v1784
        %v2927 = vunpack.c.l.b16 %v1785
        %v2928 = vunpack.c.h.b16 %v1785
        %v2929 = vunpack.c.l.b16 %v1786
        %v2930 = vunpack.c.h.b16 %v1786
        %v2931 = vunpack.c.l.b16 %v1787
        %v2932 = vunpack.c.h.b16 %v1787
        %v2933 = vunpack.c.l.b16 %v1788
        %v2934 = vunpack.c.h.b16 %v1788
        %v2935 = vunpack.c.l.b16 %v1789
        %v2936 = vunpack.c.h.b16 %v1789
        %v2937 = vunpack.c.l.b16 %v1790
        %v2938 = vunpack.c.h.b16 %v1790
        %v2939 = vunpack.c.l.b16 %v1791
        %v2940 = vunpack.c.h.b16 %v1791
        %v2941 = vunpack.c.l.b16 %v1792
        %v2942 = vunpack.c.h.b16 %v1792
        %v2943 = vunpack.c.l.b16 %v1793
        %v2944 = vunpack.c.h.b16 %v1793
        %v2945 = vunpack.c.l.b16 %v1794
        %v2946 = vunpack.c.h.b16 %v1794
        %v2947 = vunpack.c.l.b16 %v1795
        %v2948 = vunpack.c.h.b16 %v1795
        %v2949 = vunpack.c.l.b16 %v1796
        %v2950 = vunpack.c.h.b16 %v1796
        %v2951 = vunpack.c.l.b16 %v1797
        %v2952 = vunpack.c.h.b16 %v1797
        %v2953 = vunpack.c.l.b16 %v1798
        %v2954 = vunpack.c.h.b16 %v1798
        %v2955 = vunpack.c.l.b16 %v1799
        %v2956 = vunpack.c.h.b16 %v1799
        %v2957 = vunpack.c.l.b16 %v1800
        %v2958 = vunpack.c.h.b16 %v1800
        %v2959 = vunpack.c.l.b16 %v1801
        %v2960 = vunpack.c.h.b16 %v1801
        %v2961 = vunpack.c.l.b16 %v1802
        %v2962 = vunpack.c.h.b16 %v1802
        %v2963 = vunpack.c.l.b16 %v1803
        %v2964 = vunpack.c.h.b16 %v1803
        %v2965 = vunpack.c.l.b16 %v1804
        %v2966 = vunpack.c.h.b16 %v1804
        %v2967 = vunpack.c.l.b16 %v1805
        %v2968 = vunpack.c.h.b16 %v1805
        %v2969 = vunpack.c.l.b16 %v1806
        %v2970 = vunpack.c.h.b16 %v1806
        %v2971 = vunpack.c.l.b16 %v1807
        %v2972 = vunpack.c.h.b16 %v1807
        %v2973 = vunpack.c.l.b16 %v1808
        %v2974 = vunpack.c.h.b16 %v1808
        %v2975 = vunpack.c.l.b16 %v1809
        %v2976 = vunpack.c.h.b16 %v1809
        %v2977 = vunpack.c.l.b16 %v1810
        %v2978 = vunpack.c.h.b16 %v1810
        %v2979 = vunpack.c.l.b16 %v1811
        %v2980 = vunpack.c.h.b16 %v1811
        %v2981 = vunpack.c.l.b16 %v1812
        %v2982 = vunpack.c.h.b16 %v1812
        %v2983 = vunpack.c.l.b16 %v1813
        %v2984 = vunpack.c.h.b16 %v1813
        %v2985 = vunpack.c.l.b16 %v1814
        %v2986 = vunpack.c.h.b16 %v1814
        %v2987 = vunpack.c.l.b16 %v1815
        %v2988 = vunpack.c.h.b16 %v1815
        %v2989 = vunpack.c.l.b16 %v1816
        %v2990 = vunpack.c.h.b16 %v1816
        %v2991 = vunpack.c.l.b16 %v1817
        %v2992 = vunpack.c.h.b16 %v1817
        %v2993 = vunpack.c.l.b16 %v1818
        %v2994 = vunpack.c.h.b16 %v1818
        %v2995 = vunpack.c.l.b16 %v1819
        %v2996 = vunpack.c.h.b16 %v1819
        %v2997 = vunpack.c.l.b16 %v1820
        %v2998 = vunpack.c.h.b16 %v1820
        %v2999 = vunpack.c.l.b16 %v1821
        %v3000 = vunpack.c.h.b16 %v1821
        %v3001 = vunpack.c.l.b16 %v1822
        %v3002 = vunpack.c.h.b16 %v1822
        %v3003 = vunpack.c.l.b16 %v1823
        %v3004 = vunpack.c.h.b16 %v1823
        %v3005 = vunpack.c.l.b16 %v1824
        %v3006 = vunpack.c.h.b16 %v1824
        %v3007 = vunpack.c.l.b16 %v1825
        %v3008 = vunpack.c.h.b16 %v1825
        %v3009 = vunpack.c.l.b16 %v1826
        %v3010 = vunpack.c.h.b16 %v1826
        %v3011 = vunpack.c.l.b16 %v1827
        %v3012 = vunpack.c.h.b16 %v1827
        %v3013 = vunpack.c.l.b16 %v1828
        %v3014 = vunpack.c.h.b16 %v1828
        %v3015 = vpack.c.b16 %v2507, %v2503
        %v3016 = vpack.c.b16 %v2508, %v2504
        %v3017 = vpack.c.b16 %v2509, %v2505
        %v3018 = vpack.c.b16 %v2510, %v2506
        %v3019 = vpack.c.b16 %v2515, %v2511
        %v3020 = vpack.c.b16 %v2516, %v2512
        %v3021 = vpack.c.b16 %v2517, %v2513
        %v3022 = vpack.c.b16 %v2518, %v2514
        %v3023 = vpack.c.b16 %v2523, %v2519
        %v3024 = vpack.c.b16 %v2524, %v2520
        %v3025 = vpack.c.b16 %v2525, %v2521
        %v3026 = vpack.c.b16 %v2526, %v2522
        %v3027 = vpack.c.b16 %v2531, %v2527
        %v3028 = vpack.c.b16 %v2532, %v2528
        %v3029 = vpack.c.b16 %v2533, %v2529
        %v3030 = vpack.c.b16 %v2534, %v2530
        %v3031 = vpack.c.b16 %v2539, %v2535
        %v3032 = vpack.c.b16 %v2540, %v2536
        %v3033 = vpack.c.b16 %v2541, %v2537
        %v3034 = vpack.c.b16 %v2542, %v2538
        %v3035 = vpack.c.b16 %v2547, %v2543
        %v3036 = vpack.c.b16 %v2548, %v2544
        %v3037 = vpack.c.b16 %v2549, %v2545
        %v3038 = vpack.c.b16 %v2550, %v2546
        %v3039 = vpack.c.b16 %v2555, %v2551
        %v3040 = vpack.c.b16 %v2556, %v2552
        %v3041 = vpack.c.b16 %v2557, %v2553
        %v3042 = vpack.c.b16 %v2558, %v2554
        %v3043 = vpack.c.b16 %v2563, %v2559
        %v3044 = vpack.c.b16 %v2564, %v2560
        %v3045 = vpack.c.b16 %v2565, %v2561
        %v3046 = vpack.c.b16 %v2566, %v2562
        %v3047 = vpack.c.b16 %v2571, %v2567
        %v3048 = vpack.c.b16 %v2572, %v2568
        %v3049 = vpack.c.b16 %v2573, %v2569
        %v3050 = vpack.c.b16 %v2574, %v2570
        %v3051 = vpack.c.b16 %v2579, %v2575
        %v3052 = vpack.c.b16 %v2580, %v2576
        %v3053 = vpack.c.b16 %v2581, %v2577
        %v3054 = vpack.c.b16 %v2582, %v2578
        %v3055 = vpack.c.b16 %v2587, %v2583
        %v3056 = vpack.c.b16 %v2588, %v2584
        %v3057 = vpack.c.b16 %v2589, %v2585
        %v3058 = vpack.c.b16 %v2590, %v2586
        %v3059 = vpack.c.b16 %v2595, %v2591
        %v3060 = vpack.c.b16 %v2596, %v2592
        %v3061 = vpack.c.b16 %v2597, %v2593
        %v3062 = vpack.c.b16 %v2598, %v2594
        %v3063 = vpack.c.b16 %v2603, %v2599
        %v3064 = vpack.c.b16 %v2604, %v2600
        %v3065 = vpack.c.b16 %v2605, %v2601
        %v3066 = vpack.c.b16 %v2606, %v2602
        %v3067 = vpack.c.b16 %v2611, %v2607
        %v3068 = vpack.c.b16 %v2612, %v2608
        %v3069 = vpack.c.b16 %v2613, %v2609
        %v3070 = vpack.c.b16 %v2614, %v2610
        %v3071 = vpack.c.b16 %v2619, %v2615
        %v3072 = vpack.c.b16 %v2620, %v2616
        %v3073 = vpack.c.b16 %v2621, %v2617
        %v3074 = vpack.c.b16 %v2622, %v2618
        %v3075 = vpack.c.b16 %v2627, %v2623
        %v3076 = vpack.c.b16 %v2628, %v2624
        %v3077 = vpack.c.b16 %v2629, %v2625
        %v3078 = vpack.c.b16 %v2630, %v2626
        %v3079 = vpack.c.b16 %v2635, %v2631
        %v3080 = vpack.c.b16 %v2636, %v2632
        %v3081 = vpack.c.b16 %v2637, %v2633
        %v3082 = vpack.c.b16 %v2638, %v2634
        %v3083 = vpack.c.b16 %v2643, %v2639
        %v3084 = vpack.c.b16 %v2644, %v2640
        %v3085 = vpack.c.b16 %v2645, %v2641
        %v3086 = vpack.c.b16 %v2646, %v2642
        %v3087 = vpack.c.b16 %v2651, %v2647
        %v3088 = vpack.c.b16 %v2652, %v2648
        %v3089 = vpack.c.b16 %v2653, %v2649
        %v3090 = vpack.c.b16 %v2654, %v2650
        %v3091 = vpack.c.b16 %v2659, %v2655
        %v3092 = vpack.c.b16 %v2660, %v2656
        %v3093 = vpack.c.b16 %v2661, %v2657
        %v3094 = vpack.c.b16 %v2662, %v2658
        %v3095 = vpack.c.b16 %v2667, %v2663
        %v3096 = vpack.c.b16 %v2668, %v2664
        %v3097 = vpack.c.b16 %v2669, %v2665
        %v3098 = vpack.c.b16 %v2670, %v2666
        %v3099 = vpack.c.b16 %v2675, %v2671
        %v3100 = vpack.c.b16 %v2676, %v2672
        %v3101 = vpack.c.b16 %v2677, %v2673
        %v3102 = vpack.c.b16 %v2678, %v2674
        %v3103 = vpack.c.b16 %v2683, %v2679
        %v3104 = vpack.c.b16 %v2684, %v2680
        %v3105 = vpack.c.b16 %v2685, %v2681
        %v3106 = vpack.c.b16 %v2686, %v2682
        %v3107 = vpack.c.b16 %v2691, %v2687
        %v3108 = vpack.c.b16 %v2692, %v2688
        %v3109 = vpack.c.b16 %v2693, %v2689
        %v3110 = vpack.c.b16 %v2694, %v2690
        %v3111 = vpack.c.b16 %v2699, %v2695
        %v3112 = vpack.c.b16 %v2700, %v2696
        %v3113 = vpack.c.b16 %v2701, %v2697
        %v3114 = vpack.c.b16 %v2702, %v2698
        %v3115 = vpack.c.b16 %v2707, %v2703
        %v3116 = vpack.c.b16 %v2708, %v2704
        %v3117 = vpack.c.b16 %v2709, %v2705
        %v3118 = vpack.c.b16 %v2710, %v2706
        %v3119 = vpack.c.b16 %v2715, %v2711
        %v3120 = vpack.c.b16 %v2716, %v2712
        %v3121 = vpack.c.b16 %v2717, %v2713
        %v3122 = vpack.c.b16 %v2718, %v2714
        %v3123 = vpack.c.b16 %v2723, %v2719
        %v3124 = vpack.c.b16 %v2724, %v2720
        %v3125 = vpack.c.b16 %v2725, %v2721
        %v3126 = vpack.c.b16 %v2726, %v2722
        %v3127 = vpack.c.b16 %v2731, %v2727
        %v3128 = vpack.c.b16 %v2732, %v2728
        %v3129 = vpack.c.b16 %v2733, %v2729
        %v3130 = vpack.c.b16 %v2734, %v2730
        %v3131 = vpack.c.b16 %v2739, %v2735
        %v3132 = vpack.c.b16 %v2740, %v2736
        %v3133 = vpack.c.b16 %v2741, %v2737
        %v3134 = vpack.c.b16 %v2742, %v2738
        %v3135 = vpack.c.b16 %v2747, %v2743
        %v3136 = vpack.c.b16 %v2748, %v2744
        %v3137 = vpack.c.b16 %v2749, %v2745
        %v3138 = vpack.c.b16 %v2750, %v2746
        %v3139 = vpack.c.b16 %v2755, %v2751
        %v3140 = vpack.c.b16 %v2756, %v2752
        %v3141 = vpack.c.b16 %v2757, %v2753
        %v3142 = vpack.c.b16 %v2758, %v2754
        %v3143 = vpack.c.b16 %v2763, %v2759
        %v3144 = vpack.c.b16 %v2764, %v2760
        %v3145 = vpack.c.b16 %v2765, %v2761
        %v3146 = vpack.c.b16 %v2766, %v2762
        %v3147 = vpack.c.b16 %v2771, %v2767
        %v3148 = vpack.c.b16 %v2772, %v2768
        %v3149 = vpack.c.b16 %v2773, %v2769
        %v3150 = vpack.c.b16 %v2774, %v2770
        %v3151 = vpack.c.b16 %v2779, %v2775
        %v3152 = vpack.c.b16 %v2780, %v2776
        %v3153 = vpack.c.b16 %v2781, %v2777
        %v3154 = vpack.c.b16 %v2782, %v2778
        %v3155 = vpack.c.b16 %v2787, %v2783
        %v3156 = vpack.c.b16 %v2788, %v2784
        %v3157 = vpack.c.b16 %v2789, %v2785
        %v3158 = vpack.c.b16 %v2790, %v2786
        %v3159 = vpack.c.b16 %v2795, %v2791
        %v3160 = vpack.c.b16 %v2796, %v2792
        %v3161 = vpack.c.b16 %v2797, %v2793
        %v3162 = vpack.c.b16 %v2798, %v2794
        %v3163 = vpack.c.b16 %v2803, %v2799
        %v3164 = vpack.c.b16 %v2804, %v2800
        %v3165 = vpack.c.b16 %v2805, %v2801
        %v3166 = vpack.c.b16 %v2806, %v2802
        %v3167 = vpack.c.b16 %v2811, %v2807
        %v3168 = vpack.c.b16 %v2812, %v2808
        %v3169 = vpack.c.b16 %v2813, %v2809
        %v3170 = vpack.c.b16 %v2814, %v2810
        %v3171 = vpack.c.b16 %v2819, %v2815
        %v3172 = vpack.c.b16 %v2820, %v2816
        %v3173 = vpack.c.b16 %v2821, %v2817
        %v3174 = vpack.c.b16 %v2822, %v2818
        %v3175 = vpack.c.b16 %v2827, %v2823
        %v3176 = vpack.c.b16 %v2828, %v2824
        %v3177 = vpack.c.b16 %v2829, %v2825
        %v3178 = vpack.c.b16 %v2830, %v2826
        %v3179 = vpack.c.b16 %v2835, %v2831
        %v3180 = vpack.c.b16 %v2836, %v2832
        %v3181 = vpack.c.b16 %v2837, %v2833
        %v3182 = vpack.c.b16 %v2838, %v2834
        %v3183 = vpack.c.b16 %v2843, %v2839
        %v3184 = vpack.c.b16 %v2844, %v2840
        %v3185 = vpack.c.b16 %v2845, %v2841
        %v3186 = vpack.c.b16 %v2846, %v2842
        %v3187 = vpack.c.b16 %v2851, %v2847
        %v3188 = vpack.c.b16 %v2852, %v2848
        %v3189 = vpack.c.b16 %v2853, %v2849
        %v3190 = vpack.c.b16 %v2854, %v2850
        %v3191 = vpack.c.b16 %v2859, %v2855
        %v3192 = vpack.c.b16 %v2860, %v2856
        %v3193 = vpack.c.b16 %v2861, %v2857
        %v3194 = vpack.c.b16 %v2862, %v2858
        %v3195 = vpack.c.b16 %v2867, %v2863
        %v3196 = vpack.c.b16 %v2868, %v2864
        %v3197 = vpack.c.b16 %v2869, %v2865
        %v3198 = vpack.c.b16 %v2870, %v2866
        %v3199 = vpack.c.b16 %v2875, %v2871
        %v3200 = vpack.c.b16 %v2876, %v2872
        %v3201 = vpack.c.b16 %v2877, %v2873
        %v3202 = vpack.c.b16 %v2878, %v2874
        %v3203 = vpack.c.b16 %v2883, %v2879
        %v3204 = vpack.c.b16 %v2884, %v2880
        %v3205 = vpack.c.b16 %v2885, %v2881
        %v3206 = vpack.c.b16 %v2886, %v2882
        %v3207 = vpack.c.b16 %v2891, %v2887
        %v3208 = vpack.c.b16 %v2892, %v2888
        %v3209 = vpack.c.b16 %v2893, %v2889
        %v3210 = vpack.c.b16 %v2894, %v2890
        %v3211 = vpack.c.b16 %v2899, %v2895
        %v3212 = vpack.c.b16 %v2900, %v2896
        %v3213 = vpack.c.b16 %v2901, %v2897
        %v3214 = vpack.c.b16 %v2902, %v2898
        %v3215 = vpack.c.b16 %v2907, %v2903
        %v3216 = vpack.c.b16 %v2908, %v2904
        %v3217 = vpack.c.b16 %v2909, %v2905
        %v3218 = vpack.c.b16 %v2910, %v2906
        %v3219 = vpack.c.b16 %v2915, %v2911
        %v3220 = vpack.c.b16 %v2916, %v2912
        %v3221 = vpack.c.b16 %v2917, %v2913
        %v3222 = vpack.c.b16 %v2918, %v2914
        %v3223 = vpack.c.b16 %v2923, %v2919
        %v3224 = vpack.c.b16 %v2924, %v2920
        %v3225 = vpack.c.b16 %v2925, %v2921
        %v3226 = vpack.c.b16 %v2926, %v2922
        %v3227 = vpack.c.b16 %v2931, %v2927
        %v3228 = vpack.c.b16 %v2932, %v2928
        %v3229 = vpack.c.b16 %v2933, %v2929
        %v3230 = vpack.c.b16 %v2934, %v2930
        %v3231 = vpack.c.b16 %v2939, %v2935
        %v3232 = vpack.c.b16 %v2940, %v2936
        %v3233 = vpack.c.b16 %v2941, %v2937
        %v3234 = vpack.c.b16 %v2942, %v2938
        %v3235 = vpack.c.b16 %v2947, %v2943
        %v3236 = vpack.c.b16 %v2948, %v2944
        %v3237 = vpack.c.b16 %v2949, %v2945
        %v3238 = vpack.c.b16 %v2950, %v2946
        %v3239 = vpack.c.b16 %v2955, %v2951
        %v3240 = vpack.c.b16 %v2956, %v2952
        %v3241 = vpack.c.b16 %v2957, %v2953
        %v3242 = vpack.c.b16 %v2958, %v2954
        %v3243 = vpack.c.b16 %v2963, %v2959
        %v3244 = vpack.c.b16 %v2964, %v2960
        %v3245 = vpack.c.b16 %v2965, %v2961
        %v3246 = vpack.c.b16 %v2966, %v2962
        %v3247 = vpack.c.b16 %v2971, %v2967
        %v3248 = vpack.c.b16 %v2972, %v2968
        %v3249 = vpack.c.b16 %v2973, %v2969
        %v3250 = vpack.c.b16 %v2974, %v2970
        %v3251 = vpack.c.b16 %v2979, %v2975
        %v3252 = vpack.c.b16 %v2980, %v2976
        %v3253 = vpack.c.b16 %v2981, %v2977
        %v3254 = vpack.c.b16 %v2982, %v2978
        %v3255 = vpack.c.b16 %v2987, %v2983
        %v3256 = vpack.c.b16 %v2988, %v2984
        %v3257 = vpack.c.b16 %v2989, %v2985
        %v3258 = vpack.c.b16 %v2990, %v2986
        %v3259 = vpack.c.b16 %v2995, %v2991
        %v3260 = vpack.c.b16 %v2996, %v2992
        %v3261 = vpack.c.b16 %v2997, %v2993
        %v3262 = vpack.c.b16 %v2998, %v2994
        %v3263 = vpack.c.b16 %v3003, %v2999
        %v3264 = vpack.c.b16 %v3004, %v3000
        %v3265 = vpack.c.b16 %v3005, %v3001
        %v3266 = vpack.c.b16 %v3006, %v3002
        %v3267 = vpack.c.b16 %v3011, %v3007
        %v3268 = vpack.c.b16 %v3012, %v3008
        %v3269 = vpack.c.b16 %v3013, %v3009
        %v3270 = vpack.c.b16 %v3014, %v3010
        %3527 = vmatprep.subr.bf16.mxu0 %v3016
        %3528 = vmatpush1.bf16.msra.mxu0 %v3015
        %3529 = vmatprep.subr.bf16.mxu0 %v3020
        %3530 = vmatpush1.bf16.msra.mxu0 %v3019
        %3531 = vmatprep.subr.bf16.mxu0 %v3024
        %3532 = vmatpush1.bf16.msra.mxu0 %v3023
        %3533 = vmatprep.subr.bf16.mxu0 %v3028
        %3534 = vmatpush1.bf16.msra.mxu0 %v3027
        %3535 = vmatprep.subr.bf16.mxu0 %v3032
        %3536 = vmatpush1.bf16.msra.mxu0 %v3031
        %3537 = vmatprep.subr.bf16.mxu0 %v3036
        %3538 = vmatpush1.bf16.msra.mxu0 %v3035
        %3539 = vmatprep.subr.bf16.mxu0 %v3040
        %3540 = vmatpush1.bf16.msra.mxu0 %v3039
        %3541 = vmatprep.subr.bf16.mxu0 %v3044
        %3542 = vmatpush1.bf16.msra.mxu0 %v3043
        %3543 = vmatprep.subr.bf16.mxu0 %v3048
        %3544 = vmatpush1.bf16.msra.mxu0 %v3047
        %3545 = vmatprep.subr.bf16.mxu0 %v3052
        %3546 = vmatpush1.bf16.msra.mxu0 %v3051
        %3547 = vmatprep.subr.bf16.mxu0 %v3056
        %3548 = vmatpush1.bf16.msra.mxu0 %v3055
        %3549 = vmatprep.subr.bf16.mxu0 %v3060
        %3550 = vmatpush1.bf16.msra.mxu0 %v3059
        %3551 = vmatprep.subr.bf16.mxu0 %v3064
        %3552 = vmatpush1.bf16.msra.mxu0 %v3063
        %3553 = vmatprep.subr.bf16.mxu0 %v3068
        %3554 = vmatpush1.bf16.msra.mxu0 %v3067
        %3555 = vmatprep.subr.bf16.mxu0 %v3072
        %3556 = vmatpush1.bf16.msra.mxu0 %v3071
        %3557 = vmatprep.subr.bf16.mxu0 %v3076
        %3558 = vmatpush1.bf16.msra.mxu0 %v3075
        %3559 = vmatprep.mubr.bf16.mxu0 %v1510
        %3560 = vmatmul.mubr.bf16.gmra.mrb[0].mxu0 %v1509
        %v3561 = vpop.f32.mrb[0].mxu0
        %v3562 = vadd.f32 %v2056, %v3561
        %v3563 = vpop.f32.mrb[0].mxu0
        %v3564 = vadd.f32 %v2058, %v3563
        %v3565 = vpop.f32.mrb[0].mxu0
        %v3566 = vadd.f32 %v2060, %v3565
        %v3567 = vpop.f32.mrb[0].mxu0
        %v3568 = vadd.f32 %v2062, %v3567
        %3569 = vmatprep.mubr.bf16.mxu0 %v1518
        %3570 = vmatmul.mubr.bf16.gmra.mrb[0].mxu0 %v1517
        %v3571 = vpop.f32.mrb[0].mxu0
        %v3572 = vadd.f32 %v2066, %v3571
        %v3573 = vpop.f32.mrb[0].mxu0
        %v3574 = vadd.f32 %v2068, %v3573
        %v3575 = vpop.f32.mrb[0].mxu0
        %v3576 = vadd.f32 %v2070, %v3575
        %v3577 = vpop.f32.mrb[0].mxu0
        %v3578 = vadd.f32 %v2072, %v3577
        %3579 = vmatprep.mubr.bf16.mxu0 %v1526
        %3580 = vmatmul.mubr.bf16.gmra.mrb[0].mxu0 %v1525
        %v3581 = vpop.f32.mrb[0].mxu0
        %v3582 = vadd.f32 %v2076, %v3581
        %v3583 = vpop.f32.mrb[0].mxu0
        %v3584 = vadd.f32 %v2078, %v3583
        %v3585 = vpop.f32.mrb[0].mxu0
        %v3586 = vadd.f32 %v2080, %v3585
        %v3587 = vpop.f32.mrb[0].mxu0
        %v3588 = vadd.f32 %v2082, %v3587
        %3589 = vmatprep.mubr.bf16.mxu0 %v1534
        %3590 = vmatmul.mubr.bf16.gmra.mrb[0].mxu0 %v1533
        %v3591 = vpop.f32.mrb[0].mxu0
        %v3592 = vadd.f32 %v2086, %v3591
        %v3593 = vpop.f32.mrb[0].mxu0
        %v3594 = vadd.f32 %v2088, %v3593
        %v3595 = vpop.f32.mrb[0].mxu0
        %v3596 = vadd.f32 %v2090, %v3595
        %v3597 = vpop.f32.mrb[0].mxu0
        %v3598 = vadd.f32 %v2092, %v3597
        %3599 = vmatprep.mubr.bf16.mxu0 %v1542
        %3600 = vmatmul.mubr.bf16.gmra.mrb[0].mxu0 %v1541
        %v3601 = vpop.f32.mrb[0].mxu0
        %v3602 = vadd.f32 %v2096, %v3601
        %v3603 = vpop.f32.mrb[0].mxu0
        %v3604 = vadd.f32 %v2098, %v3603
        %v3605 = vpop.f32.mrb[0].mxu0
        %v3606 = vadd.f32 %v2100, %v3605
        %v3607 = vpop.f32.mrb[0].mxu0
        %v3608 = vadd.f32 %v2102, %v3607
        %3609 = vmatprep.mubr.bf16.mxu0 %v1550
        %3610 = vmatmul.mubr.bf16.gmra.mrb[0].mxu0 %v1549
        %v3611 = vpop.f32.mrb[0].mxu0
        %v3612 = vadd.f32 %v2106, %v3611
        %v3613 = vpop.f32.mrb[0].mxu0
        %v3614 = vadd.f32 %v2108, %v3613
        %v3615 = vpop.f32.mrb[0].mxu0
        %v3616 = vadd.f32 %v2110, %v3615
        %v3617 = vpop.f32.mrb[0].mxu0
        %v3618 = vadd.f32 %v2112, %v3617
        %3619 = vmatprep.mubr.bf16.mxu0 %v1558
        %3620 = vmatmul.mubr.bf16.gmra.mrb[0].mxu0 %v1557
        %v3621 = vpop.f32.mrb[0].mxu0
        %v3622 = vadd.f32 %v2116, %v3621
        %v3623 = vpop.f32.mrb[0].mxu0
        %v3624 = vadd.f32 %v2118, %v3623
        %v3625 = vpop.f32.mrb[0].mxu0
        %v3626 = vadd.f32 %v2120, %v3625
        %v3627 = vpop.f32.mrb[0].mxu0
        %v3628 = vadd.f32 %v2122, %v3627
        %3629 = vmatprep.mubr.bf16.mxu0 %v1566
        %3630 = vmatmul.mubr.bf16.gmra.mrb[0].mxu0 %v1565
        %v3631 = vpop.f32.mrb[0].mxu0
        %v3632 = vadd.f32 %v2126, %v3631
        %v3633 = vpop.f32.mrb[0].mxu0
        %v3634 = vadd.f32 %v2128, %v3633
        %v3635 = vpop.f32.mrb[0].mxu0
        %v3636 = vadd.f32 %v2130, %v3635
        %v3637 = vpop.f32.mrb[0].mxu0
        %v3638 = vadd.f32 %v2132, %v3637
        %3639 = vdwg.mxu0
        %3640 = vmatprep.subr.bf16.mxu0 %v3080
        %3641 = vmatpush1.bf16.msra.mxu0 %v3079
        %3642 = vmatprep.subr.bf16.mxu0 %v3084
        %3643 = vmatpush1.bf16.msra.mxu0 %v3083
        %3644 = vmatprep.subr.bf16.mxu0 %v3088
        %3645 = vmatpush1.bf16.msra.mxu0 %v3087
        %3646 = vmatprep.subr.bf16.mxu0 %v3092
        %3647 = vmatpush1.bf16.msra.mxu0 %v3091
        %3648 = vmatprep.subr.bf16.mxu0 %v3096
        %3649 = vmatpush1.bf16.msra.mxu0 %v3095
        %3650 = vmatprep.subr.bf16.mxu0 %v3100
        %3651 = vmatpush1.bf16.msra.mxu0 %v3099
        %3652 = vmatprep.subr.bf16.mxu0 %v3104
        %3653 = vmatpush1.bf16.msra.mxu0 %v3103
        %3654 = vmatprep.subr.bf16.mxu0 %v3108
        %3655 = vmatpush1.bf16.msra.mxu0 %v3107
        %3656 = vmatprep.subr.bf16.mxu0 %v3112
        %3657 = vmatpush1.bf16.msra.mxu0 %v3111
        %3658 = vmatprep.subr.bf16.mxu0 %v3116
        %3659 = vmatpush1.bf16.msra.mxu0 %v3115
        %3660 = vmatprep.subr.bf16.mxu0 %v3120
        %3661 = vmatpush1.bf16.msra.mxu0 %v3119
        %3662 = vmatprep.subr.bf16.mxu0 %v3124
        %3663 = vmatpush1.bf16.msra.mxu0 %v3123
        %3664 = vmatprep.subr.bf16.mxu0 %v3128
        %3665 = vmatpush1.bf16.msra.mxu0 %v3127
        %3666 = vmatprep.subr.bf16.mxu0 %v3132
        %3667 = vmatpush1.bf16.msra.mxu0 %v3131
        %3668 = vmatprep.subr.bf16.mxu0 %v3136
        %3669 = vmatpush1.bf16.msra.mxu0 %v3135
        %3670 = vmatprep.subr.bf16.mxu0 %v3140
        %3671 = vmatpush1.bf16.msra.mxu0 %v3139
        %3672 = vmatprep.mubr.bf16.mxu0 %v1512
        %3673 = vmatmul.mubr.bf16.gmra.mrb[0].mxu0 %v1511
        %v3674 = vpop.f32.mrb[0].mxu0
        %v3675 = vadd.f32 %v3562, %v3674
        %v3676 = vpop.f32.mrb[0].mxu0
        %v3677 = vadd.f32 %v3564, %v3676
        %v3678 = vpop.f32.mrb[0].mxu0
        %v3679 = vadd.f32 %v3566, %v3678
        %v3680 = vpop.f32.mrb[0].mxu0
        %v3681 = vadd.f32 %v3568, %v3680
        %3682 = vmatprep.mubr.bf16.mxu0 %v1520
        %3683 = vmatmul.mubr.bf16.gmra.mrb[0].mxu0 %v1519
        %v3684 = vpop.f32.mrb[0].mxu0
        %v3685 = vadd.f32 %v3572, %v3684
        %v3686 = vpop.f32.mrb[0].mxu0
        %v3687 = vadd.f32 %v3574, %v3686
        %v3688 = vpop.f32.mrb[0].mxu0
        %v3689 = vadd.f32 %v3576, %v3688
        %v3690 = vpop.f32.mrb[0].mxu0
        %v3691 = vadd.f32 %v3578, %v3690
        %3692 = vmatprep.mubr.bf16.mxu0 %v1528
        %3693 = vmatmul.mubr.bf16.gmra.mrb[0].mxu0 %v1527
        %v3694 = vpop.f32.mrb[0].mxu0
        %v3695 = vadd.f32 %v3582, %v3694
        %v3696 = vpop.f32.mrb[0].mxu0
        %v3697 = vadd.f32 %v3584, %v3696
        %v3698 = vpop.f32.mrb[0].mxu0
        %v3699 = vadd.f32 %v3586, %v3698
        %v3700 = vpop.f32.mrb[0].mxu0
        %v3701 = vadd.f32 %v3588, %v3700
        %3702 = vmatprep.mubr.bf16.mxu0 %v1536
        %3703 = vmatmul.mubr.bf16.gmra.mrb[0].mxu0 %v1535
        %v3704 = vpop.f32.mrb[0].mxu0
        %v3705 = vadd.f32 %v3592, %v3704
        %v3706 = vpop.f32.mrb[0].mxu0
        %v3707 = vadd.f32 %v3594, %v3706
        %v3708 = vpop.f32.mrb[0].mxu0
        %v3709 = vadd.f32 %v3596, %v3708
        %v3710 = vpop.f32.mrb[0].mxu0
        %v3711 = vadd.f32 %v3598, %v3710
        %3712 = vmatprep.mubr.bf16.mxu0 %v1544
        %3713 = vmatmul.mubr.bf16.gmra.mrb[0].mxu0 %v1543
        %v3714 = vpop.f32.mrb[0].mxu0
        %v3715 = vadd.f32 %v3602, %v3714
        %v3716 = vpop.f32.mrb[0].mxu0
        %v3717 = vadd.f32 %v3604, %v3716
        %v3718 = vpop.f32.mrb[0].mxu0
        %v3719 = vadd.f32 %v3606, %v3718
        %v3720 = vpop.f32.mrb[0].mxu0
        %v3721 = vadd.f32 %v3608, %v3720
        %3722 = vmatprep.mubr.bf16.mxu0 %v1552
        %3723 = vmatmul.mubr.bf16.gmra.mrb[0].mxu0 %v1551
        %v3724 = vpop.f32.mrb[0].mxu0
        %v3725 = vadd.f32 %v3612, %v3724
        %v3726 = vpop.f32.mrb[0].mxu0
        %v3727 = vadd.f32 %v3614, %v3726
        %v3728 = vpop.f32.mrb[0].mxu0
        %v3729 = vadd.f32 %v3616, %v3728
        %v3730 = vpop.f32.mrb[0].mxu0
        %v3731 = vadd.f32 %v3618, %v3730
        %3732 = vmatprep.mubr.bf16.mxu0 %v1560
        %3733 = vmatmul.mubr.bf16.gmra.mrb[0].mxu0 %v1559
        %v3734 = vpop.f32.mrb[0].mxu0
        %v3735 = vadd.f32 %v3622, %v3734
        %v3736 = vpop.f32.mrb[0].mxu0
        %v3737 = vadd.f32 %v3624, %v3736
        %v3738 = vpop.f32.mrb[0].mxu0
        %v3739 = vadd.f32 %v3626, %v3738
        %v3740 = vpop.f32.mrb[0].mxu0
        %v3741 = vadd.f32 %v3628, %v3740
        %3742 = vmatprep.mubr.bf16.mxu0 %v1568
        %3743 = vmatmul.mubr.bf16.gmra.mrb[0].mxu0 %v1567
        %v3744 = vpop.f32.mrb[0].mxu0
        %v3745 = vadd.f32 %v3632, %v3744
        %v3746 = vpop.f32.mrb[0].mxu0
        %v3747 = vadd.f32 %v3634, %v3746
        %v3748 = vpop.f32.mrb[0].mxu0
        %v3749 = vadd.f32 %v3636, %v3748
        %v3750 = vpop.f32.mrb[0].mxu0
        %v3751 = vadd.f32 %v3638, %v3750
        %3752 = vdwg.mxu0
        %3753 = vmatprep.subr.bf16.mxu0 %v3144
        %3754 = vmatpush1.bf16.msra.mxu0 %v3143
        %3755 = vmatprep.subr.bf16.mxu0 %v3148
        %3756 = vmatpush1.bf16.msra.mxu0 %v3147
        %3757 = vmatprep.subr.bf16.mxu0 %v3152
        %3758 = vmatpush1.bf16.msra.mxu0 %v3151
        %3759 = vmatprep.subr.bf16.mxu0 %v3156
        %3760 = vmatpush1.bf16.msra.mxu0 %v3155
        %3761 = vmatprep.subr.bf16.mxu0 %v3160
        %3762 = vmatpush1.bf16.msra.mxu0 %v3159
        %3763 = vmatprep.subr.bf16.mxu0 %v3164
        %3764 = vmatpush1.bf16.msra.mxu0 %v3163
        %3765 = vmatprep.subr.bf16.mxu0 %v3168
        %3766 = vmatpush1.bf16.msra.mxu0 %v3167
        %3767 = vmatprep.subr.bf16.mxu0 %v3172
        %3768 = vmatpush1.bf16.msra.mxu0 %v3171
        %3769 = vmatprep.subr.bf16.mxu0 %v3176
        %3770 = vmatpush1.bf16.msra.mxu0 %v3175
        %3771 = vmatprep.subr.bf16.mxu0 %v3180
        %3772 = vmatpush1.bf16.msra.mxu0 %v3179
        %3773 = vmatprep.subr.bf16.mxu0 %v3184
        %3774 = vmatpush1.bf16.msra.mxu0 %v3183
        %3775 = vmatprep.subr.bf16.mxu0 %v3188
        %3776 = vmatpush1.bf16.msra.mxu0 %v3187
        %3777 = vmatprep.subr.bf16.mxu0 %v3192
        %3778 = vmatpush1.bf16.msra.mxu0 %v3191
        %3779 = vmatprep.subr.bf16.mxu0 %v3196
        %3780 = vmatpush1.bf16.msra.mxu0 %v3195
        %3781 = vmatprep.subr.bf16.mxu0 %v3200
        %3782 = vmatpush1.bf16.msra.mxu0 %v3199
        %3783 = vmatprep.subr.bf16.mxu0 %v3204
        %3784 = vmatpush1.bf16.msra.mxu0 %v3203
        %3785 = vmatprep.mubr.bf16.mxu0 %v1514
        %3786 = vmatmul.mubr.bf16.gmra.mrb[0].mxu0 %v1513
        %v3787 = vpop.f32.mrb[0].mxu0
        %v3788 = vadd.f32 %v3675, %v3787
        %v3789 = vpop.f32.mrb[0].mxu0
        %v3790 = vadd.f32 %v3677, %v3789
        %v3791 = vpop.f32.mrb[0].mxu0
        %v3792 = vadd.f32 %v3679, %v3791
        %v3793 = vpop.f32.mrb[0].mxu0
        %v3794 = vadd.f32 %v3681, %v3793
        %3795 = vmatprep.mubr.bf16.mxu0 %v1522
        %3796 = vmatmul.mubr.bf16.gmra.mrb[0].mxu0 %v1521
        %v3797 = vpop.f32.mrb[0].mxu0
        %v3798 = vadd.f32 %v3685, %v3797
        %v3799 = vpop.f32.mrb[0].mxu0
        %v3800 = vadd.f32 %v3687, %v3799
        %v3801 = vpop.f32.mrb[0].mxu0
        %v3802 = vadd.f32 %v3689, %v3801
        %v3803 = vpop.f32.mrb[0].mxu0
        %v3804 = vadd.f32 %v3691, %v3803
        %3805 = vmatprep.mubr.bf16.mxu0 %v1530
        %3806 = vmatmul.mubr.bf16.gmra.mrb[0].mxu0 %v1529
        %v3807 = vpop.f32.mrb[0].mxu0
        %v3808 = vadd.f32 %v3695, %v3807
        %v3809 = vpop.f32.mrb[0].mxu0
        %v3810 = vadd.f32 %v3697, %v3809
        %v3811 = vpop.f32.mrb[0].mxu0
        %v3812 = vadd.f32 %v3699, %v3811
        %v3813 = vpop.f32.mrb[0].mxu0
        %v3814 = vadd.f32 %v3701, %v3813
        %3815 = vmatprep.mubr.bf16.mxu0 %v1538
        %3816 = vmatmul.mubr.bf16.gmra.mrb[0].mxu0 %v1537
        %v3817 = vpop.f32.mrb[0].mxu0
        %v3818 = vadd.f32 %v3705, %v3817
        %v3819 = vpop.f32.mrb[0].mxu0
        %v3820 = vadd.f32 %v3707, %v3819
        %v3821 = vpop.f32.mrb[0].mxu0
        %v3822 = vadd.f32 %v3709, %v3821
        %v3823 = vpop.f32.mrb[0].mxu0
        %v3824 = vadd.f32 %v3711, %v3823
        %3825 = vmatprep.mubr.bf16.mxu0 %v1546
        %3826 = vmatmul.mubr.bf16.gmra.mrb[0].mxu0 %v1545
        %v3827 = vpop.f32.mrb[0].mxu0
        %v3828 = vadd.f32 %v3715, %v3827
        %v3829 = vpop.f32.mrb[0].mxu0
        %v3830 = vadd.f32 %v3717, %v3829
        %v3831 = vpop.f32.mrb[0].mxu0
        %v3832 = vadd.f32 %v3719, %v3831
        %v3833 = vpop.f32.mrb[0].mxu0
        %v3834 = vadd.f32 %v3721, %v3833
        %3835 = vmatprep.mubr.bf16.mxu0 %v1554
        %3836 = vmatmul.mubr.bf16.gmra.mrb[0].mxu0 %v1553
        %v3837 = vpop.f32.mrb[0].mxu0
        %v3838 = vadd.f32 %v3725, %v3837
        %v3839 = vpop.f32.mrb[0].mxu0
        %v3840 = vadd.f32 %v3727, %v3839
        %v3841 = vpop.f32.mrb[0].mxu0
        %v3842 = vadd.f32 %v3729, %v3841
        %v3843 = vpop.f32.mrb[0].mxu0
        %v3844 = vadd.f32 %v3731, %v3843
        %3845 = vmatprep.mubr.bf16.mxu0 %v1562
        %3846 = vmatmul.mubr.bf16.gmra.mrb[0].mxu0 %v1561
        %v3847 = vpop.f32.mrb[0].mxu0
        %v3848 = vadd.f32 %v3735, %v3847
        %v3849 = vpop.f32.mrb[0].mxu0
        %v3850 = vadd.f32 %v3737, %v3849
        %v3851 = vpop.f32.mrb[0].mxu0
        %v3852 = vadd.f32 %v3739, %v3851
        %v3853 = vpop.f32.mrb[0].mxu0
        %v3854 = vadd.f32 %v3741, %v3853
        %3855 = vmatprep.mubr.bf16.mxu0 %v1570
        %3856 = vmatmul.mubr.bf16.gmra.mrb[0].mxu0 %v1569
        %v3857 = vpop.f32.mrb[0].mxu0
        %v3858 = vadd.f32 %v3745, %v3857
        %v3859 = vpop.f32.mrb[0].mxu0
        %v3860 = vadd.f32 %v3747, %v3859
        %v3861 = vpop.f32.mrb[0].mxu0
        %v3862 = vadd.f32 %v3749, %v3861
        %v3863 = vpop.f32.mrb[0].mxu0
        %v3864 = vadd.f32 %v3751, %v3863
        %3865 = vdwg.mxu0
        %3866 = vmatprep.subr.bf16.mxu0 %v3208
        %3867 = vmatpush1.bf16.msra.mxu0 %v3207
        %3868 = vmatprep.subr.bf16.mxu0 %v3212
        %3869 = vmatpush1.bf16.msra.mxu0 %v3211
        %3870 = vmatprep.subr.bf16.mxu0 %v3216
        %3871 = vmatpush1.bf16.msra.mxu0 %v3215
        %3872 = vmatprep.subr.bf16.mxu0 %v3220
        %3873 = vmatpush1.bf16.msra.mxu0 %v3219
        %3874 = vmatprep.subr.bf16.mxu0 %v3224
        %3875 = vmatpush1.bf16.msra.mxu0 %v3223
        %3876 = vmatprep.subr.bf16.mxu0 %v3228
        %3877 = vmatpush1.bf16.msra.mxu0 %v3227
        %3878 = vmatprep.subr.bf16.mxu0 %v3232
        %3879 = vmatpush1.bf16.msra.mxu0 %v3231
        %3880 = vmatprep.subr.bf16.mxu0 %v3236
        %3881 = vmatpush1.bf16.msra.mxu0 %v3235
        %3882 = vmatprep.subr.bf16.mxu0 %v3240
        %3883 = vmatpush1.bf16.msra.mxu0 %v3239
        %3884 = vmatprep.subr.bf16.mxu0 %v3244
        %3885 = vmatpush1.bf16.msra.mxu0 %v3243
        %3886 = vmatprep.subr.bf16.mxu0 %v3248
        %3887 = vmatpush1.bf16.msra.mxu0 %v3247
        %3888 = vmatprep.subr.bf16.mxu0 %v3252
        %3889 = vmatpush1.bf16.msra.mxu0 %v3251
        %3890 = vmatprep.subr.bf16.mxu0 %v3256
        %3891 = vmatpush1.bf16.msra.mxu0 %v3255
        %3892 = vmatprep.subr.bf16.mxu0 %v3260
        %3893 = vmatpush1.bf16.msra.mxu0 %v3259
        %3894 = vmatprep.subr.bf16.mxu0 %v3264
        %3895 = vmatpush1.bf16.msra.mxu0 %v3263
        %3896 = vmatprep.subr.bf16.mxu0 %v3268
        %3897 = vmatpush1.bf16.msra.mxu0 %v3267
        %3898 = vmatprep.mubr.bf16.mxu0 %v1516
        %3899 = vmatmul.mubr.bf16.gmra.mrb[0].mxu0 %v1515
        %v3900 = vpop.f32.mrb[0].mxu0
        %v3901 = vadd.f32 %v3788, %v3900
        %v3902 = vpop.f32.mrb[0].mxu0
        %v3903 = vadd.f32 %v3790, %v3902
        %v3904 = vpop.f32.mrb[0].mxu0
        %v3905 = vadd.f32 %v3792, %v3904
        %v3906 = vpop.f32.mrb[0].mxu0
        %v3907 = vadd.f32 %v3794, %v3906
        %3908 = vmatprep.mubr.bf16.mxu0 %v1524
        %3909 = vmatmul.mubr.bf16.gmra.mrb[0].mxu0 %v1523
        %v3910 = vpop.f32.mrb[0].mxu0
        %v3911 = vadd.f32 %v3798, %v3910
        %v3912 = vpop.f32.mrb[0].mxu0
        %v3913 = vadd.f32 %v3800, %v3912
        %v3914 = vpop.f32.mrb[0].mxu0
        %v3915 = vadd.f32 %v3802, %v3914
        %v3916 = vpop.f32.mrb[0].mxu0
        %v3917 = vadd.f32 %v3804, %v3916
        %3918 = vmatprep.mubr.bf16.mxu0 %v1532
        %3919 = vmatmul.mubr.bf16.gmra.mrb[0].mxu0 %v1531
        %v3920 = vpop.f32.mrb[0].mxu0
        %v3921 = vadd.f32 %v3808, %v3920
        %v3922 = vpop.f32.mrb[0].mxu0
        %v3923 = vadd.f32 %v3810, %v3922
        %v3924 = vpop.f32.mrb[0].mxu0
        %v3925 = vadd.f32 %v3812, %v3924
        %v3926 = vpop.f32.mrb[0].mxu0
        %v3927 = vadd.f32 %v3814, %v3926
        %3928 = vmatprep.mubr.bf16.mxu0 %v1540
        %3929 = vmatmul.mubr.bf16.gmra.mrb[0].mxu0 %v1539
        %v3930 = vpop.f32.mrb[0].mxu0
        %v3931 = vadd.f32 %v3818, %v3930
        %v3932 = vpop.f32.mrb[0].mxu0
        %v3933 = vadd.f32 %v3820, %v3932
        %v3934 = vpop.f32.mrb[0].mxu0
        %v3935 = vadd.f32 %v3822, %v3934
        %v3936 = vpop.f32.mrb[0].mxu0
        %v3937 = vadd.f32 %v3824, %v3936
        %3938 = vmatprep.mubr.bf16.mxu0 %v1548
        %3939 = vmatmul.mubr.bf16.gmra.mrb[0].mxu0 %v1547
        %v3940 = vpop.f32.mrb[0].mxu0
        %v3941 = vadd.f32 %v3828, %v3940
        %v3942 = vpop.f32.mrb[0].mxu0
        %v3943 = vadd.f32 %v3830, %v3942
        %v3944 = vpop.f32.mrb[0].mxu0
        %v3945 = vadd.f32 %v3832, %v3944
        %v3946 = vpop.f32.mrb[0].mxu0
        %v3947 = vadd.f32 %v3834, %v3946
        %3948 = vmatprep.mubr.bf16.mxu0 %v1556
        %3949 = vmatmul.mubr.bf16.gmra.mrb[0].mxu0 %v1555
        %v3950 = vpop.f32.mrb[0].mxu0
        %v3951 = vadd.f32 %v3838, %v3950
        %v3952 = vpop.f32.mrb[0].mxu0
        %v3953 = vadd.f32 %v3840, %v3952
        %v3954 = vpop.f32.mrb[0].mxu0
        %v3955 = vadd.f32 %v3842, %v3954
        %v3956 = vpop.f32.mrb[0].mxu0
        %v3957 = vadd.f32 %v3844, %v3956
        %3958 = vmatprep.mubr.bf16.mxu0 %v1564
        %3959 = vmatmul.mubr.bf16.gmra.mrb[0].mxu0 %v1563
        %v3960 = vpop.f32.mrb[0].mxu0
        %v3961 = vadd.f32 %v3848, %v3960
        %v3962 = vpop.f32.mrb[0].mxu0
        %v3963 = vadd.f32 %v3850, %v3962
        %v3964 = vpop.f32.mrb[0].mxu0
        %v3965 = vadd.f32 %v3852, %v3964
        %v3966 = vpop.f32.mrb[0].mxu0
        %v3967 = vadd.f32 %v3854, %v3966
        %3968 = vmatprep.mubr.bf16.mxu0 %v1572
        %3969 = vmatmul.mubr.bf16.gmra.mrb[0].mxu0 %v1571
        %v3970 = vpop.f32.mrb[0].mxu0
        %v3971 = vadd.f32 %v3858, %v3970
        %v3972 = vpop.f32.mrb[0].mxu0
        %v3973 = vadd.f32 %v3860, %v3972
        %v3974 = vpop.f32.mrb[0].mxu0
        %v3975 = vadd.f32 %v3862, %v3974
        %v3976 = vpop.f32.mrb[0].mxu0
        %v3977 = vadd.f32 %v3864, %v3976
        %3978 = vdwg.mxu0
        %3979 = vmatprep.subr.bf16.mxu0 %v3018
        %3980 = vmatpush1.bf16.msra.mxu0 %v3017
        %3981 = vmatprep.subr.bf16.mxu0 %v3022
        %3982 = vmatpush1.bf16.msra.mxu0 %v3021
        %3983 = vmatprep.subr.bf16.mxu0 %v3026
        %3984 = vmatpush1.bf16.msra.mxu0 %v3025
        %3985 = vmatprep.subr.bf16.mxu0 %v3030
        %3986 = vmatpush1.bf16.msra.mxu0 %v3029
        %3987 = vmatprep.subr.bf16.mxu0 %v3034
        %3988 = vmatpush1.bf16.msra.mxu0 %v3033
        %3989 = vmatprep.subr.bf16.mxu0 %v3038
        %3990 = vmatpush1.bf16.msra.mxu0 %v3037
        %3991 = vmatprep.subr.bf16.mxu0 %v3042
        %3992 = vmatpush1.bf16.msra.mxu0 %v3041
        %3993 = vmatprep.subr.bf16.mxu0 %v3046
        %3994 = vmatpush1.bf16.msra.mxu0 %v3045
        %3995 = vmatprep.subr.bf16.mxu0 %v3050
        %3996 = vmatpush1.bf16.msra.mxu0 %v3049
        %3997 = vmatprep.subr.bf16.mxu0 %v3054
        %3998 = vmatpush1.bf16.msra.mxu0 %v3053
        %3999 = vmatprep.subr.bf16.mxu0 %v3058
        %4000 = vmatpush1.bf16.msra.mxu0 %v3057
        %4001 = vmatprep.subr.bf16.mxu0 %v3062
        %4002 = vmatpush1.bf16.msra.mxu0 %v3061
        %4003 = vmatprep.subr.bf16.mxu0 %v3066
        %4004 = vmatpush1.bf16.msra.mxu0 %v3065
        %4005 = vmatprep.subr.bf16.mxu0 %v3070
        %4006 = vmatpush1.bf16.msra.mxu0 %v3069
        %4007 = vmatprep.subr.bf16.mxu0 %v3074
        %4008 = vmatpush1.bf16.msra.mxu0 %v3073
        %4009 = vmatprep.subr.bf16.mxu0 %v3078
        %4010 = vmatpush1.bf16.msra.mxu0 %v3077
        %4011 = vmatprep.mubr.bf16.mxu0 %v1510
        %4012 = vmatmul.mubr.bf16.gmra.mrb[0].mxu0 %v1509
        %v4013 = vpop.f32.mrb[0].mxu0
        %v4014 = vadd.f32 %v2169, %v4013
        %v4015 = vpop.f32.mrb[0].mxu0
        %v4016 = vadd.f32 %v2171, %v4015
        %v4017 = vpop.f32.mrb[0].mxu0
        %v4018 = vadd.f32 %v2173, %v4017
        %v4019 = vpop.f32.mrb[0].mxu0
        %v4020 = vadd.f32 %v2175, %v4019
        %4021 = vmatprep.mubr.bf16.mxu0 %v1518
        %4022 = vmatmul.mubr.bf16.gmra.mrb[0].mxu0 %v1517
        %v4023 = vpop.f32.mrb[0].mxu0
        %v4024 = vadd.f32 %v2179, %v4023
        %v4025 = vpop.f32.mrb[0].mxu0
        %v4026 = vadd.f32 %v2181, %v4025
        %v4027 = vpop.f32.mrb[0].mxu0
        %v4028 = vadd.f32 %v2183, %v4027
        %v4029 = vpop.f32.mrb[0].mxu0
        %v4030 = vadd.f32 %v2185, %v4029
        %4031 = vmatprep.mubr.bf16.mxu0 %v1526
        %4032 = vmatmul.mubr.bf16.gmra.mrb[0].mxu0 %v1525
        %v4033 = vpop.f32.mrb[0].mxu0
        %v4034 = vadd.f32 %v2189, %v4033
        %v4035 = vpop.f32.mrb[0].mxu0
        %v4036 = vadd.f32 %v2191, %v4035
        %v4037 = vpop.f32.mrb[0].mxu0
        %v4038 = vadd.f32 %v2193, %v4037
        %v4039 = vpop.f32.mrb[0].mxu0
        %v4040 = vadd.f32 %v2195, %v4039
        %4041 = vmatprep.mubr.bf16.mxu0 %v1534
        %4042 = vmatmul.mubr.bf16.gmra.mrb[0].mxu0 %v1533
        %v4043 = vpop.f32.mrb[0].mxu0
        %v4044 = vadd.f32 %v2199, %v4043
        %v4045 = vpop.f32.mrb[0].mxu0
        %v4046 = vadd.f32 %v2201, %v4045
        %v4047 = vpop.f32.mrb[0].mxu0
        %v4048 = vadd.f32 %v2203, %v4047
        %v4049 = vpop.f32.mrb[0].mxu0
        %v4050 = vadd.f32 %v2205, %v4049
        %4051 = vmatprep.mubr.bf16.mxu0 %v1542
        %4052 = vmatmul.mubr.bf16.gmra.mrb[0].mxu0 %v1541
        %v4053 = vpop.f32.mrb[0].mxu0
        %v4054 = vadd.f32 %v2209, %v4053
        %v4055 = vpop.f32.mrb[0].mxu0
        %v4056 = vadd.f32 %v2211, %v4055
        %v4057 = vpop.f32.mrb[0].mxu0
        %v4058 = vadd.f32 %v2213, %v4057
        %v4059 = vpop.f32.mrb[0].mxu0
        %v4060 = vadd.f32 %v2215, %v4059
        %4061 = vmatprep.mubr.bf16.mxu0 %v1550
        %4062 = vmatmul.mubr.bf16.gmra.mrb[0].mxu0 %v1549
        %v4063 = vpop.f32.mrb[0].mxu0
        %v4064 = vadd.f32 %v2219, %v4063
        %v4065 = vpop.f32.mrb[0].mxu0
        %v4066 = vadd.f32 %v2221, %v4065
        %v4067 = vpop.f32.mrb[0].mxu0
        %v4068 = vadd.f32 %v2223, %v4067
        %v4069 = vpop.f32.mrb[0].mxu0
        %v4070 = vadd.f32 %v2225, %v4069
        %4071 = vmatprep.mubr.bf16.mxu0 %v1558
        %4072 = vmatmul.mubr.bf16.gmra.mrb[0].mxu0 %v1557
        %v4073 = vpop.f32.mrb[0].mxu0
        %v4074 = vadd.f32 %v2229, %v4073
        %v4075 = vpop.f32.mrb[0].mxu0
        %v4076 = vadd.f32 %v2231, %v4075
        %v4077 = vpop.f32.mrb[0].mxu0
        %v4078 = vadd.f32 %v2233, %v4077
        %v4079 = vpop.f32.mrb[0].mxu0
        %v4080 = vadd.f32 %v2235, %v4079
        %4081 = vmatprep.mubr.bf16.mxu0 %v1566
        %4082 = vmatmul.mubr.bf16.gmra.mrb[0].mxu0 %v1565
        %v4083 = vpop.f32.mrb[0].mxu0
        %v4084 = vadd.f32 %v2239, %v4083
        %v4085 = vpop.f32.mrb[0].mxu0
        %v4086 = vadd.f32 %v2241, %v4085
        %v4087 = vpop.f32.mrb[0].mxu0
        %v4088 = vadd.f32 %v2243, %v4087
        %v4089 = vpop.f32.mrb[0].mxu0
        %v4090 = vadd.f32 %v2245, %v4089
        %4091 = vdwg.mxu0
        %4092 = vmatprep.subr.bf16.mxu0 %v3082
        %4093 = vmatpush1.bf16.msra.mxu0 %v3081
        %4094 = vmatprep.subr.bf16.mxu0 %v3086
        %4095 = vmatpush1.bf16.msra.mxu0 %v3085
        %4096 = vmatprep.subr.bf16.mxu0 %v3090
        %4097 = vmatpush1.bf16.msra.mxu0 %v3089
        %4098 = vmatprep.subr.bf16.mxu0 %v3094
        %4099 = vmatpush1.bf16.msra.mxu0 %v3093
        %4100 = vmatprep.subr.bf16.mxu0 %v3098
        %4101 = vmatpush1.bf16.msra.mxu0 %v3097
        %4102 = vmatprep.subr.bf16.mxu0 %v3102
        %4103 = vmatpush1.bf16.msra.mxu0 %v3101
        %4104 = vmatprep.subr.bf16.mxu0 %v3106
        %4105 = vmatpush1.bf16.msra.mxu0 %v3105
        %4106 = vmatprep.subr.bf16.mxu0 %v3110
        %4107 = vmatpush1.bf16.msra.mxu0 %v3109
        %4108 = vmatprep.subr.bf16.mxu0 %v3114
        %4109 = vmatpush1.bf16.msra.mxu0 %v3113
        %4110 = vmatprep.subr.bf16.mxu0 %v3118
        %4111 = vmatpush1.bf16.msra.mxu0 %v3117
        %4112 = vmatprep.subr.bf16.mxu0 %v3122
        %4113 = vmatpush1.bf16.msra.mxu0 %v3121
        %4114 = vmatprep.subr.bf16.mxu0 %v3126
        %4115 = vmatpush1.bf16.msra.mxu0 %v3125
        %4116 = vmatprep.subr.bf16.mxu0 %v3130
        %4117 = vmatpush1.bf16.msra.mxu0 %v3129
        %4118 = vmatprep.subr.bf16.mxu0 %v3134
        %4119 = vmatpush1.bf16.msra.mxu0 %v3133
        %4120 = vmatprep.subr.bf16.mxu0 %v3138
        %4121 = vmatpush1.bf16.msra.mxu0 %v3137
        %4122 = vmatprep.subr.bf16.mxu0 %v3142
        %4123 = vmatpush1.bf16.msra.mxu0 %v3141
        %4124 = vmatprep.mubr.bf16.mxu0 %v1512
        %4125 = vmatmul.mubr.bf16.gmra.mrb[0].mxu0 %v1511
        %v4126 = vpop.f32.mrb[0].mxu0
        %v4127 = vadd.f32 %v4014, %v4126
        %v4128 = vpop.f32.mrb[0].mxu0
        %v4129 = vadd.f32 %v4016, %v4128
        %v4130 = vpop.f32.mrb[0].mxu0
        %v4131 = vadd.f32 %v4018, %v4130
        %v4132 = vpop.f32.mrb[0].mxu0
        %v4133 = vadd.f32 %v4020, %v4132
        %4134 = vmatprep.mubr.bf16.mxu0 %v1520
        %4135 = vmatmul.mubr.bf16.gmra.mrb[0].mxu0 %v1519
        %v4136 = vpop.f32.mrb[0].mxu0
        %v4137 = vadd.f32 %v4024, %v4136
        %v4138 = vpop.f32.mrb[0].mxu0
        %v4139 = vadd.f32 %v4026, %v4138
        %v4140 = vpop.f32.mrb[0].mxu0
        %v4141 = vadd.f32 %v4028, %v4140
        %v4142 = vpop.f32.mrb[0].mxu0
        %v4143 = vadd.f32 %v4030, %v4142
        %4144 = vmatprep.mubr.bf16.mxu0 %v1528
        %4145 = vmatmul.mubr.bf16.gmra.mrb[0].mxu0 %v1527
        %v4146 = vpop.f32.mrb[0].mxu0
        %v4147 = vadd.f32 %v4034, %v4146
        %v4148 = vpop.f32.mrb[0].mxu0
        %v4149 = vadd.f32 %v4036, %v4148
        %v4150 = vpop.f32.mrb[0].mxu0
        %v4151 = vadd.f32 %v4038, %v4150
        %v4152 = vpop.f32.mrb[0].mxu0
        %v4153 = vadd.f32 %v4040, %v4152
        %4154 = vmatprep.mubr.bf16.mxu0 %v1536
        %4155 = vmatmul.mubr.bf16.gmra.mrb[0].mxu0 %v1535
        %v4156 = vpop.f32.mrb[0].mxu0
        %v4157 = vadd.f32 %v4044, %v4156
        %v4158 = vpop.f32.mrb[0].mxu0
        %v4159 = vadd.f32 %v4046, %v4158
        %v4160 = vpop.f32.mrb[0].mxu0
        %v4161 = vadd.f32 %v4048, %v4160
        %v4162 = vpop.f32.mrb[0].mxu0
        %v4163 = vadd.f32 %v4050, %v4162
        %4164 = vmatprep.mubr.bf16.mxu0 %v1544
        %4165 = vmatmul.mubr.bf16.gmra.mrb[0].mxu0 %v1543
        %v4166 = vpop.f32.mrb[0].mxu0
        %v4167 = vadd.f32 %v4054, %v4166
        %v4168 = vpop.f32.mrb[0].mxu0
        %v4169 = vadd.f32 %v4056, %v4168
        %v4170 = vpop.f32.mrb[0].mxu0
        %v4171 = vadd.f32 %v4058, %v4170
        %v4172 = vpop.f32.mrb[0].mxu0
        %v4173 = vadd.f32 %v4060, %v4172
        %4174 = vmatprep.mubr.bf16.mxu0 %v1552
        %4175 = vmatmul.mubr.bf16.gmra.mrb[0].mxu0 %v1551
        %v4176 = vpop.f32.mrb[0].mxu0
        %v4177 = vadd.f32 %v4064, %v4176
        %v4178 = vpop.f32.mrb[0].mxu0
        %v4179 = vadd.f32 %v4066, %v4178
        %v4180 = vpop.f32.mrb[0].mxu0
        %v4181 = vadd.f32 %v4068, %v4180
        %v4182 = vpop.f32.mrb[0].mxu0
        %v4183 = vadd.f32 %v4070, %v4182
        %4184 = vmatprep.mubr.bf16.mxu0 %v1560
        %4185 = vmatmul.mubr.bf16.gmra.mrb[0].mxu0 %v1559
        %v4186 = vpop.f32.mrb[0].mxu0
        %v4187 = vadd.f32 %v4074, %v4186
        %v4188 = vpop.f32.mrb[0].mxu0
        %v4189 = vadd.f32 %v4076, %v4188
        %v4190 = vpop.f32.mrb[0].mxu0
        %v4191 = vadd.f32 %v4078, %v4190
        %v4192 = vpop.f32.mrb[0].mxu0
        %v4193 = vadd.f32 %v4080, %v4192
        %4194 = vmatprep.mubr.bf16.mxu0 %v1568
        %4195 = vmatmul.mubr.bf16.gmra.mrb[0].mxu0 %v1567
        %v4196 = vpop.f32.mrb[0].mxu0
        %v4197 = vadd.f32 %v4084, %v4196
        %v4198 = vpop.f32.mrb[0].mxu0
        %v4199 = vadd.f32 %v4086, %v4198
        %v4200 = vpop.f32.mrb[0].mxu0
        %v4201 = vadd.f32 %v4088, %v4200
        %v4202 = vpop.f32.mrb[0].mxu0
        %v4203 = vadd.f32 %v4090, %v4202
        %4204 = vdwg.mxu0
        %4205 = vmatprep.subr.bf16.mxu0 %v3146
        %4206 = vmatpush1.bf16.msra.mxu0 %v3145
        %4207 = vmatprep.subr.bf16.mxu0 %v3150
        %4208 = vmatpush1.bf16.msra.mxu0 %v3149
        %4209 = vmatprep.subr.bf16.mxu0 %v3154
        %4210 = vmatpush1.bf16.msra.mxu0 %v3153
        %4211 = vmatprep.subr.bf16.mxu0 %v3158
        %4212 = vmatpush1.bf16.msra.mxu0 %v3157
        %4213 = vmatprep.subr.bf16.mxu0 %v3162
        %4214 = vmatpush1.bf16.msra.mxu0 %v3161
        %4215 = vmatprep.subr.bf16.mxu0 %v3166
        %4216 = vmatpush1.bf16.msra.mxu0 %v3165
        %4217 = vmatprep.subr.bf16.mxu0 %v3170
        %4218 = vmatpush1.bf16.msra.mxu0 %v3169
        %4219 = vmatprep.subr.bf16.mxu0 %v3174
        %4220 = vmatpush1.bf16.msra.mxu0 %v3173
        %4221 = vmatprep.subr.bf16.mxu0 %v3178
        %4222 = vmatpush1.bf16.msra.mxu0 %v3177
        %4223 = vmatprep.subr.bf16.mxu0 %v3182
        %4224 = vmatpush1.bf16.msra.mxu0 %v3181
        %4225 = vmatprep.subr.bf16.mxu0 %v3186
        %4226 = vmatpush1.bf16.msra.mxu0 %v3185
        %4227 = vmatprep.subr.bf16.mxu0 %v3190
        %4228 = vmatpush1.bf16.msra.mxu0 %v3189
        %4229 = vmatprep.subr.bf16.mxu0 %v3194
        %4230 = vmatpush1.bf16.msra.mxu0 %v3193
        %4231 = vmatprep.subr.bf16.mxu0 %v3198
        %4232 = vmatpush1.bf16.msra.mxu0 %v3197
        %4233 = vmatprep.subr.bf16.mxu0 %v3202
        %4234 = vmatpush1.bf16.msra.mxu0 %v3201
        %4235 = vmatprep.subr.bf16.mxu0 %v3206
        %4236 = vmatpush1.bf16.msra.mxu0 %v3205
        %4237 = vmatprep.mubr.bf16.mxu0 %v1514
        %4238 = vmatmul.mubr.bf16.gmra.mrb[0].mxu0 %v1513
        %v4239 = vpop.f32.mrb[0].mxu0
        %v4240 = vadd.f32 %v4127, %v4239
        %v4241 = vpop.f32.mrb[0].mxu0
        %v4242 = vadd.f32 %v4129, %v4241
        %v4243 = vpop.f32.mrb[0].mxu0
        %v4244 = vadd.f32 %v4131, %v4243
        %v4245 = vpop.f32.mrb[0].mxu0
        %v4246 = vadd.f32 %v4133, %v4245
        %4247 = vmatprep.mubr.bf16.mxu0 %v1522
        %4248 = vmatmul.mubr.bf16.gmra.mrb[0].mxu0 %v1521
        %v4249 = vpop.f32.mrb[0].mxu0
        %v4250 = vadd.f32 %v4137, %v4249
        %v4251 = vpop.f32.mrb[0].mxu0
        %v4252 = vadd.f32 %v4139, %v4251
        %v4253 = vpop.f32.mrb[0].mxu0
        %v4254 = vadd.f32 %v4141, %v4253
        %v4255 = vpop.f32.mrb[0].mxu0
        %v4256 = vadd.f32 %v4143, %v4255
        %4257 = vmatprep.mubr.bf16.mxu0 %v1530
        %4258 = vmatmul.mubr.bf16.gmra.mrb[0].mxu0 %v1529
        %v4259 = vpop.f32.mrb[0].mxu0
        %v4260 = vadd.f32 %v4147, %v4259
        %v4261 = vpop.f32.mrb[0].mxu0
        %v4262 = vadd.f32 %v4149, %v4261
        %v4263 = vpop.f32.mrb[0].mxu0
        %v4264 = vadd.f32 %v4151, %v4263
        %v4265 = vpop.f32.mrb[0].mxu0
        %v4266 = vadd.f32 %v4153, %v4265
        %4267 = vmatprep.mubr.bf16.mxu0 %v1538
        %4268 = vmatmul.mubr.bf16.gmra.mrb[0].mxu0 %v1537
        %v4269 = vpop.f32.mrb[0].mxu0
        %v4270 = vadd.f32 %v4157, %v4269
        %v4271 = vpop.f32.mrb[0].mxu0
        %v4272 = vadd.f32 %v4159, %v4271
        %v4273 = vpop.f32.mrb[0].mxu0
        %v4274 = vadd.f32 %v4161, %v4273
        %v4275 = vpop.f32.mrb[0].mxu0
        %v4276 = vadd.f32 %v4163, %v4275
        %4277 = vmatprep.mubr.bf16.mxu0 %v1546
        %4278 = vmatmul.mubr.bf16.gmra.mrb[0].mxu0 %v1545
        %v4279 = vpop.f32.mrb[0].mxu0
        %v4280 = vadd.f32 %v4167, %v4279
        %v4281 = vpop.f32.mrb[0].mxu0
        %v4282 = vadd.f32 %v4169, %v4281
        %v4283 = vpop.f32.mrb[0].mxu0
        %v4284 = vadd.f32 %v4171, %v4283
        %v4285 = vpop.f32.mrb[0].mxu0
        %v4286 = vadd.f32 %v4173, %v4285
        %4287 = vmatprep.mubr.bf16.mxu0 %v1554
        %4288 = vmatmul.mubr.bf16.gmra.mrb[0].mxu0 %v1553
        %v4289 = vpop.f32.mrb[0].mxu0
        %v4290 = vadd.f32 %v4177, %v4289
        %v4291 = vpop.f32.mrb[0].mxu0
        %v4292 = vadd.f32 %v4179, %v4291
        %v4293 = vpop.f32.mrb[0].mxu0
        %v4294 = vadd.f32 %v4181, %v4293
        %v4295 = vpop.f32.mrb[0].mxu0
        %v4296 = vadd.f32 %v4183, %v4295
        %4297 = vmatprep.mubr.bf16.mxu0 %v1562
        %4298 = vmatmul.mubr.bf16.gmra.mrb[0].mxu0 %v1561
        %v4299 = vpop.f32.mrb[0].mxu0
        %v4300 = vadd.f32 %v4187, %v4299
        %v4301 = vpop.f32.mrb[0].mxu0
        %v4302 = vadd.f32 %v4189, %v4301
        %v4303 = vpop.f32.mrb[0].mxu0
        %v4304 = vadd.f32 %v4191, %v4303
        %v4305 = vpop.f32.mrb[0].mxu0
        %v4306 = vadd.f32 %v4193, %v4305
        %4307 = vmatprep.mubr.bf16.mxu0 %v1570
        %4308 = vmatmul.mubr.bf16.gmra.mrb[0].mxu0 %v1569
        %v4309 = vpop.f32.mrb[0].mxu0
        %v4310 = vadd.f32 %v4197, %v4309
        %v4311 = vpop.f32.mrb[0].mxu0
        %v4312 = vadd.f32 %v4199, %v4311
        %v4313 = vpop.f32.mrb[0].mxu0
        %v4314 = vadd.f32 %v4201, %v4313
        %v4315 = vpop.f32.mrb[0].mxu0
        %v4316 = vadd.f32 %v4203, %v4315
        %4317 = vdwg.mxu0
        %4318 = vmatprep.subr.bf16.mxu0 %v3210
        %4319 = vmatpush1.bf16.msra.mxu0 %v3209
        %4320 = vmatprep.subr.bf16.mxu0 %v3214
        %4321 = vmatpush1.bf16.msra.mxu0 %v3213
        %4322 = vmatprep.subr.bf16.mxu0 %v3218
        %4323 = vmatpush1.bf16.msra.mxu0 %v3217
        %4324 = vmatprep.subr.bf16.mxu0 %v3222
        %4325 = vmatpush1.bf16.msra.mxu0 %v3221
        %4326 = vmatprep.subr.bf16.mxu0 %v3226
        %4327 = vmatpush1.bf16.msra.mxu0 %v3225
        %4328 = vmatprep.subr.bf16.mxu0 %v3230
        %4329 = vmatpush1.bf16.msra.mxu0 %v3229
        %4330 = vmatprep.subr.bf16.mxu0 %v3234
        %4331 = vmatpush1.bf16.msra.mxu0 %v3233
        %4332 = vmatprep.subr.bf16.mxu0 %v3238
        %4333 = vmatpush1.bf16.msra.mxu0 %v3237
        %4334 = vmatprep.subr.bf16.mxu0 %v3242
        %4335 = vmatpush1.bf16.msra.mxu0 %v3241
        %4336 = vmatprep.subr.bf16.mxu0 %v3246
        %4337 = vmatpush1.bf16.msra.mxu0 %v3245
        %4338 = vmatprep.subr.bf16.mxu0 %v3250
        %4339 = vmatpush1.bf16.msra.mxu0 %v3249
        %4340 = vmatprep.subr.bf16.mxu0 %v3254
        %4341 = vmatpush1.bf16.msra.mxu0 %v3253
        %4342 = vmatprep.subr.bf16.mxu0 %v3258
        %4343 = vmatpush1.bf16.msra.mxu0 %v3257
        %4344 = vmatprep.subr.bf16.mxu0 %v3262
        %4345 = vmatpush1.bf16.msra.mxu0 %v3261
        %4346 = vmatprep.subr.bf16.mxu0 %v3266
        %4347 = vmatpush1.bf16.msra.mxu0 %v3265
        %4348 = vmatprep.subr.bf16.mxu0 %v3270
        %4349 = vmatpush1.bf16.msra.mxu0 %v3269
        %4350 = vmatprep.mubr.bf16.mxu0 %v1516
        %4351 = vmatmul.mubr.bf16.gmra.mrb[0].mxu0 %v1515
        %v4352 = vpop.f32.mrb[0].mxu0
        %v4353 = vadd.f32 %v4240, %v4352
        %v4354 = vpop.f32.mrb[0].mxu0
        %v4355 = vadd.f32 %v4242, %v4354
        %v4356 = vpop.f32.mrb[0].mxu0
        %v4357 = vadd.f32 %v4244, %v4356
        %v4358 = vpop.f32.mrb[0].mxu0
        %v4359 = vadd.f32 %v4246, %v4358
        %4360 = vmatprep.mubr.bf16.mxu0 %v1524
        %4361 = vmatmul.mubr.bf16.gmra.mrb[0].mxu0 %v1523
        %v4362 = vpop.f32.mrb[0].mxu0
        %v4363 = vadd.f32 %v4250, %v4362
        %v4364 = vpop.f32.mrb[0].mxu0
        %v4365 = vadd.f32 %v4252, %v4364
        %v4366 = vpop.f32.mrb[0].mxu0
        %v4367 = vadd.f32 %v4254, %v4366
        %v4368 = vpop.f32.mrb[0].mxu0
        %v4369 = vadd.f32 %v4256, %v4368
        %4370 = vmatprep.mubr.bf16.mxu0 %v1532
        %4371 = vmatmul.mubr.bf16.gmra.mrb[0].mxu0 %v1531
        %v4372 = vpop.f32.mrb[0].mxu0
        %v4373 = vadd.f32 %v4260, %v4372
        %v4374 = vpop.f32.mrb[0].mxu0
        %v4375 = vadd.f32 %v4262, %v4374
        %v4376 = vpop.f32.mrb[0].mxu0
        %v4377 = vadd.f32 %v4264, %v4376
        %v4378 = vpop.f32.mrb[0].mxu0
        %v4379 = vadd.f32 %v4266, %v4378
        %4380 = vmatprep.mubr.bf16.mxu0 %v1540
        %4381 = vmatmul.mubr.bf16.gmra.mrb[0].mxu0 %v1539
        %v4382 = vpop.f32.mrb[0].mxu0
        %v4383 = vadd.f32 %v4270, %v4382
        %v4384 = vpop.f32.mrb[0].mxu0
        %v4385 = vadd.f32 %v4272, %v4384
        %v4386 = vpop.f32.mrb[0].mxu0
        %v4387 = vadd.f32 %v4274, %v4386
        %v4388 = vpop.f32.mrb[0].mxu0
        %v4389 = vadd.f32 %v4276, %v4388
        %4390 = vmatprep.mubr.bf16.mxu0 %v1548
        %4391 = vmatmul.mubr.bf16.gmra.mrb[0].mxu0 %v1547
        %v4392 = vpop.f32.mrb[0].mxu0
        %v4393 = vadd.f32 %v4280, %v4392
        %v4394 = vpop.f32.mrb[0].mxu0
        %v4395 = vadd.f32 %v4282, %v4394
        %v4396 = vpop.f32.mrb[0].mxu0
        %v4397 = vadd.f32 %v4284, %v4396
        %v4398 = vpop.f32.mrb[0].mxu0
        %v4399 = vadd.f32 %v4286, %v4398
        %4400 = vmatprep.mubr.bf16.mxu0 %v1556
        %4401 = vmatmul.mubr.bf16.gmra.mrb[0].mxu0 %v1555
        %v4402 = vpop.f32.mrb[0].mxu0
        %v4403 = vadd.f32 %v4290, %v4402
        %v4404 = vpop.f32.mrb[0].mxu0
        %v4405 = vadd.f32 %v4292, %v4404
        %v4406 = vpop.f32.mrb[0].mxu0
        %v4407 = vadd.f32 %v4294, %v4406
        %v4408 = vpop.f32.mrb[0].mxu0
        %v4409 = vadd.f32 %v4296, %v4408
        %4410 = vmatprep.mubr.bf16.mxu0 %v1564
        %4411 = vmatmul.mubr.bf16.gmra.mrb[0].mxu0 %v1563
        %v4412 = vpop.f32.mrb[0].mxu0
        %v4413 = vadd.f32 %v4300, %v4412
        %v4414 = vpop.f32.mrb[0].mxu0
        %v4415 = vadd.f32 %v4302, %v4414
        %v4416 = vpop.f32.mrb[0].mxu0
        %v4417 = vadd.f32 %v4304, %v4416
        %v4418 = vpop.f32.mrb[0].mxu0
        %v4419 = vadd.f32 %v4306, %v4418
        %4420 = vmatprep.mubr.bf16.mxu0 %v1572
        %4421 = vmatmul.mubr.bf16.gmra.mrb[0].mxu0 %v1571
        %v4422 = vpop.f32.mrb[0].mxu0
        %v4423 = vadd.f32 %v4310, %v4422
        %v4424 = vpop.f32.mrb[0].mxu0
        %v4425 = vadd.f32 %v4312, %v4424
        %v4426 = vpop.f32.mrb[0].mxu0
        %v4427 = vadd.f32 %v4314, %v4426
        %v4428 = vpop.f32.mrb[0].mxu0
        %v4429 = vadd.f32 %v4316, %v4428
        %4430 = vdwg.mxu0
        %v4431 = vld [vmem:[%s5] sm:$0xf]
        %v4433 = vlaneseq
        %v4434 = vshrl.u32 %v4433, 7
        %v4435 = vsub.s32 0, %v4434
        %v4436 = vrot.slane %v4431, %v4435
        %v4437 = vlaneseq
        %v4438 = vshrl.u32 %v4437, 7
        %v4439 = vsub.s32 1, %v4438
        %v4440 = vrot.slane %v4431, %v4439
        %v4441 = vlaneseq
        %v4442 = vshrl.u32 %v4441, 7
        %v4443 = vsub.s32 2, %v4442
        %v4444 = vrot.slane %v4431, %v4443
        %v4445 = vlaneseq
        %v4446 = vshrl.u32 %v4445, 7
        %v4447 = vsub.s32 3, %v4446
        %v4448 = vrot.slane %v4431, %v4447
        %v4453 = vadd.f32 %v3901, %v4436
        %v4454 = vadd.f32 %v3903, %v4440
        %v4455 = vadd.f32 %v4353, %v4444
        %v4456 = vadd.f32 %v4355, %v4448
        %v4457 = vadd.f32 %v3905, %v4436
        %v4458 = vadd.f32 %v3907, %v4440
        %v4459 = vadd.f32 %v4357, %v4444
        %v4460 = vadd.f32 %v4359, %v4448
        %v4461 = vadd.f32 %v3911, %v4436
        %v4462 = vadd.f32 %v3913, %v4440
        %v4463 = vadd.f32 %v4363, %v4444
        %v4464 = vadd.f32 %v4365, %v4448
        %v4465 = vadd.f32 %v3915, %v4436
        %v4466 = vadd.f32 %v3917, %v4440
        %v4467 = vadd.f32 %v4367, %v4444
        %v4468 = vadd.f32 %v4369, %v4448
        %v4469 = vadd.f32 %v3921, %v4436
        %v4470 = vadd.f32 %v3923, %v4440
        %v4471 = vadd.f32 %v4373, %v4444
        %v4472 = vadd.f32 %v4375, %v4448
        %v4473 = vadd.f32 %v3925, %v4436
        %v4474 = vadd.f32 %v3927, %v4440
        %v4475 = vadd.f32 %v4377, %v4444
        %v4476 = vadd.f32 %v4379, %v4448
        %v4477 = vadd.f32 %v3931, %v4436
        %v4478 = vadd.f32 %v3933, %v4440
        %v4479 = vadd.f32 %v4383, %v4444
        %v4480 = vadd.f32 %v4385, %v4448
        %v4481 = vadd.f32 %v3935, %v4436
        %v4482 = vadd.f32 %v3937, %v4440
        %v4483 = vadd.f32 %v4387, %v4444
        %v4484 = vadd.f32 %v4389, %v4448
        %v4485 = vadd.f32 %v3941, %v4436
        %v4486 = vadd.f32 %v3943, %v4440
        %v4487 = vadd.f32 %v4393, %v4444
        %v4488 = vadd.f32 %v4395, %v4448
        %v4489 = vadd.f32 %v3945, %v4436
        %v4490 = vadd.f32 %v3947, %v4440
        %v4491 = vadd.f32 %v4397, %v4444
        %v4492 = vadd.f32 %v4399, %v4448
        %v4493 = vadd.f32 %v3951, %v4436
        %v4494 = vadd.f32 %v3953, %v4440
        %v4495 = vadd.f32 %v4403, %v4444
        %v4496 = vadd.f32 %v4405, %v4448
        %v4497 = vadd.f32 %v3955, %v4436
        %v4498 = vadd.f32 %v3957, %v4440
        %v4499 = vadd.f32 %v4407, %v4444
        %v4500 = vadd.f32 %v4409, %v4448
        %v4501 = vadd.f32 %v3961, %v4436
        %v4502 = vadd.f32 %v3963, %v4440
        %v4503 = vadd.f32 %v4413, %v4444
        %v4504 = vadd.f32 %v4415, %v4448
        %v4505 = vadd.f32 %v3965, %v4436
        %v4506 = vadd.f32 %v3967, %v4440
        %v4507 = vadd.f32 %v4417, %v4444
        %v4508 = vadd.f32 %v4419, %v4448
        %v4509 = vadd.f32 %v3971, %v4436
        %v4510 = vadd.f32 %v3973, %v4440
        %v4511 = vadd.f32 %v4423, %v4444
        %v4512 = vadd.f32 %v4425, %v4448
        %v4513 = vadd.f32 %v3975, %v4436
        %v4514 = vadd.f32 %v3977, %v4440
        %v4515 = vadd.f32 %v4427, %v4444
        %v4516 = vadd.f32 %v4429, %v4448
        %v4517 = vmax.f32 %v4453, 0.0
        %v4518 = vmax.f32 %v4454, 0.0
        %v4519 = vmax.f32 %v4455, 0.0
        %v4520 = vmax.f32 %v4456, 0.0
        %v4521 = vmax.f32 %v4457, 0.0
        %v4522 = vmax.f32 %v4458, 0.0
        %v4523 = vmax.f32 %v4459, 0.0
        %v4524 = vmax.f32 %v4460, 0.0
        %v4525 = vmax.f32 %v4461, 0.0
        %v4526 = vmax.f32 %v4462, 0.0
        %v4527 = vmax.f32 %v4463, 0.0
        %v4528 = vmax.f32 %v4464, 0.0
        %v4529 = vmax.f32 %v4465, 0.0
        %v4530 = vmax.f32 %v4466, 0.0
        %v4531 = vmax.f32 %v4467, 0.0
        %v4532 = vmax.f32 %v4468, 0.0
        %v4533 = vmax.f32 %v4469, 0.0
        %v4534 = vmax.f32 %v4470, 0.0
        %v4535 = vmax.f32 %v4471, 0.0
        %v4536 = vmax.f32 %v4472, 0.0
        %v4537 = vmax.f32 %v4473, 0.0
        %v4538 = vmax.f32 %v4474, 0.0
        %v4539 = vmax.f32 %v4475, 0.0
        %v4540 = vmax.f32 %v4476, 0.0
        %v4541 = vmax.f32 %v4477, 0.0
        %v4542 = vmax.f32 %v4478, 0.0
        %v4543 = vmax.f32 %v4479, 0.0
        %v4544 = vmax.f32 %v4480, 0.0
        %v4545 = vmax.f32 %v4481, 0.0
        %v4546 = vmax.f32 %v4482, 0.0
        %v4547 = vmax.f32 %v4483, 0.0
        %v4548 = vmax.f32 %v4484, 0.0
        %v4549 = vmax.f32 %v4485, 0.0
        %v4550 = vmax.f32 %v4486, 0.0
        %v4551 = vmax.f32 %v4487, 0.0
        %v4552 = vmax.f32 %v4488, 0.0
        %v4553 = vmax.f32 %v4489, 0.0
        %v4554 = vmax.f32 %v4490, 0.0
        %v4555 = vmax.f32 %v4491, 0.0
        %v4556 = vmax.f32 %v4492, 0.0
        %v4557 = vmax.f32 %v4493, 0.0
        %v4558 = vmax.f32 %v4494, 0.0
        %v4559 = vmax.f32 %v4495, 0.0
        %v4560 = vmax.f32 %v4496, 0.0
        %v4561 = vmax.f32 %v4497, 0.0
        %v4562 = vmax.f32 %v4498, 0.0
        %v4563 = vmax.f32 %v4499, 0.0
        %v4564 = vmax.f32 %v4500, 0.0
        %v4565 = vmax.f32 %v4501, 0.0
        %v4566 = vmax.f32 %v4502, 0.0
        %v4567 = vmax.f32 %v4503, 0.0
        %v4568 = vmax.f32 %v4504, 0.0
        %v4569 = vmax.f32 %v4505, 0.0
        %v4570 = vmax.f32 %v4506, 0.0
        %v4571 = vmax.f32 %v4507, 0.0
        %v4572 = vmax.f32 %v4508, 0.0
        %v4573 = vmax.f32 %v4509, 0.0
        %v4574 = vmax.f32 %v4510, 0.0
        %v4575 = vmax.f32 %v4511, 0.0
        %v4576 = vmax.f32 %v4512, 0.0
        %v4577 = vmax.f32 %v4513, 0.0
        %v4578 = vmax.f32 %v4514, 0.0
        %v4579 = vmax.f32 %v4515, 0.0
        %v4580 = vmax.f32 %v4516, 0.0
        %v4581 = vpack.c.bf16 %v4521, %v4517
        %v4582 = vpack.c.bf16 %v4522, %v4518
        %v4583 = vpack.c.bf16 %v4523, %v4519
        %v4584 = vpack.c.bf16 %v4524, %v4520
        %v4585 = vpack.c.bf16 %v4529, %v4525
        %v4586 = vpack.c.bf16 %v4530, %v4526
        %v4587 = vpack.c.bf16 %v4531, %v4527
        %v4588 = vpack.c.bf16 %v4532, %v4528
        %v4589 = vpack.c.bf16 %v4537, %v4533
        %v4590 = vpack.c.bf16 %v4538, %v4534
        %v4591 = vpack.c.bf16 %v4539, %v4535
        %v4592 = vpack.c.bf16 %v4540, %v4536
        %v4593 = vpack.c.bf16 %v4545, %v4541
        %v4594 = vpack.c.bf16 %v4546, %v4542
        %v4595 = vpack.c.bf16 %v4547, %v4543
        %v4596 = vpack.c.bf16 %v4548, %v4544
        %v4597 = vpack.c.bf16 %v4553, %v4549
        %v4598 = vpack.c.bf16 %v4554, %v4550
        %v4599 = vpack.c.bf16 %v4555, %v4551
        %v4600 = vpack.c.bf16 %v4556, %v4552
        %v4601 = vpack.c.bf16 %v4561, %v4557
        %v4602 = vpack.c.bf16 %v4562, %v4558
        %v4603 = vpack.c.bf16 %v4563, %v4559
        %v4604 = vpack.c.bf16 %v4564, %v4560
        %v4605 = vpack.c.bf16 %v4569, %v4565
        %v4606 = vpack.c.bf16 %v4570, %v4566
        %v4607 = vpack.c.bf16 %v4571, %v4567
        %v4608 = vpack.c.bf16 %v4572, %v4568
        %v4609 = vpack.c.bf16 %v4577, %v4573
        %v4610 = vpack.c.bf16 %v4578, %v4574
        %v4611 = vpack.c.bf16 %v4579, %v4575
        %v4612 = vpack.c.bf16 %v4580, %v4576
        %v4613 = vld [vmem:[#allocation11] sm:$0xff]
        %v4614 = vld [vmem:[#allocation11 + $0x8] sm:$0xf]
        %v4615 = vld [vmem:[#allocation11 + $0xc] sm:$0xff]
        %v4616 = vld [vmem:[#allocation11 + $0x14] sm:$0xf]
        %v4617 = vld [vmem:[#allocation11 + $0x18] sm:$0xff]
        %v4618 = vld [vmem:[#allocation11 + $0x20] sm:$0xf]
        %v4619 = vld [vmem:[#allocation11 + $0x24] sm:$0xff]
        %v4620 = vld [vmem:[#allocation11 + $0x2c] sm:$0xf]
        %v4621 = vld [vmem:[#allocation11 + $0x30] sm:$0xff]
        %v4622 = vld [vmem:[#allocation11 + $0x38] sm:$0xf]
        %v4623 = vld [vmem:[#allocation11 + $0x3c] sm:$0xff]
        %v4624 = vld [vmem:[#allocation11 + $0x44] sm:$0xf]
        %v4625 = vld [vmem:[#allocation11 + $0x48] sm:$0xff]
        %v4626 = vld [vmem:[#allocation11 + $0x50] sm:$0xf]
        %v4627 = vld [vmem:[#allocation11 + $0x54] sm:$0xff]
        %v4628 = vld [vmem:[#allocation11 + $0x5c] sm:$0xf]
        %v4629 = vld [vmem:[#allocation11 + $0x60] sm:$0xff]
        %v4630 = vld [vmem:[#allocation11 + $0x68] sm:$0xf]
        %v4631 = vld [vmem:[#allocation11 + $0x6c] sm:$0xff]
        %v4632 = vld [vmem:[#allocation11 + $0x74] sm:$0xf]
        %v4633 = vld [vmem:[#allocation11 + $0x78] sm:$0xff]
        %v4634 = vld [vmem:[#allocation11 + $0x80] sm:$0xf]
        %v4635 = vld [vmem:[#allocation11 + $0x84] sm:$0xff]
        %v4636 = vld [vmem:[#allocation11 + $0x8c] sm:$0xf]
        %v4637 = vld [vmem:[#allocation11 + $0x90] sm:$0xff]
        %v4638 = vld [vmem:[#allocation11 + $0x98] sm:$0xf]
        %v4639 = vld [vmem:[#allocation11 + $0x9c] sm:$0xff]
        %v4640 = vld [vmem:[#allocation11 + $0xa4] sm:$0xf]
        %v4641 = vld [vmem:[#allocation11 + $0xa8] sm:$0xff]
        %v4642 = vld [vmem:[#allocation11 + $0xb0] sm:$0xf]
        %v4643 = vld [vmem:[#allocation11 + $0xb4] sm:$0xff]
        %v4644 = vld [vmem:[#allocation11 + $0xbc] sm:$0xf]
        %v4645 = vld [vmem:[#allocation11 + $0xc0] sm:$0xff]
        %v4646 = vld [vmem:[#allocation11 + $0xc8] sm:$0xf]
        %v4647 = vld [vmem:[#allocation11 + $0xcc] sm:$0xff]
        %v4648 = vld [vmem:[#allocation11 + $0xd4] sm:$0xf]
        %v4649 = vld [vmem:[#allocation11 + $0xd8] sm:$0xff]
        %v4650 = vld [vmem:[#allocation11 + $0xe0] sm:$0xf]
        %v4651 = vld [vmem:[#allocation11 + $0xe4] sm:$0xff]
        %v4652 = vld [vmem:[#allocation11 + $0xec] sm:$0xf]
        %v4653 = vld [vmem:[#allocation11 + $0xf0] sm:$0xff]
        %v4654 = vld [vmem:[#allocation11 + $0xf8] sm:$0xf]
        %v4655 = vld [vmem:[#allocation11 + $0xfc] sm:$0xff]
        %v4656 = vld [vmem:[#allocation11 + $0x104] sm:$0xf]
        %v4657 = vld [vmem:[#allocation11 + $0x108] sm:$0xff]
        %v4658 = vld [vmem:[#allocation11 + $0x110] sm:$0xf]
        %v4659 = vld [vmem:[#allocation11 + $0x114] sm:$0xff]
        %v4660 = vld [vmem:[#allocation11 + $0x11c] sm:$0xf]
        %v4661 = vld [vmem:[#allocation11 + $0x120] sm:$0xff]
        %v4662 = vld [vmem:[#allocation11 + $0x128] sm:$0xf]
        %v4663 = vld [vmem:[#allocation11 + $0x12c] sm:$0xff]
        %v4664 = vld [vmem:[#allocation11 + $0x134] sm:$0xf]
        %v4665 = vld [vmem:[#allocation11 + $0x138] sm:$0xff]
        %v4666 = vld [vmem:[#allocation11 + $0x140] sm:$0xf]
        %v4667 = vld [vmem:[#allocation11 + $0x144] sm:$0xff]
        %v4668 = vld [vmem:[#allocation11 + $0x14c] sm:$0xf]
        %v4669 = vld [vmem:[#allocation11 + $0x150] sm:$0xff]
        %v4670 = vld [vmem:[#allocation11 + $0x158] sm:$0xf]
        %v4671 = vld [vmem:[#allocation11 + $0x15c] sm:$0xff]
        %v4672 = vld [vmem:[#allocation11 + $0x164] sm:$0xf]
        %v4673 = vld [vmem:[#allocation11 + $0x168] sm:$0xff]
        %v4674 = vld [vmem:[#allocation11 + $0x170] sm:$0xf]
        %v4675 = vld [vmem:[#allocation11 + $0x174] sm:$0xff]
        %v4676 = vld [vmem:[#allocation11 + $0x17c] sm:$0xf]
        %v4677 = vld [vmem:[#allocation11 + $0x180] sm:$0xff]
        %v4678 = vld [vmem:[#allocation11 + $0x188] sm:$0xf]
        %v4679 = vld [vmem:[#allocation11 + $0x18c] sm:$0xff]
        %v4680 = vld [vmem:[#allocation11 + $0x194] sm:$0xf]
        %v4681 = vld [vmem:[#allocation11 + $0x198] sm:$0xff]
        %v4682 = vld [vmem:[#allocation11 + $0x1a0] sm:$0xf]
        %v4683 = vld [vmem:[#allocation11 + $0x1a4] sm:$0xff]
        %v4684 = vld [vmem:[#allocation11 + $0x1ac] sm:$0xf]
        %v4685 = vld [vmem:[#allocation11 + $0x1b0] sm:$0xff]
        %v4686 = vld [vmem:[#allocation11 + $0x1b8] sm:$0xf]
        %v4687 = vld [vmem:[#allocation11 + $0x1bc] sm:$0xff]
        %v4688 = vld [vmem:[#allocation11 + $0x1c4] sm:$0xf]
        %v4689 = vld [vmem:[#allocation11 + $0x1c8] sm:$0xff]
        %v4690 = vld [vmem:[#allocation11 + $0x1d0] sm:$0xf]
        %v4691 = vld [vmem:[#allocation11 + $0x1d4] sm:$0xff]
        %v4692 = vld [vmem:[#allocation11 + $0x1dc] sm:$0xf]
        %v4693 = vld [vmem:[#allocation11 + $0x1e0] sm:$0xff]
        %v4694 = vld [vmem:[#allocation11 + $0x1e8] sm:$0xf]
        %v4695 = vld [vmem:[#allocation11 + $0x1ec] sm:$0xff]
        %v4696 = vld [vmem:[#allocation11 + $0x1f4] sm:$0xf]
        %v4697 = vld [vmem:[#allocation11 + $0x1f8] sm:$0xff]
        %v4698 = vld [vmem:[#allocation11 + $0x200] sm:$0xf]
        %v4699 = vld [vmem:[#allocation11 + $0x204] sm:$0xff]
        %v4700 = vld [vmem:[#allocation11 + $0x20c] sm:$0xf]
        %v4701 = vld [vmem:[#allocation11 + $0x210] sm:$0xff]
        %v4702 = vld [vmem:[#allocation11 + $0x218] sm:$0xf]
        %v4703 = vld [vmem:[#allocation11 + $0x21c] sm:$0xff]
        %v4704 = vld [vmem:[#allocation11 + $0x224] sm:$0xf]
        %v4705 = vld [vmem:[#allocation11 + $0x228] sm:$0xff]
        %v4706 = vld [vmem:[#allocation11 + $0x230] sm:$0xf]
        %v4707 = vld [vmem:[#allocation11 + $0x234] sm:$0xff]
        %v4708 = vld [vmem:[#allocation11 + $0x23c] sm:$0xf]
        %v4709 = vld [vmem:[#allocation11 + $0x240] sm:$0xff]
        %v4710 = vld [vmem:[#allocation11 + $0x248] sm:$0xf]
        %v4711 = vld [vmem:[#allocation11 + $0x24c] sm:$0xff]
        %v4712 = vld [vmem:[#allocation11 + $0x254] sm:$0xf]
        %v4713 = vld [vmem:[#allocation11 + $0x258] sm:$0xff]
        %v4714 = vld [vmem:[#allocation11 + $0x260] sm:$0xf]
        %v4715 = vld [vmem:[#allocation11 + $0x264] sm:$0xff]
        %v4716 = vld [vmem:[#allocation11 + $0x26c] sm:$0xf]
        %v4717 = vld [vmem:[#allocation11 + $0x270] sm:$0xff]
        %v4718 = vld [vmem:[#allocation11 + $0x278] sm:$0xf]
        %v4719 = vld [vmem:[#allocation11 + $0x27c] sm:$0xff]
        %v4720 = vld [vmem:[#allocation11 + $0x284] sm:$0xf]
        %v4721 = vld [vmem:[#allocation11 + $0x288] sm:$0xff]
        %v4722 = vld [vmem:[#allocation11 + $0x290] sm:$0xf]
        %v4723 = vld [vmem:[#allocation11 + $0x294] sm:$0xff]
        %v4724 = vld [vmem:[#allocation11 + $0x29c] sm:$0xf]
        %v4725 = vld [vmem:[#allocation11 + $0x2a0] sm:$0xff]
        %v4726 = vld [vmem:[#allocation11 + $0x2a8] sm:$0xf]
        %v4727 = vld [vmem:[#allocation11 + $0x2ac] sm:$0xff]
        %v4728 = vld [vmem:[#allocation11 + $0x2b4] sm:$0xf]
        %v4729 = vld [vmem:[#allocation11 + $0x2b8] sm:$0xff]
        %v4730 = vld [vmem:[#allocation11 + $0x2c0] sm:$0xf]
        %v4731 = vld [vmem:[#allocation11 + $0x2c4] sm:$0xff]
        %v4732 = vld [vmem:[#allocation11 + $0x2cc] sm:$0xf]
        %v4733 = vld [vmem:[#allocation11 + $0x2d0] sm:$0xff]
        %v4734 = vld [vmem:[#allocation11 + $0x2d8] sm:$0xf]
        %v4735 = vld [vmem:[#allocation11 + $0x2dc] sm:$0xff]
        %v4736 = vld [vmem:[#allocation11 + $0x2e4] sm:$0xf]
        %v4737 = vld [vmem:[#allocation11 + $0x2e8] sm:$0xff]
        %v4738 = vld [vmem:[#allocation11 + $0x2f0] sm:$0xf]
        %v4739 = vld [vmem:[#allocation11 + $0x2f4] sm:$0xff]
        %v4740 = vld [vmem:[#allocation11 + $0x2fc] sm:$0xf]
        %v4741 = vld [vmem:[%s7] sm:$0x7]
        %v4743 = vlaneseq
        %v4744 = vshrl.u32 %v4743, 7
        %v4745 = vsub.s32 0, %v4744
        %v4746 = vrot.slane %v4741, %v4745
        %v4747 = vlaneseq
        %v4748 = vshrl.u32 %v4747, 7
        %v4749 = vsub.s32 1, %v4748
        %v4750 = vrot.slane %v4741, %v4749
        %v4751 = vlaneseq
        %v4752 = vshrl.u32 %v4751, 7
        %v4753 = vsub.s32 2, %v4752
        %v4754 = vrot.slane %v4741, %v4753
        %v4886 = vunpack.c.l.b16 %v4613
        %v4887 = vunpack.c.h.b16 %v4613
        %v4888 = vunpack.c.l.b16 %v4614
        %v4889 = vunpack.c.l.b16 %v4615
        %v4890 = vunpack.c.h.b16 %v4615
        %v4891 = vunpack.c.l.b16 %v4616
        %v4892 = vunpack.c.l.b16 %v4617
        %v4893 = vunpack.c.h.b16 %v4617
        %v4894 = vunpack.c.l.b16 %v4618
        %v4895 = vunpack.c.l.b16 %v4619
        %v4896 = vunpack.c.h.b16 %v4619
        %v4897 = vunpack.c.l.b16 %v4620
        %v4898 = vunpack.c.l.b16 %v4621
        %v4899 = vunpack.c.h.b16 %v4621
        %v4900 = vunpack.c.l.b16 %v4622
        %v4901 = vunpack.c.l.b16 %v4623
        %v4902 = vunpack.c.h.b16 %v4623
        %v4903 = vunpack.c.l.b16 %v4624
        %v4904 = vunpack.c.l.b16 %v4625
        %v4905 = vunpack.c.h.b16 %v4625
        %v4906 = vunpack.c.l.b16 %v4626
        %v4907 = vunpack.c.l.b16 %v4627
        %v4908 = vunpack.c.h.b16 %v4627
        %v4909 = vunpack.c.l.b16 %v4628
        %v4910 = vunpack.c.l.b16 %v4629
        %v4911 = vunpack.c.h.b16 %v4629
        %v4912 = vunpack.c.l.b16 %v4630
        %v4913 = vunpack.c.l.b16 %v4631
        %v4914 = vunpack.c.h.b16 %v4631
        %v4915 = vunpack.c.l.b16 %v4632
        %v4916 = vunpack.c.l.b16 %v4633
        %v4917 = vunpack.c.h.b16 %v4633
        %v4918 = vunpack.c.l.b16 %v4634
        %v4919 = vunpack.c.l.b16 %v4635
        %v4920 = vunpack.c.h.b16 %v4635
        %v4921 = vunpack.c.l.b16 %v4636
        %v4922 = vunpack.c.l.b16 %v4637
        %v4923 = vunpack.c.h.b16 %v4637
        %v4924 = vunpack.c.l.b16 %v4638
        %v4925 = vunpack.c.l.b16 %v4639
        %v4926 = vunpack.c.h.b16 %v4639
        %v4927 = vunpack.c.l.b16 %v4640
        %v4928 = vunpack.c.l.b16 %v4641
        %v4929 = vunpack.c.h.b16 %v4641
        %v4930 = vunpack.c.l.b16 %v4642
        %v4931 = vunpack.c.l.b16 %v4643
        %v4932 = vunpack.c.h.b16 %v4643
        %v4933 = vunpack.c.l.b16 %v4644
        %v4934 = vunpack.c.l.b16 %v4645
        %v4935 = vunpack.c.h.b16 %v4645
        %v4936 = vunpack.c.l.b16 %v4646
        %v4937 = vunpack.c.l.b16 %v4647
        %v4938 = vunpack.c.h.b16 %v4647
        %v4939 = vunpack.c.l.b16 %v4648
        %v4940 = vunpack.c.l.b16 %v4649
        %v4941 = vunpack.c.h.b16 %v4649
        %v4942 = vunpack.c.l.b16 %v4650
        %v4943 = vunpack.c.l.b16 %v4651
        %v4944 = vunpack.c.h.b16 %v4651
        %v4945 = vunpack.c.l.b16 %v4652
        %v4946 = vunpack.c.l.b16 %v4653
        %v4947 = vunpack.c.h.b16 %v4653
        %v4948 = vunpack.c.l.b16 %v4654
        %v4949 = vunpack.c.l.b16 %v4655
        %v4950 = vunpack.c.h.b16 %v4655
        %v4951 = vunpack.c.l.b16 %v4656
        %v4952 = vunpack.c.l.b16 %v4657
        %v4953 = vunpack.c.h.b16 %v4657
        %v4954 = vunpack.c.l.b16 %v4658
        %v4955 = vunpack.c.l.b16 %v4659
        %v4956 = vunpack.c.h.b16 %v4659
        %v4957 = vunpack.c.l.b16 %v4660
        %v4958 = vunpack.c.l.b16 %v4661
        %v4959 = vunpack.c.h.b16 %v4661
        %v4960 = vunpack.c.l.b16 %v4662
        %v4961 = vunpack.c.l.b16 %v4663
        %v4962 = vunpack.c.h.b16 %v4663
        %v4963 = vunpack.c.l.b16 %v4664
        %v4964 = vunpack.c.l.b16 %v4665
        %v4965 = vunpack.c.h.b16 %v4665
        %v4966 = vunpack.c.l.b16 %v4666
        %v4967 = vunpack.c.l.b16 %v4667
        %v4968 = vunpack.c.h.b16 %v4667
        %v4969 = vunpack.c.l.b16 %v4668
        %v4970 = vunpack.c.l.b16 %v4669
        %v4971 = vunpack.c.h.b16 %v4669
        %v4972 = vunpack.c.l.b16 %v4670
        %v4973 = vunpack.c.l.b16 %v4671
        %v4974 = vunpack.c.h.b16 %v4671
        %v4975 = vunpack.c.l.b16 %v4672
        %v4976 = vunpack.c.l.b16 %v4673
        %v4977 = vunpack.c.h.b16 %v4673
        %v4978 = vunpack.c.l.b16 %v4674
        %v4979 = vunpack.c.l.b16 %v4675
        %v4980 = vunpack.c.h.b16 %v4675
        %v4981 = vunpack.c.l.b16 %v4676
        %v4982 = vunpack.c.l.b16 %v4677
        %v4983 = vunpack.c.h.b16 %v4677
        %v4984 = vunpack.c.l.b16 %v4678
        %v4985 = vunpack.c.l.b16 %v4679
        %v4986 = vunpack.c.h.b16 %v4679
        %v4987 = vunpack.c.l.b16 %v4680
        %v4988 = vunpack.c.l.b16 %v4681
        %v4989 = vunpack.c.h.b16 %v4681
        %v4990 = vunpack.c.l.b16 %v4682
        %v4991 = vunpack.c.l.b16 %v4683
        %v4992 = vunpack.c.h.b16 %v4683
        %v4993 = vunpack.c.l.b16 %v4684
        %v4994 = vunpack.c.l.b16 %v4685
        %v4995 = vunpack.c.h.b16 %v4685
        %v4996 = vunpack.c.l.b16 %v4686
        %v4997 = vunpack.c.l.b16 %v4687
        %v4998 = vunpack.c.h.b16 %v4687
        %v4999 = vunpack.c.l.b16 %v4688
        %v5000 = vunpack.c.l.b16 %v4689
        %v5001 = vunpack.c.h.b16 %v4689
        %v5002 = vunpack.c.l.b16 %v4690
        %v5003 = vunpack.c.l.b16 %v4691
        %v5004 = vunpack.c.h.b16 %v4691
        %v5005 = vunpack.c.l.b16 %v4692
        %v5006 = vunpack.c.l.b16 %v4693
        %v5007 = vunpack.c.h.b16 %v4693
        %v5008 = vunpack.c.l.b16 %v4694
        %v5009 = vunpack.c.l.b16 %v4695
        %v5010 = vunpack.c.h.b16 %v4695
        %v5011 = vunpack.c.l.b16 %v4696
        %v5012 = vunpack.c.l.b16 %v4697
        %v5013 = vunpack.c.h.b16 %v4697
        %v5014 = vunpack.c.l.b16 %v4698
        %v5015 = vunpack.c.l.b16 %v4699
        %v5016 = vunpack.c.h.b16 %v4699
        %v5017 = vunpack.c.l.b16 %v4700
        %v5018 = vunpack.c.l.b16 %v4701
        %v5019 = vunpack.c.h.b16 %v4701
        %v5020 = vunpack.c.l.b16 %v4702
        %v5021 = vunpack.c.l.b16 %v4703
        %v5022 = vunpack.c.h.b16 %v4703
        %v5023 = vunpack.c.l.b16 %v4704
        %v5024 = vunpack.c.l.b16 %v4705
        %v5025 = vunpack.c.h.b16 %v4705
        %v5026 = vunpack.c.l.b16 %v4706
        %v5027 = vunpack.c.l.b16 %v4707
        %v5028 = vunpack.c.h.b16 %v4707
        %v5029 = vunpack.c.l.b16 %v4708
        %v5030 = vunpack.c.l.b16 %v4709
        %v5031 = vunpack.c.h.b16 %v4709
        %v5032 = vunpack.c.l.b16 %v4710
        %v5033 = vunpack.c.l.b16 %v4711
        %v5034 = vunpack.c.h.b16 %v4711
        %v5035 = vunpack.c.l.b16 %v4712
        %v5036 = vunpack.c.l.b16 %v4713
        %v5037 = vunpack.c.h.b16 %v4713
        %v5038 = vunpack.c.l.b16 %v4714
        %v5039 = vunpack.c.l.b16 %v4715
        %v5040 = vunpack.c.h.b16 %v4715
        %v5041 = vunpack.c.l.b16 %v4716
        %v5042 = vunpack.c.l.b16 %v4717
        %v5043 = vunpack.c.h.b16 %v4717
        %v5044 = vunpack.c.l.b16 %v4718
        %v5045 = vunpack.c.l.b16 %v4719
        %v5046 = vunpack.c.h.b16 %v4719
        %v5047 = vunpack.c.l.b16 %v4720
        %v5048 = vunpack.c.l.b16 %v4721
        %v5049 = vunpack.c.h.b16 %v4721
        %v5050 = vunpack.c.l.b16 %v4722
        %v5051 = vunpack.c.l.b16 %v4723
        %v5052 = vunpack.c.h.b16 %v4723
        %v5053 = vunpack.c.l.b16 %v4724
        %v5054 = vunpack.c.l.b16 %v4725
        %v5055 = vunpack.c.h.b16 %v4725
        %v5056 = vunpack.c.l.b16 %v4726
        %v5057 = vunpack.c.l.b16 %v4727
        %v5058 = vunpack.c.h.b16 %v4727
        %v5059 = vunpack.c.l.b16 %v4728
        %v5060 = vunpack.c.l.b16 %v4729
        %v5061 = vunpack.c.h.b16 %v4729
        %v5062 = vunpack.c.l.b16 %v4730
        %v5063 = vunpack.c.l.b16 %v4731
        %v5064 = vunpack.c.h.b16 %v4731
        %v5065 = vunpack.c.l.b16 %v4732
        %v5066 = vunpack.c.l.b16 %v4733
        %v5067 = vunpack.c.h.b16 %v4733
        %v5068 = vunpack.c.l.b16 %v4734
        %v5069 = vunpack.c.l.b16 %v4735
        %v5070 = vunpack.c.h.b16 %v4735
        %v5071 = vunpack.c.l.b16 %v4736
        %v5072 = vunpack.c.l.b16 %v4737
        %v5073 = vunpack.c.h.b16 %v4737
        %v5074 = vunpack.c.l.b16 %v4738
        %v5075 = vunpack.c.l.b16 %v4739
        %v5076 = vunpack.c.h.b16 %v4739
        %v5077 = vunpack.c.l.b16 %v4740
        %v5078 = vpack.c.b16 %v4889, %v4886
        %v5079 = vpack.c.b16 %v4890, %v4887
        %v5080 = vpack.c.b16 %v4891, %v4888
        %v5081 = vpack.c.b16 %v4895, %v4892
        %v5082 = vpack.c.b16 %v4896, %v4893
        %v5083 = vpack.c.b16 %v4897, %v4894
        %v5084 = vpack.c.b16 %v4901, %v4898
        %v5085 = vpack.c.b16 %v4902, %v4899
        %v5086 = vpack.c.b16 %v4903, %v4900
        %v5087 = vpack.c.b16 %v4907, %v4904
        %v5088 = vpack.c.b16 %v4908, %v4905
        %v5089 = vpack.c.b16 %v4909, %v4906
        %v5090 = vpack.c.b16 %v4913, %v4910
        %v5091 = vpack.c.b16 %v4914, %v4911
        %v5092 = vpack.c.b16 %v4915, %v4912
        %v5093 = vpack.c.b16 %v4919, %v4916
        %v5094 = vpack.c.b16 %v4920, %v4917
        %v5095 = vpack.c.b16 %v4921, %v4918
        %v5096 = vpack.c.b16 %v4925, %v4922
        %v5097 = vpack.c.b16 %v4926, %v4923
        %v5098 = vpack.c.b16 %v4927, %v4924
        %v5099 = vpack.c.b16 %v4931, %v4928
        %v5100 = vpack.c.b16 %v4932, %v4929
        %v5101 = vpack.c.b16 %v4933, %v4930
        %v5102 = vpack.c.b16 %v4937, %v4934
        %v5103 = vpack.c.b16 %v4938, %v4935
        %v5104 = vpack.c.b16 %v4939, %v4936
        %v5105 = vpack.c.b16 %v4943, %v4940
        %v5106 = vpack.c.b16 %v4944, %v4941
        %v5107 = vpack.c.b16 %v4945, %v4942
        %v5108 = vpack.c.b16 %v4949, %v4946
        %v5109 = vpack.c.b16 %v4950, %v4947
        %v5110 = vpack.c.b16 %v4951, %v4948
        %v5111 = vpack.c.b16 %v4955, %v4952
        %v5112 = vpack.c.b16 %v4956, %v4953
        %v5113 = vpack.c.b16 %v4957, %v4954
        %v5114 = vpack.c.b16 %v4961, %v4958
        %v5115 = vpack.c.b16 %v4962, %v4959
        %v5116 = vpack.c.b16 %v4963, %v4960
        %v5117 = vpack.c.b16 %v4967, %v4964
        %v5118 = vpack.c.b16 %v4968, %v4965
        %v5119 = vpack.c.b16 %v4969, %v4966
        %v5120 = vpack.c.b16 %v4973, %v4970
        %v5121 = vpack.c.b16 %v4974, %v4971
        %v5122 = vpack.c.b16 %v4975, %v4972
        %v5123 = vpack.c.b16 %v4979, %v4976
        %v5124 = vpack.c.b16 %v4980, %v4977
        %v5125 = vpack.c.b16 %v4981, %v4978
        %v5126 = vpack.c.b16 %v4985, %v4982
        %v5127 = vpack.c.b16 %v4986, %v4983
        %v5128 = vpack.c.b16 %v4987, %v4984
        %v5129 = vpack.c.b16 %v4991, %v4988
        %v5130 = vpack.c.b16 %v4992, %v4989
        %v5131 = vpack.c.b16 %v4993, %v4990
        %v5132 = vpack.c.b16 %v4997, %v4994
        %v5133 = vpack.c.b16 %v4998, %v4995
        %v5134 = vpack.c.b16 %v4999, %v4996
        %v5135 = vpack.c.b16 %v5003, %v5000
        %v5136 = vpack.c.b16 %v5004, %v5001
        %v5137 = vpack.c.b16 %v5005, %v5002
        %v5138 = vpack.c.b16 %v5009, %v5006
        %v5139 = vpack.c.b16 %v5010, %v5007
        %v5140 = vpack.c.b16 %v5011, %v5008
        %v5141 = vpack.c.b16 %v5015, %v5012
        %v5142 = vpack.c.b16 %v5016, %v5013
        %v5143 = vpack.c.b16 %v5017, %v5014
        %v5144 = vpack.c.b16 %v5021, %v5018
        %v5145 = vpack.c.b16 %v5022, %v5019
        %v5146 = vpack.c.b16 %v5023, %v5020
        %v5147 = vpack.c.b16 %v5027, %v5024
        %v5148 = vpack.c.b16 %v5028, %v5025
        %v5149 = vpack.c.b16 %v5029, %v5026
        %v5150 = vpack.c.b16 %v5033, %v5030
        %v5151 = vpack.c.b16 %v5034, %v5031
        %v5152 = vpack.c.b16 %v5035, %v5032
        %v5153 = vpack.c.b16 %v5039, %v5036
        %v5154 = vpack.c.b16 %v5040, %v5037
        %v5155 = vpack.c.b16 %v5041, %v5038
        %v5156 = vpack.c.b16 %v5045, %v5042
        %v5157 = vpack.c.b16 %v5046, %v5043
        %v5158 = vpack.c.b16 %v5047, %v5044
        %v5159 = vpack.c.b16 %v5051, %v5048
        %v5160 = vpack.c.b16 %v5052, %v5049
        %v5161 = vpack.c.b16 %v5053, %v5050
        %v5162 = vpack.c.b16 %v5057, %v5054
        %v5163 = vpack.c.b16 %v5058, %v5055
        %v5164 = vpack.c.b16 %v5059, %v5056
        %v5165 = vpack.c.b16 %v5063, %v5060
        %v5166 = vpack.c.b16 %v5064, %v5061
        %v5167 = vpack.c.b16 %v5065, %v5062
        %v5168 = vpack.c.b16 %v5069, %v5066
        %v5169 = vpack.c.b16 %v5070, %v5067
        %v5170 = vpack.c.b16 %v5071, %v5068
        %v5171 = vpack.c.b16 %v5075, %v5072
        %v5172 = vpack.c.b16 %v5076, %v5073
        %v5173 = vpack.c.b16 %v5077, %v5074
        %5270 = vmatprep.subr.bf16.mxu0 %v5079
        %5271 = vmatpush1.bf16.msra.mxu0 %v5078
        %5272 = vmatprep.subr.bf16.mxu0 %v5082
        %5273 = vmatpush1.bf16.msra.mxu0 %v5081
        %5274 = vmatprep.subr.bf16.mxu0 %v5085
        %5275 = vmatpush1.bf16.msra.mxu0 %v5084
        %5276 = vmatprep.subr.bf16.mxu0 %v5088
        %5277 = vmatpush1.bf16.msra.mxu0 %v5087
        %5278 = vmatprep.subr.bf16.mxu0 %v5091
        %5279 = vmatpush1.bf16.msra.mxu0 %v5090
        %5280 = vmatprep.subr.bf16.mxu0 %v5094
        %5281 = vmatpush1.bf16.msra.mxu0 %v5093
        %5282 = vmatprep.subr.bf16.mxu0 %v5097
        %5283 = vmatpush1.bf16.msra.mxu0 %v5096
        %5284 = vmatprep.subr.bf16.mxu0 %v5100
        %5285 = vmatpush1.bf16.msra.mxu0 %v5099
        %5286 = vmatprep.subr.bf16.mxu0 %v5103
        %5287 = vmatpush1.bf16.msra.mxu0 %v5102
        %5288 = vmatprep.subr.bf16.mxu0 %v5106
        %5289 = vmatpush1.bf16.msra.mxu0 %v5105
        %5290 = vmatprep.subr.bf16.mxu0 %v5109
        %5291 = vmatpush1.bf16.msra.mxu0 %v5108
        %5292 = vmatprep.subr.bf16.mxu0 %v5112
        %5293 = vmatpush1.bf16.msra.mxu0 %v5111
        %5294 = vmatprep.subr.bf16.mxu0 %v5115
        %5295 = vmatpush1.bf16.msra.mxu0 %v5114
        %5296 = vmatprep.subr.bf16.mxu0 %v5118
        %5297 = vmatpush1.bf16.msra.mxu0 %v5117
        %5298 = vmatprep.subr.bf16.mxu0 %v5121
        %5299 = vmatpush1.bf16.msra.mxu0 %v5120
        %5300 = vmatprep.subr.bf16.mxu0 %v5124
        %5301 = vmatpush1.bf16.msra.mxu0 %v5123
        %5302 = vmatprep.mubr.bf16.mxu0 %v4582
        %5303 = vmatmul.mubr.bf16.gmra.mrb[0].mxu0 %v4581
        %v5304 = vpop.f32.mrb[0].mxu0
        %v5305 = vadd.f32 %v4746, %v5304
        %v5306 = vpop.f32.mrb[0].mxu0
        %v5307 = vadd.f32 %v4750, %v5306
        %v5308 = vpop.f32.mrb[0].mxu0
        %v5309 = vadd.f32 %v4746, %v5308
        %v5310 = vpop.f32.mrb[0].mxu0
        %v5311 = vadd.f32 %v4750, %v5310
        %5312 = vmatprep.mubr.bf16.mxu0 %v4586
        %5313 = vmatmul.mubr.bf16.gmra.mrb[0].mxu0 %v4585
        %v5314 = vpop.f32.mrb[0].mxu0
        %v5315 = vadd.f32 %v4746, %v5314
        %v5316 = vpop.f32.mrb[0].mxu0
        %v5317 = vadd.f32 %v4750, %v5316
        %v5318 = vpop.f32.mrb[0].mxu0
        %v5319 = vadd.f32 %v4746, %v5318
        %v5320 = vpop.f32.mrb[0].mxu0
        %v5321 = vadd.f32 %v4750, %v5320
        %5322 = vmatprep.mubr.bf16.mxu0 %v4590
        %5323 = vmatmul.mubr.bf16.gmra.mrb[0].mxu0 %v4589
        %v5324 = vpop.f32.mrb[0].mxu0
        %v5325 = vadd.f32 %v4746, %v5324
        %v5326 = vpop.f32.mrb[0].mxu0
        %v5327 = vadd.f32 %v4750, %v5326
        %v5328 = vpop.f32.mrb[0].mxu0
        %v5329 = vadd.f32 %v4746, %v5328
        %v5330 = vpop.f32.mrb[0].mxu0
        %v5331 = vadd.f32 %v4750, %v5330
        %5332 = vmatprep.mubr.bf16.mxu0 %v4594
        %5333 = vmatmul.mubr.bf16.gmra.mrb[0].mxu0 %v4593
        %v5334 = vpop.f32.mrb[0].mxu0
        %v5335 = vadd.f32 %v4746, %v5334
        %v5336 = vpop.f32.mrb[0].mxu0
        %v5337 = vadd.f32 %v4750, %v5336
        %v5338 = vpop.f32.mrb[0].mxu0
        %v5339 = vadd.f32 %v4746, %v5338
        %v5340 = vpop.f32.mrb[0].mxu0
        %v5341 = vadd.f32 %v4750, %v5340
        %5342 = vmatprep.mubr.bf16.mxu0 %v4598
        %5343 = vmatmul.mubr.bf16.gmra.mrb[0].mxu0 %v4597
        %v5344 = vpop.f32.mrb[0].mxu0
        %v5345 = vadd.f32 %v4746, %v5344
        %v5346 = vpop.f32.mrb[0].mxu0
        %v5347 = vadd.f32 %v4750, %v5346
        %v5348 = vpop.f32.mrb[0].mxu0
        %v5349 = vadd.f32 %v4746, %v5348
        %v5350 = vpop.f32.mrb[0].mxu0
        %v5351 = vadd.f32 %v4750, %v5350
        %5352 = vmatprep.mubr.bf16.mxu0 %v4602
        %5353 = vmatmul.mubr.bf16.gmra.mrb[0].mxu0 %v4601
        %v5354 = vpop.f32.mrb[0].mxu0
        %v5355 = vadd.f32 %v4746, %v5354
        %v5356 = vpop.f32.mrb[0].mxu0
        %v5357 = vadd.f32 %v4750, %v5356
        %v5358 = vpop.f32.mrb[0].mxu0
        %v5359 = vadd.f32 %v4746, %v5358
        %v5360 = vpop.f32.mrb[0].mxu0
        %v5361 = vadd.f32 %v4750, %v5360
        %5362 = vmatprep.mubr.bf16.mxu0 %v4606
        %5363 = vmatmul.mubr.bf16.gmra.mrb[0].mxu0 %v4605
        %v5364 = vpop.f32.mrb[0].mxu0
        %v5365 = vadd.f32 %v4746, %v5364
        %v5366 = vpop.f32.mrb[0].mxu0
        %v5367 = vadd.f32 %v4750, %v5366
        %v5368 = vpop.f32.mrb[0].mxu0
        %v5369 = vadd.f32 %v4746, %v5368
        %v5370 = vpop.f32.mrb[0].mxu0
        %v5371 = vadd.f32 %v4750, %v5370
        %5372 = vmatprep.mubr.bf16.mxu0 %v4610
        %5373 = vmatmul.mubr.bf16.gmra.mrb[0].mxu0 %v4609
        %v5374 = vpop.f32.mrb[0].mxu0
        %v5375 = vadd.f32 %v4746, %v5374
        %v5376 = vpop.f32.mrb[0].mxu0
        %v5377 = vadd.f32 %v4750, %v5376
        %v5378 = vpop.f32.mrb[0].mxu0
        %v5379 = vadd.f32 %v4746, %v5378
        %v5380 = vpop.f32.mrb[0].mxu0
        %v5381 = vadd.f32 %v4750, %v5380
        %5382 = vdwg.mxu0
        %5383 = vmatprep.subr.bf16.mxu0 %v5127
        %5384 = vmatpush1.bf16.msra.mxu0 %v5126
        %5385 = vmatprep.subr.bf16.mxu0 %v5130
        %5386 = vmatpush1.bf16.msra.mxu0 %v5129
        %5387 = vmatprep.subr.bf16.mxu0 %v5133
        %5388 = vmatpush1.bf16.msra.mxu0 %v5132
        %5389 = vmatprep.subr.bf16.mxu0 %v5136
        %5390 = vmatpush1.bf16.msra.mxu0 %v5135
        %5391 = vmatprep.subr.bf16.mxu0 %v5139
        %5392 = vmatpush1.bf16.msra.mxu0 %v5138
        %5393 = vmatprep.subr.bf16.mxu0 %v5142
        %5394 = vmatpush1.bf16.msra.mxu0 %v5141
        %5395 = vmatprep.subr.bf16.mxu0 %v5145
        %5396 = vmatpush1.bf16.msra.mxu0 %v5144
        %5397 = vmatprep.subr.bf16.mxu0 %v5148
        %5398 = vmatpush1.bf16.msra.mxu0 %v5147
        %5399 = vmatprep.subr.bf16.mxu0 %v5151
        %5400 = vmatpush1.bf16.msra.mxu0 %v5150
        %5401 = vmatprep.subr.bf16.mxu0 %v5154
        %5402 = vmatpush1.bf16.msra.mxu0 %v5153
        %5403 = vmatprep.subr.bf16.mxu0 %v5157
        %5404 = vmatpush1.bf16.msra.mxu0 %v5156
        %5405 = vmatprep.subr.bf16.mxu0 %v5160
        %5406 = vmatpush1.bf16.msra.mxu0 %v5159
        %5407 = vmatprep.subr.bf16.mxu0 %v5163
        %5408 = vmatpush1.bf16.msra.mxu0 %v5162
        %5409 = vmatprep.subr.bf16.mxu0 %v5166
        %5410 = vmatpush1.bf16.msra.mxu0 %v5165
        %5411 = vmatprep.subr.bf16.mxu0 %v5169
        %5412 = vmatpush1.bf16.msra.mxu0 %v5168
        %5413 = vmatprep.subr.bf16.mxu0 %v5172
        %5414 = vmatpush1.bf16.msra.mxu0 %v5171
        %5415 = vmatprep.mubr.bf16.mxu0 %v4584
        %5416 = vmatmul.mubr.bf16.gmra.mrb[0].mxu0 %v4583
        %v5417 = vpop.f32.mrb[0].mxu0
        %v5418 = vadd.f32 %v5305, %v5417
        %v5419 = vpop.f32.mrb[0].mxu0
        %v5420 = vadd.f32 %v5307, %v5419
        %v5421 = vpop.f32.mrb[0].mxu0
        %v5422 = vadd.f32 %v5309, %v5421
        %v5423 = vpop.f32.mrb[0].mxu0
        %v5424 = vadd.f32 %v5311, %v5423
        %5425 = vmatprep.mubr.bf16.mxu0 %v4588
        %5426 = vmatmul.mubr.bf16.gmra.mrb[0].mxu0 %v4587
        %v5427 = vpop.f32.mrb[0].mxu0
        %v5428 = vadd.f32 %v5315, %v5427
        %v5429 = vpop.f32.mrb[0].mxu0
        %v5430 = vadd.f32 %v5317, %v5429
        %v5431 = vpop.f32.mrb[0].mxu0
        %v5432 = vadd.f32 %v5319, %v5431
        %v5433 = vpop.f32.mrb[0].mxu0
        %v5434 = vadd.f32 %v5321, %v5433
        %5435 = vmatprep.mubr.bf16.mxu0 %v4592
        %5436 = vmatmul.mubr.bf16.gmra.mrb[0].mxu0 %v4591
        %v5437 = vpop.f32.mrb[0].mxu0
        %v5438 = vadd.f32 %v5325, %v5437
        %v5439 = vpop.f32.mrb[0].mxu0
        %v5440 = vadd.f32 %v5327, %v5439
        %v5441 = vpop.f32.mrb[0].mxu0
        %v5442 = vadd.f32 %v5329, %v5441
        %v5443 = vpop.f32.mrb[0].mxu0
        %v5444 = vadd.f32 %v5331, %v5443
        %5445 = vmatprep.mubr.bf16.mxu0 %v4596
        %5446 = vmatmul.mubr.bf16.gmra.mrb[0].mxu0 %v4595
        %v5447 = vpop.f32.mrb[0].mxu0
        %v5448 = vadd.f32 %v5335, %v5447
        %v5449 = vpop.f32.mrb[0].mxu0
        %v5450 = vadd.f32 %v5337, %v5449
        %v5451 = vpop.f32.mrb[0].mxu0
        %v5452 = vadd.f32 %v5339, %v5451
        %v5453 = vpop.f32.mrb[0].mxu0
        %v5454 = vadd.f32 %v5341, %v5453
        %5455 = vmatprep.mubr.bf16.mxu0 %v4600
        %5456 = vmatmul.mubr.bf16.gmra.mrb[0].mxu0 %v4599
        %v5457 = vpop.f32.mrb[0].mxu0
        %v5458 = vadd.f32 %v5345, %v5457
        %v5459 = vpop.f32.mrb[0].mxu0
        %v5460 = vadd.f32 %v5347, %v5459
        %v5461 = vpop.f32.mrb[0].mxu0
        %v5462 = vadd.f32 %v5349, %v5461
        %v5463 = vpop.f32.mrb[0].mxu0
        %v5464 = vadd.f32 %v5351, %v5463
        %5465 = vmatprep.mubr.bf16.mxu0 %v4604
        %5466 = vmatmul.mubr.bf16.gmra.mrb[0].mxu0 %v4603
        %v5467 = vpop.f32.mrb[0].mxu0
        %v5468 = vadd.f32 %v5355, %v5467
        %v5469 = vpop.f32.mrb[0].mxu0
        %v5470 = vadd.f32 %v5357, %v5469
        %v5471 = vpop.f32.mrb[0].mxu0
        %v5472 = vadd.f32 %v5359, %v5471
        %v5473 = vpop.f32.mrb[0].mxu0
        %v5474 = vadd.f32 %v5361, %v5473
        %5475 = vmatprep.mubr.bf16.mxu0 %v4608
        %5476 = vmatmul.mubr.bf16.gmra.mrb[0].mxu0 %v4607
        %v5477 = vpop.f32.mrb[0].mxu0
        %v5478 = vadd.f32 %v5365, %v5477
        %v5479 = vpop.f32.mrb[0].mxu0
        %v5480 = vadd.f32 %v5367, %v5479
        %v5481 = vpop.f32.mrb[0].mxu0
        %v5482 = vadd.f32 %v5369, %v5481
        %v5483 = vpop.f32.mrb[0].mxu0
        %v5484 = vadd.f32 %v5371, %v5483
        %5485 = vmatprep.mubr.bf16.mxu0 %v4612
        %5486 = vmatmul.mubr.bf16.gmra.mrb[0].mxu0 %v4611
        %v5487 = vpop.f32.mrb[0].mxu0
        %v5488 = vadd.f32 %v5375, %v5487
        %v5489 = vpop.f32.mrb[0].mxu0
        %v5490 = vadd.f32 %v5377, %v5489
        %v5491 = vpop.f32.mrb[0].mxu0
        %v5492 = vadd.f32 %v5379, %v5491
        %v5493 = vpop.f32.mrb[0].mxu0
        %v5494 = vadd.f32 %v5381, %v5493
        %5495 = vdwg.mxu0
        %5496 = vmatprep.subr.bf16.mxu0 0
        %5497 = vmatpush1.bf16.msra.mxu0 %v5080
        %5498 = vmatprep.subr.bf16.mxu0 0
        %5499 = vmatpush1.bf16.msra.mxu0 %v5083
        %5500 = vmatprep.subr.bf16.mxu0 0
        %5501 = vmatpush1.bf16.msra.mxu0 %v5086
        %5502 = vmatprep.subr.bf16.mxu0 0
        %5503 = vmatpush1.bf16.msra.mxu0 %v5089
        %5504 = vmatprep.subr.bf16.mxu0 0
        %5505 = vmatpush1.bf16.msra.mxu0 %v5092
        %5506 = vmatprep.subr.bf16.mxu0 0
        %5507 = vmatpush1.bf16.msra.mxu0 %v5095
        %5508 = vmatprep.subr.bf16.mxu0 0
        %5509 = vmatpush1.bf16.msra.mxu0 %v5098
        %5510 = vmatprep.subr.bf16.mxu0 0
        %5511 = vmatpush1.bf16.msra.mxu0 %v5101
        %5512 = vmatprep.subr.bf16.mxu0 0
        %5513 = vmatpush1.bf16.msra.mxu0 %v5104
        %5514 = vmatprep.subr.bf16.mxu0 0
        %5515 = vmatpush1.bf16.msra.mxu0 %v5107
        %5516 = vmatprep.subr.bf16.mxu0 0
        %5517 = vmatpush1.bf16.msra.mxu0 %v5110
        %5518 = vmatprep.subr.bf16.mxu0 0
        %5519 = vmatpush1.bf16.msra.mxu0 %v5113
        %5520 = vmatprep.subr.bf16.mxu0 0
        %5521 = vmatpush1.bf16.msra.mxu0 %v5116
        %5522 = vmatprep.subr.bf16.mxu0 0
        %5523 = vmatpush1.bf16.msra.mxu0 %v5119
        %5524 = vmatprep.subr.bf16.mxu0 0
        %5525 = vmatpush1.bf16.msra.mxu0 %v5122
        %5526 = vmatprep.subr.bf16.mxu0 0
        %5527 = vmatpush1.bf16.msra.mxu0 %v5125
        %5528 = vmatprep.mubr.bf16.mxu0 %v4582
        %5529 = vmatmul.mubr.bf16.gmra.mrb[0].mxu0 %v4581
        %v5530 = vpop.f32.mrb[0].mxu0
        %v5531 = vadd.f32 %v4754, %v5530
        %v5532 = vpop.f32.mrb[0].mxu0
        %v5533 = vpop.f32.mrb[0].mxu0
        %v5534 = vadd.f32 %v4754, %v5533
        %v5535 = vpop.f32.mrb[0].mxu0
        %5536 = vmatprep.mubr.bf16.mxu0 %v4586
        %5537 = vmatmul.mubr.bf16.gmra.mrb[0].mxu0 %v4585
        %v5538 = vpop.f32.mrb[0].mxu0
        %v5539 = vadd.f32 %v4754, %v5538
        %v5540 = vpop.f32.mrb[0].mxu0
        %v5541 = vpop.f32.mrb[0].mxu0
        %v5542 = vadd.f32 %v4754, %v5541
        %v5543 = vpop.f32.mrb[0].mxu0
        %5544 = vmatprep.mubr.bf16.mxu0 %v4590
        %5545 = vmatmul.mubr.bf16.gmra.mrb[0].mxu0 %v4589
        %v5546 = vpop.f32.mrb[0].mxu0
        %v5547 = vadd.f32 %v4754, %v5546
        %v5548 = vpop.f32.mrb[0].mxu0
        %v5549 = vpop.f32.mrb[0].mxu0
        %v5550 = vadd.f32 %v4754, %v5549
        %v5551 = vpop.f32.mrb[0].mxu0
        %5552 = vmatprep.mubr.bf16.mxu0 %v4594
        %5553 = vmatmul.mubr.bf16.gmra.mrb[0].mxu0 %v4593
        %v5554 = vpop.f32.mrb[0].mxu0
        %v5555 = vadd.f32 %v4754, %v5554
        %v5556 = vpop.f32.mrb[0].mxu0
        %v5557 = vpop.f32.mrb[0].mxu0
        %v5558 = vadd.f32 %v4754, %v5557
        %v5559 = vpop.f32.mrb[0].mxu0
        %5560 = vmatprep.mubr.bf16.mxu0 %v4598
        %5561 = vmatmul.mubr.bf16.gmra.mrb[0].mxu0 %v4597
        %v5562 = vpop.f32.mrb[0].mxu0
        %v5563 = vadd.f32 %v4754, %v5562
        %v5564 = vpop.f32.mrb[0].mxu0
        %v5565 = vpop.f32.mrb[0].mxu0
        %v5566 = vadd.f32 %v4754, %v5565
        %v5567 = vpop.f32.mrb[0].mxu0
        %5568 = vmatprep.mubr.bf16.mxu0 %v4602
        %5569 = vmatmul.mubr.bf16.gmra.mrb[0].mxu0 %v4601
        %v5570 = vpop.f32.mrb[0].mxu0
        %v5571 = vadd.f32 %v4754, %v5570
        %v5572 = vpop.f32.mrb[0].mxu0
        %v5573 = vpop.f32.mrb[0].mxu0
        %v5574 = vadd.f32 %v4754, %v5573
        %v5575 = vpop.f32.mrb[0].mxu0
        %5576 = vmatprep.mubr.bf16.mxu0 %v4606
        %5577 = vmatmul.mubr.bf16.gmra.mrb[0].mxu0 %v4605
        %v5578 = vpop.f32.mrb[0].mxu0
        %v5579 = vadd.f32 %v4754, %v5578
        %v5580 = vpop.f32.mrb[0].mxu0
        %v5581 = vpop.f32.mrb[0].mxu0
        %v5582 = vadd.f32 %v4754, %v5581
        %v5583 = vpop.f32.mrb[0].mxu0
        %5584 = vmatprep.mubr.bf16.mxu0 %v4610
        %5585 = vmatmul.mubr.bf16.gmra.mrb[0].mxu0 %v4609
        %v5586 = vpop.f32.mrb[0].mxu0
        %v5587 = vadd.f32 %v4754, %v5586
        %v5588 = vpop.f32.mrb[0].mxu0
        %v5589 = vpop.f32.mrb[0].mxu0
        %v5590 = vadd.f32 %v4754, %v5589
        %v5591 = vpop.f32.mrb[0].mxu0
        %5592 = vdwg.mxu0
        %5593 = vmatprep.subr.bf16.mxu0 0
        %5594 = vmatpush1.bf16.msra.mxu0 %v5128
        %5595 = vmatprep.subr.bf16.mxu0 0
        %5596 = vmatpush1.bf16.msra.mxu0 %v5131
        %5597 = vmatprep.subr.bf16.mxu0 0
        %5598 = vmatpush1.bf16.msra.mxu0 %v5134
        %5599 = vmatprep.subr.bf16.mxu0 0
        %5600 = vmatpush1.bf16.msra.mxu0 %v5137
        %5601 = vmatprep.subr.bf16.mxu0 0
        %5602 = vmatpush1.bf16.msra.mxu0 %v5140
        %5603 = vmatprep.subr.bf16.mxu0 0
        %5604 = vmatpush1.bf16.msra.mxu0 %v5143
        %5605 = vmatprep.subr.bf16.mxu0 0
        %5606 = vmatpush1.bf16.msra.mxu0 %v5146
        %5607 = vmatprep.subr.bf16.mxu0 0
        %5608 = vmatpush1.bf16.msra.mxu0 %v5149
        %5609 = vmatprep.subr.bf16.mxu0 0
        %5610 = vmatpush1.bf16.msra.mxu0 %v5152
        %5611 = vmatprep.subr.bf16.mxu0 0
        %5612 = vmatpush1.bf16.msra.mxu0 %v5155
        %5613 = vmatprep.subr.bf16.mxu0 0
        %5614 = vmatpush1.bf16.msra.mxu0 %v5158
        %5615 = vmatprep.subr.bf16.mxu0 0
        %5616 = vmatpush1.bf16.msra.mxu0 %v5161
        %5617 = vmatprep.subr.bf16.mxu0 0
        %5618 = vmatpush1.bf16.msra.mxu0 %v5164
        %5619 = vmatprep.subr.bf16.mxu0 0
        %5620 = vmatpush1.bf16.msra.mxu0 %v5167
        %5621 = vmatprep.subr.bf16.mxu0 0
        %5622 = vmatpush1.bf16.msra.mxu0 %v5170
        %5623 = vmatprep.subr.bf16.mxu0 0
        %5624 = vmatpush1.bf16.msra.mxu0 %v5173
        %5625 = vmatprep.mubr.bf16.mxu0 %v4584
        %5626 = vmatmul.mubr.bf16.gmra.mrb[0].mxu0 %v4583
        %v5627 = vpop.f32.mrb[0].mxu0
        %v5628 = vadd.f32 %v5531, %v5627
        %v5629 = vpop.f32.mrb[0].mxu0
        %v5630 = vpop.f32.mrb[0].mxu0
        %v5631 = vadd.f32 %v5534, %v5630
        %v5632 = vpop.f32.mrb[0].mxu0
        %5633 = vmatprep.mubr.bf16.mxu0 %v4588
        %5634 = vmatmul.mubr.bf16.gmra.mrb[0].mxu0 %v4587
        %v5635 = vpop.f32.mrb[0].mxu0
        %v5636 = vadd.f32 %v5539, %v5635
        %v5637 = vpop.f32.mrb[0].mxu0
        %v5638 = vpop.f32.mrb[0].mxu0
        %v5639 = vadd.f32 %v5542, %v5638
        %v5640 = vpop.f32.mrb[0].mxu0
        %5641 = vmatprep.mubr.bf16.mxu0 %v4592
        %5642 = vmatmul.mubr.bf16.gmra.mrb[0].mxu0 %v4591
        %v5643 = vpop.f32.mrb[0].mxu0
        %v5644 = vadd.f32 %v5547, %v5643
        %v5645 = vpop.f32.mrb[0].mxu0
        %v5646 = vpop.f32.mrb[0].mxu0
        %v5647 = vadd.f32 %v5550, %v5646
        %v5648 = vpop.f32.mrb[0].mxu0
        %5649 = vmatprep.mubr.bf16.mxu0 %v4596
        %5650 = vmatmul.mubr.bf16.gmra.mrb[0].mxu0 %v4595
        %v5651 = vpop.f32.mrb[0].mxu0
        %v5652 = vadd.f32 %v5555, %v5651
        %v5653 = vpop.f32.mrb[0].mxu0
        %v5654 = vpop.f32.mrb[0].mxu0
        %v5655 = vadd.f32 %v5558, %v5654
        %v5656 = vpop.f32.mrb[0].mxu0
        %5657 = vmatprep.mubr.bf16.mxu0 %v4600
        %5658 = vmatmul.mubr.bf16.gmra.mrb[0].mxu0 %v4599
        %v5659 = vpop.f32.mrb[0].mxu0
        %v5660 = vadd.f32 %v5563, %v5659
        %v5661 = vpop.f32.mrb[0].mxu0
        %v5662 = vpop.f32.mrb[0].mxu0
        %v5663 = vadd.f32 %v5566, %v5662
        %v5664 = vpop.f32.mrb[0].mxu0
        %5665 = vmatprep.mubr.bf16.mxu0 %v4604
        %5666 = vmatmul.mubr.bf16.gmra.mrb[0].mxu0 %v4603
        %v5667 = vpop.f32.mrb[0].mxu0
        %v5668 = vadd.f32 %v5571, %v5667
        %v5669 = vpop.f32.mrb[0].mxu0
        %v5670 = vpop.f32.mrb[0].mxu0
        %v5671 = vadd.f32 %v5574, %v5670
        %v5672 = vpop.f32.mrb[0].mxu0
        %5673 = vmatprep.mubr.bf16.mxu0 %v4608
        %5674 = vmatmul.mubr.bf16.gmra.mrb[0].mxu0 %v4607
        %v5675 = vpop.f32.mrb[0].mxu0
        %v5676 = vadd.f32 %v5579, %v5675
        %v5677 = vpop.f32.mrb[0].mxu0
        %v5678 = vpop.f32.mrb[0].mxu0
        %v5679 = vadd.f32 %v5582, %v5678
        %v5680 = vpop.f32.mrb[0].mxu0
        %5681 = vmatprep.mubr.bf16.mxu0 %v4612
        %5682 = vmatmul.mubr.bf16.gmra.mrb[0].mxu0 %v4611
        %v5683 = vpop.f32.mrb[0].mxu0
        %v5684 = vadd.f32 %v5587, %v5683
        %v5685 = vpop.f32.mrb[0].mxu0
        %v5686 = vpop.f32.mrb[0].mxu0
        %v5687 = vadd.f32 %v5590, %v5686
        %v5688 = vpop.f32.mrb[0].mxu0
        %5689 = vdwg.mxu0
        %v5690 = vmax.f32 %v5418, 0.0
        %v5691 = vmax.f32 %v5420, 0.0
        %v5692 = vmax.f32 %v5628, 0.0
        %v5693 = vmax.f32 %v5422, 0.0
        %v5694 = vmax.f32 %v5424, 0.0
        %v5695 = vmax.f32 %v5631, 0.0
        %v5696 = vmax.f32 %v5428, 0.0
        %v5697 = vmax.f32 %v5430, 0.0
        %v5698 = vmax.f32 %v5636, 0.0
        %v5699 = vmax.f32 %v5432, 0.0
        %v5700 = vmax.f32 %v5434, 0.0
        %v5701 = vmax.f32 %v5639, 0.0
        %v5702 = vmax.f32 %v5438, 0.0
        %v5703 = vmax.f32 %v5440, 0.0
        %v5704 = vmax.f32 %v5644, 0.0
        %v5705 = vmax.f32 %v5442, 0.0
        %v5706 = vmax.f32 %v5444, 0.0
        %v5707 = vmax.f32 %v5647, 0.0
        %v5708 = vmax.f32 %v5448, 0.0
        %v5709 = vmax.f32 %v5450, 0.0
        %v5710 = vmax.f32 %v5652, 0.0
        %v5711 = vmax.f32 %v5452, 0.0
        %v5712 = vmax.f32 %v5454, 0.0
        %v5713 = vmax.f32 %v5655, 0.0
        %v5714 = vmax.f32 %v5458, 0.0
        %v5715 = vmax.f32 %v5460, 0.0
        %v5716 = vmax.f32 %v5660, 0.0
        %v5717 = vmax.f32 %v5462, 0.0
        %v5718 = vmax.f32 %v5464, 0.0
        %v5719 = vmax.f32 %v5663, 0.0
        %v5720 = vmax.f32 %v5468, 0.0
        %v5721 = vmax.f32 %v5470, 0.0
        %v5722 = vmax.f32 %v5668, 0.0
        %v5723 = vmax.f32 %v5472, 0.0
        %v5724 = vmax.f32 %v5474, 0.0
        %v5725 = vmax.f32 %v5671, 0.0
        %v5726 = vmax.f32 %v5478, 0.0
        %v5727 = vmax.f32 %v5480, 0.0
        %v5728 = vmax.f32 %v5676, 0.0
        %v5729 = vmax.f32 %v5482, 0.0
        %v5730 = vmax.f32 %v5484, 0.0
        %v5731 = vmax.f32 %v5679, 0.0
        %v5732 = vmax.f32 %v5488, 0.0
        %v5733 = vmax.f32 %v5490, 0.0
        %v5734 = vmax.f32 %v5684, 0.0
        %v5735 = vmax.f32 %v5492, 0.0
        %v5736 = vmax.f32 %v5494, 0.0
        %v5737 = vmax.f32 %v5687, 0.0
        %v5738 = vld [vmem:[%s8] sm:$0x7]
        %v5739 = vld [vmem:[#allocation2] sm:$0x1]
        %5741 = vset.pattern.permute.xlu0 0
        %5742 = vperm.xlu0 %5741, %v5739
        %v5743 = vpop.permute.xlu0 %5742
        %v5745 = vlaneseq
        %v5746 = vshrl.u32 %v5745, 7
        %v5747 = vsub.s32 0, %v5746
        %v5748 = vrot.slane %v5743, %v5747
        %v5750 = vlaneseq
        %v5751 = vshrl.u32 %v5750, 7
        %v5752 = vsub.s32 0, %v5751
        %v5753 = vrot.slane %v5738, %v5752
        %v5754 = vlaneseq
        %v5755 = vshrl.u32 %v5754, 7
        %v5756 = vsub.s32 1, %v5755
        %v5757 = vrot.slane %v5738, %v5756
        %v5758 = vlaneseq
        %v5759 = vshrl.u32 %v5758, 7
        %v5760 = vsub.s32 2, %v5759
        %v5761 = vrot.slane %v5738, %v5760
        %5765 = vmatprep.subr.mxu0 %v5691
        %5766 = vmatpush1.xpose.msra.mxu0 %v5690
        %5767 = vmatprep.subr.mxu0 %v5694
        %5768 = vmatpush1.xpose.msra.mxu0 %v5693
        %5769 = vmatprep.subr.mxu0 %v5697
        %5770 = vmatpush1.xpose.msra.mxu0 %v5696
        %5771 = vmatprep.subr.mxu0 %v5700
        %5772 = vmatpush1.xpose.msra.mxu0 %v5699
        %5773 = vmatprep.subr.mxu0 %v5703
        %5774 = vmatpush1.xpose.msra.mxu0 %v5702
        %5775 = vmatprep.subr.mxu0 %v5706
        %5776 = vmatpush1.xpose.msra.mxu0 %v5705
        %5777 = vmatprep.subr.mxu0 %v5709
        %5778 = vmatpush1.xpose.msra.mxu0 %v5708
        %5779 = vmatprep.subr.mxu0 %v5712
        %5780 = vmatpush1.xpose.msra.mxu0 %v5711
        %5781 = vmatprep.subr.mxu0 %v5715
        %5782 = vmatpush1.xpose.msra.mxu0 %v5714
        %5783 = vmatprep.subr.mxu0 %v5718
        %5784 = vmatpush1.xpose.msra.mxu0 %v5717
        %5785 = vmatprep.subr.mxu0 %v5721
        %5786 = vmatpush1.xpose.msra.mxu0 %v5720
        %5787 = vmatprep.subr.mxu0 %v5724
        %5788 = vmatpush1.xpose.msra.mxu0 %v5723
        %5789 = vmatprep.subr.mxu0 %v5727
        %5790 = vmatpush1.xpose.msra.mxu0 %v5726
        %5791 = vmatprep.subr.mxu0 %v5730
        %5792 = vmatpush1.xpose.msra.mxu0 %v5729
        %5793 = vmatprep.subr.mxu0 %v5733
        %5794 = vmatpush1.xpose.msra.mxu0 %v5732
        %5795 = vmatprep.subr.mxu0 %v5736
        %5796 = vmatpush1.xpose.msra.mxu0 %v5735
        %5797 = vmatprep.subr.mxu0 0.0
        %5798 = vmatpush1.xpose.msra.mxu0 0.0
        %5799 = vmatprep.subr.mxu0 0.0
        %5800 = vmatpush1.xpose.msra.mxu0 0.0
        %5801 = vmatprep.subr.mxu0 0.0
        %5802 = vmatpush1.xpose.msra.mxu0 0.0
        %5803 = vmatprep.subr.mxu0 0.0
        %5804 = vmatpush1.xpose.msra.mxu0 0.0
        %5805 = vmatprep.subr.mxu0 0.0
        %5806 = vmatpush1.xpose.msra.mxu0 0.0
        %5807 = vmatprep.subr.mxu0 0.0
        %5808 = vmatpush1.xpose.msra.mxu0 0.0
        %5809 = vmatprep.subr.mxu0 0.0
        %5810 = vmatpush1.xpose.msra.mxu0 0.0
        %5811 = vmatprep.subr.mxu0 0.0
        %5812 = vmatpush1.xpose.msra.mxu0 0.0
        %5813 = vmatprep.subr.mxu0 0.0
        %5814 = vmatpush1.xpose.msra.mxu0 0.0
        %5815 = vmatprep.subr.mxu0 0.0
        %5816 = vmatpush1.xpose.msra.mxu0 0.0
        %5817 = vmatprep.subr.mxu0 0.0
        %5818 = vmatpush1.xpose.msra.mxu0 0.0
        %5819 = vmatprep.subr.mxu0 0.0
        %5820 = vmatpush1.xpose.msra.mxu0 0.0
        %5821 = vmatprep.subr.mxu0 0.0
        %5822 = vmatpush1.xpose.msra.mxu0 0.0
        %5823 = vmatprep.subr.mxu0 0.0
        %5824 = vmatpush1.xpose.msra.mxu0 0.0
        %5825 = vmatprep.subr.mxu0 0.0
        %5826 = vmatpush1.xpose.msra.mxu0 0.0
        %5827 = vmatprep.subr.mxu0 0.0
        %5828 = vmatpush1.xpose.msra.mxu0 0.0
        %5829 = vmatprep.mubr.f32.mxu0 %v5757
        %5830 = vmatmul.mubr.f32.gmra.mrb[0].mxu0 %v5753
        %v5831 = vpop.f32.mrb[0].mxu0
        %v5832 = vadd.f32 %v5748, %v5831
        %v5833 = vpop.f32.mrb[0].mxu0
        %5834 = vdwg.mxu0
        %5835 = vmatprep.subr.mxu0 0.0
        %5836 = vmatpush1.xpose.msra.mxu0 %v5692
        %5837 = vmatprep.subr.mxu0 0.0
        %5838 = vmatpush1.xpose.msra.mxu0 %v5695
        %5839 = vmatprep.subr.mxu0 0.0
        %5840 = vmatpush1.xpose.msra.mxu0 %v5698
        %5841 = vmatprep.subr.mxu0 0.0
        %5842 = vmatpush1.xpose.msra.mxu0 %v5701
        %5843 = vmatprep.subr.mxu0 0.0
        %5844 = vmatpush1.xpose.msra.mxu0 %v5704
        %5845 = vmatprep.subr.mxu0 0.0
        %5846 = vmatpush1.xpose.msra.mxu0 %v5707
        %5847 = vmatprep.subr.mxu0 0.0
        %5848 = vmatpush1.xpose.msra.mxu0 %v5710
        %5849 = vmatprep.subr.mxu0 0.0
        %5850 = vmatpush1.xpose.msra.mxu0 %v5713
        %5851 = vmatprep.subr.mxu0 0.0
        %5852 = vmatpush1.xpose.msra.mxu0 %v5716
        %5853 = vmatprep.subr.mxu0 0.0
        %5854 = vmatpush1.xpose.msra.mxu0 %v5719
        %5855 = vmatprep.subr.mxu0 0.0
        %5856 = vmatpush1.xpose.msra.mxu0 %v5722
        %5857 = vmatprep.subr.mxu0 0.0
        %5858 = vmatpush1.xpose.msra.mxu0 %v5725
        %5859 = vmatprep.subr.mxu0 0.0
        %5860 = vmatpush1.xpose.msra.mxu0 %v5728
        %5861 = vmatprep.subr.mxu0 0.0
        %5862 = vmatpush1.xpose.msra.mxu0 %v5731
        %5863 = vmatprep.subr.mxu0 0.0
        %5864 = vmatpush1.xpose.msra.mxu0 %v5734
        %5865 = vmatprep.subr.mxu0 0.0
        %5866 = vmatpush1.xpose.msra.mxu0 %v5737
        %5867 = vmatprep.subr.mxu0 0.0
        %5868 = vmatpush1.xpose.msra.mxu0 0.0
        %5869 = vmatprep.subr.mxu0 0.0
        %5870 = vmatpush1.xpose.msra.mxu0 0.0
        %5871 = vmatprep.subr.mxu0 0.0
        %5872 = vmatpush1.xpose.msra.mxu0 0.0
        %5873 = vmatprep.subr.mxu0 0.0
        %5874 = vmatpush1.xpose.msra.mxu0 0.0
        %5875 = vmatprep.subr.mxu0 0.0
        %5876 = vmatpush1.xpose.msra.mxu0 0.0
        %5877 = vmatprep.subr.mxu0 0.0
        %5878 = vmatpush1.xpose.msra.mxu0 0.0
        %5879 = vmatprep.subr.mxu0 0.0
        %5880 = vmatpush1.xpose.msra.mxu0 0.0
        %5881 = vmatprep.subr.mxu0 0.0
        %5882 = vmatpush1.xpose.msra.mxu0 0.0
        %5883 = vmatprep.subr.mxu0 0.0
        %5884 = vmatpush1.xpose.msra.mxu0 0.0
        %5885 = vmatprep.subr.mxu0 0.0
        %5886 = vmatpush1.xpose.msra.mxu0 0.0
        %5887 = vmatprep.subr.mxu0 0.0
        %5888 = vmatpush1.xpose.msra.mxu0 0.0
        %5889 = vmatprep.subr.mxu0 0.0
        %5890 = vmatpush1.xpose.msra.mxu0 0.0
        %5891 = vmatprep.subr.mxu0 0.0
        %5892 = vmatpush1.xpose.msra.mxu0 0.0
        %5893 = vmatprep.subr.mxu0 0.0
        %5894 = vmatpush1.xpose.msra.mxu0 0.0
        %5895 = vmatprep.subr.mxu0 0.0
        %5896 = vmatpush1.xpose.msra.mxu0 0.0
        %5897 = vmatprep.subr.mxu0 0.0
        %5898 = vmatpush1.xpose.msra.mxu0 0.0
        %5899 = vmatprep.mubr.f32.mxu0 0.0
        %5900 = vmatmul.mubr.f32.gmra.mrb[0].mxu0 %v5761
        %v5901 = vpop.f32.mrb[0].mxu0
        %v5902 = vadd.f32 %v5832, %v5901
        %v5903 = vpop.f32.mrb[0].mxu0
        %5904 = vdwg.mxu0
        %5905 = vst [vmem:[%s436] sm:$0x1] %v5902
        %s5906 = sand.u32 %s254, 1
        %s5907 = scalar_lea.sflag [#allocation5], %s5906
        %s5908 = sand.u32 %s254, 1
        %s5909 = scalar_lea.vmem [#allocation12], %s5908
        // Predicated region
        $region81: #{tpu_custom_call.1} parent=59 // pred_check
          %p5910 = pneg %p264
        $region82: #{tpu_custom_call.1} parent=59 // pred_check_branch
          %5912 = sbr.rel (%p5910) target = $region84
        $region83: #{tpu_custom_call.1} parent=59 // pred_region
          %s5914 = ssub.s32 16, 16
          %5915 = vsyncadd %s5907, %s5914
          %s5916 = smul.addr %s31, 16
          %s5917 = scalar_lea.hbm %s10, %s5916
          %s5919 = sshll.u32 %s5909, 4
          %s5920 = int_to_ptr.vmem [resolvable:$true] %s5919
          %5922 = dma.vmem_to_hbm [thread:$0]  %s5920, 16, %s5917, %s5907
        $region84: #{tpu_custom_call.1} parent=59 // pred_fallthru
          _
      $region60: #{tpu_custom_call.1} parent=5 // pred_fallthru
        _
      %p5923 = scmp.le.s32.totalorder 2, %s26
      // Predicated region
      $region85: #{tpu_custom_call.1} parent=5 // pred_check
        %p5924 = pneg %p5923
      $region86: #{tpu_custom_call.1} parent=5 // pred_check_branch
        %5926 = sbr.rel (%p5924) target = $region88
      $region87: #{tpu_custom_call.1} parent=5 // pred_region
        %s5927 = ssub.s32 %s26, 2
        // Predicated region
        $region89: #{tpu_custom_call.1} parent=87 // pred_check
          %p5928 = pneg %p270
        $region90: #{tpu_custom_call.1} parent=87 // pred_check_branch
          %5930 = sbr.rel (%p5928) target = $region92
        $region91: #{tpu_custom_call.1} parent=87 // pred_region
          %s5931 = sand.u32 %s255, 1
          %s5932 = scalar_lea.sflag [#allocation5], %s5931
          %s5933 = sand.u32 %s255, 1
          %s5934 = scalar_lea.vmem [#allocation12], %s5933
          %5935 = dma.done %s5932, 16
        $region92: #{tpu_custom_call.1} parent=87 // pred_fallthru
          _
      $region88: #{tpu_custom_call.1} parent=5 // pred_fallthru
        _
    $region6: #{tpu_custom_call.1} parent=1 // loop_footer
      %s30 = sadd.s32 1, %s26
    $region7: #{tpu_custom_call.1} parent=1 // loop_footer_branch
      %25 = sbr.rel target = $region3
    $region8: #{tpu_custom_call.1} parent=1 // loop_exit
      _
    %5936 = vsyncpa [#allocation4], 1
    %s5937 = scalar_lea.sflag [#allocation4], 1
    %5938 = vsyncpa %s5937, 1
    %5939 = vsyncpa [#allocation7], 1
    %5940 = vsyncpa [#allocation10], 1
    %5941 = vsyncpa [#allocation5], 1
    %s5942 = scalar_lea.sflag [#allocation5], 1
    %5943 = vsyncpa %s5942, 1

</llo_original>
